<compile_context>
chip_gen: v5e
topology: v5e:2x2
jax: 0.10.0
libtpu: 0.0.40
codegen_flags: <defaults>
</compile_context>

<pallas_src>
import numpy as np
import jax
import jax.numpy as jnp
from jax import lax
from jax.experimental import pallas as pl
from jax.experimental.pallas import tpu as pltpu


# ----------------------------------------------------------------------------
# Kernel 1: ConvTranspose2d, kernel_size=2, stride=2 — one matmul per image.
#   out[n, 2p+a, 2q+b, oc] = sum_ic x[n, p, q, ic] * W[a, b, ic, oc] + bias[oc]
# ----------------------------------------------------------------------------
def _deconv_kernel(x_ref, w_ref, b_ref, o_ref):
    # x_ref: (1, H*W, Cin) bf16; w_ref: (Cin, 4*Cout) bf16; b_ref: (1, 4*Cout) f32
    # o_ref: (1, H*W, 4*Cout) bf16 with column layout (a*2 + b)*Cout + oc
    y = jnp.dot(x_ref[0], w_ref[...], preferred_element_type=jnp.float32)
    o_ref[0] = (y + b_ref[...]).astype(o_ref.dtype)


def deconv2x2_stride2(x_nhwc, wd, bd):
    """ConvTranspose2d(k=2, s=2). Returns bf16 NHWC (N, 2H, 2W, Cout)."""
    N, H, W, Cin = x_nhwc.shape
    Cout = wd.shape[-1]
    x_flat = x_nhwc.reshape(N, H * W, Cin).astype(jnp.bfloat16)
    # columns ordered (a, b, oc) where (a, b) are the 2x2 output-tap indices
    w_flat = wd.transpose(2, 0, 1, 3).reshape(Cin, 4 * Cout).astype(jnp.bfloat16)
    b4 = jnp.tile(bd, 4).reshape(1, 4 * Cout).astype(jnp.float32)

    up4 = pl.pallas_call(
        _deconv_kernel,
        out_shape=jax.ShapeDtypeStruct((N, H * W, 4 * Cout), jnp.bfloat16),
        grid_spec=pltpu.PrefetchScalarGridSpec(
            num_scalar_prefetch=0,
            grid=(N,),
            in_specs=[
                pl.BlockSpec((1, H * W, Cin), lambda n: (n, 0, 0)),
                pl.BlockSpec((Cin, 4 * Cout), lambda n: (0, 0)),
                pl.BlockSpec((1, 4 * Cout), lambda n: (0, 0)),
            ],
            out_specs=pl.BlockSpec((1, H * W, 4 * Cout), lambda n: (n, 0, 0)),
        ),
        compiler_params=pltpu.CompilerParams(dimension_semantics=("parallel",)),
    )(x_flat, w_flat, b4)

    # (p, q, a, b, oc) -> (2p+a, 2q+b, oc): pure layout, done once in XLA (bf16).
    up = up4.reshape(N, H, W, 2, 2, Cout).transpose(0, 1, 3, 2, 4, 5)
    return up.reshape(N, 2 * H, 2 * W, Cout)


# ----------------------------------------------------------------------------
# Kernel 2: concat([out_c, up], C) -> Conv3x3 -> BN -> ReLU -> Conv3x3 -> BN -> ReLU
#
# Both 3x3 convs run on row-flattened activations (pitch Wp = padded row width):
# a shifted window [dy:dy+Ho, dx:dx+Wo] is read as one contiguous flat slice of
# length Ho*Wp starting at dy*Wp+dx. The (Wp-Wo) wrap-around columns of each flat
# row are garbage; they are sliced away by the caller (and zero-masked when they
# must act as conv2's zero padding).
# ----------------------------------------------------------------------------
def fused_concat_double_conv(oc_nhwc, up_nhwc, w1, b1, bn1_scale, bn1_shift,
                             w2, b2, bn2_scale, bn2_shift, padding):
    N, Hin, Win, Cskip = oc_nhwc.shape
    Cup = up_nhwc.shape[-1]
    Cout = w1.shape[-1]
    assert up_nhwc.shape[:3] == (N, Hin, Win)
    assert w1.shape[2] == Cskip + Cup

    p = int(padding)
    Hp, Wp = Hin + 2 * p, Win + 2 * p              # conv1 input (rst) spatial dims
    Ho1, Wo1 = Hp - 2, Wp - 2                      # conv1 output dims
    Ho2, Wo2 = Ho1 - 2 + 2 * p, Wo1 - 2 + 2 * p    # conv2 output dims
    L1, L2 = Ho1 * Wp, Ho2 * Wp                    # flattened output row counts
    Lin = (Hp + 1) * Wp                            # +1 halo row keeps shifted slices in bounds
    Lh = (Ho1 + 2) * Wp + 8                        # conv1-activation scratch (pad + slack)
    head = p * (Wp + 1)                            # zero top/left padding offset in scratch

    # Fold conv bias + eval-mode BatchNorm into the weights / one per-channel shift.
    w1e = (w1 * bn1_scale).astype(jnp.bfloat16)
    w2e = (w2 * bn2_scale).astype(jnp.bfloat16)
    t1 = (bn1_shift + b1 * bn1_scale).reshape(1, Cout).astype(jnp.float32)
    t2 = (bn2_shift + b2 * bn2_scale).reshape(1, Cout).astype(jnp.float32)
    # channel-concat fusion: split conv1 weights into the out_c half and the up half
    w1a = w1e[:, :, :Cskip, :].reshape(9, Cskip, Cout)
    w1b = w1e[:, :, Cskip:, :].reshape(9, Cup, Cout)
    w2r = w2e.reshape(9, Cout, Cout)

    def prep(a):  # spatial pad + 1 bottom halo row, flatten rows, cast to bf16
        a = a.astype(jnp.bfloat16)
        a = jnp.pad(a, ((0, 0), (p, p + 1), (p, p), (0, 0)))
        return a.reshape(N, Lin, a.shape[-1])

    oc_flat = prep(oc_nhwc)
    up_flat = prep(up_nhwc)

    def kernel(oc_ref, up_ref, w1a_ref, w1b_ref, t1_ref, w2_ref, t2_ref,
               o_ref, h_ref):
        # ---- conv1 (+ fused channel concat) + BN1 + ReLU -------------------
        oc_all = oc_ref[0].astype(jnp.float32)             # (Lin, Cskip)
        up_all = up_ref[0].astype(jnp.float32)             # (Lin, Cup)
        acc1 = jnp.zeros((L1, Cout), jnp.float32)
        for dy in range(3):
            for dx in range(3):
                k = dy * 3 + dx
                off = dy * Wp + dx
                xa = oc_all[off:off + L1, :].astype(jnp.bfloat16)
                xb = up_all[off:off + L1, :].astype(jnp.bfloat16)
                acc1 = acc1 + jnp.dot(xa, w1a_ref[k, :, :],
                                      preferred_element_type=jnp.float32)
                acc1 = acc1 + jnp.dot(xb, w1b_ref[k, :, :],
                                      preferred_element_type=jnp.float32)
        h = jnp.maximum(acc1 + t1_ref[...], 0.0)
        if p:
            # wrap-around columns must act as conv2's zero padding
            col = lax.broadcasted_iota(jnp.int32, (L1, 1), 0) % Wp
            h = jnp.where(col < Wo1, h, 0.0)

        # Park conv1's activation in VMEM (never goes to HBM); the zeroed head /
        # tail rows implement conv2's zero padding when padding == 1.
        h_ref[...] = jnp.zeros(h_ref.shape, h_ref.dtype)
        h_ref[pl.ds(head, L1), :] = h

        # ---- conv2 + BN2 + ReLU --------------------------------------------
        h_all = h_ref[...]                                  # (Lh, Cout) f32
        acc2 = jnp.zeros((L2, Cout), jnp.float32)
        for dy in range(3):
            for dx in range(3):
                k = dy * 3 + dx
                off = dy * Wp + dx
                xh = h_all[off:off + L2, :].astype(jnp.bfloat16)
                acc2 = acc2 + jnp.dot(xh, w2_ref[k, :, :],
                                      preferred_element_type=jnp.float32)
        o_ref[0] = jnp.maximum(acc2 + t2_ref[...], 0.0)

    out_flat = pl.pallas_call(
        kernel,
        out_shape=jax.ShapeDtypeStruct((N, L2, Cout), jnp.float32),
        grid_spec=pltpu.PrefetchScalarGridSpec(
            num_scalar_prefetch=0,
            grid=(N,),
            in_specs=[
                pl.BlockSpec((1, Lin, Cskip), lambda n: (n, 0, 0)),
                pl.BlockSpec((1, Lin, Cup), lambda n: (n, 0, 0)),
                pl.BlockSpec((9, Cskip, Cout), lambda n: (0, 0, 0)),
                pl.BlockSpec((9, Cup, Cout), lambda n: (0, 0, 0)),
                pl.BlockSpec((1, Cout), lambda n: (0, 0)),
                pl.BlockSpec((9, Cout, Cout), lambda n: (0, 0, 0)),
                pl.BlockSpec((1, Cout), lambda n: (0, 0)),
            ],
            out_specs=pl.BlockSpec((1, L2, Cout), lambda n: (n, 0, 0)),
            scratch_shapes=[pltpu.VMEM((Lh, Cout), jnp.float32)],
        ),
        compiler_params=pltpu.CompilerParams(dimension_semantics=("parallel",)),
    )(oc_flat, up_flat, w1a, w1b, t1, w2r, t2)

    # drop the wrap-around garbage columns; back to NHWC
    return out_flat.reshape(N, Ho2, Wp, Cout)[:, :, :Wo2, :]


# ----------------------------------------------------------------------------
# Parameters (deterministic synthetic init):
#   deconv weight (2,2,Cin,Cout)  <->  torch (Cin,Cout,2,2)
#   conv weight   (3,3,Cin,Cout)  <->  torch (Cout,Cin,3,3)
#   BatchNorm folded to scale = gamma/sqrt(var+eps), shift = beta - mean*scale
# ----------------------------------------------------------------------------
def init_params(key, in_channels, out_channels, eps=1e-5):
    ks = jax.random.split(key, 14)

    def rnd(k, shape, s=0.2):
        return s * jax.random.normal(k, shape, jnp.float32)

    p = {}
    p["deconv_w"] = rnd(ks[0], (2, 2, in_channels, out_channels))
    p["deconv_b"] = rnd(ks[1], (out_channels,))

    p["conv1_w"] = rnd(ks[2], (3, 3, in_channels, out_channels))
    p["conv1_b"] = rnd(ks[3], (out_channels,))
    g1 = 1.0 + rnd(ks[4], (out_channels,), 0.1)
    be1 = rnd(ks[5], (out_channels,), 0.1)
    m1 = rnd(ks[6], (out_channels,), 0.1)
    v1 = 1.0 + 0.5 * jax.random.uniform(ks[7], (out_channels,), jnp.float32)
    p["bn1_scale"] = g1 / jnp.sqrt(v1 + eps)
    p["bn1_shift"] = be1 - m1 * p["bn1_scale"]

    p["conv2_w"] = rnd(ks[8], (3, 3, out_channels, out_channels))
    p["conv2_b"] = rnd(ks[9], (out_channels,))
    g2 = 1.0 + rnd(ks[10], (out_channels,), 0.1)
    be2 = rnd(ks[11], (out_channels,), 0.1)
    m2 = rnd(ks[12], (out_channels,), 0.1)
    v2 = 1.0 + 0.5 * jax.random.uniform(ks[13], (out_channels,), jnp.float32)
    p["bn2_scale"] = g2 / jnp.sqrt(v2 + eps)
    p["bn2_shift"] = be2 - m2 * p["bn2_scale"]
    return p


# ----------------------------------------------------------------------------
# Forward pass (PyTorch-compatible NCHW in / NCHW out)
# ----------------------------------------------------------------------------
def expansion_forward(params, out_c, x, pad=False):
    x_nhwc = jnp.transpose(x, (0, 2, 3, 1))
    oc_nhwc = jnp.transpose(out_c, (0, 2, 3, 1))
    up = deconv2x2_stride2(x_nhwc, params["deconv_w"], params["deconv_b"])
    out = fused_concat_double_conv(
        oc_nhwc, up,
        params["conv1_w"], params["conv1_b"],
        params["bn1_scale"], params["bn1_shift"],
        params["conv2_w"], params["conv2_b"],
        params["bn2_scale"], params["bn2_shift"],
        1 if pad else 0)
    return jnp.transpose(out, (0, 3, 1, 2))


# Pure-JAX f32 reference (XLA convs) used only for correctness checking.
def reference_forward(params, out_c, x, pad=False):
    x_nhwc = jnp.transpose(x, (0, 2, 3, 1))
    oc_nhwc = jnp.transpose(out_c, (0, 2, 3, 1))
    N, H, W, _ = x_nhwc.shape
    Cout = params["deconv_w"].shape[-1]
    up = jnp.einsum('nhwi,dkio->nhdwko', x_nhwc, params["deconv_w"],
                    precision=lax.Precision.HIGHEST)
    up = up.reshape(N, 2 * H, 2 * W, Cout) + params["deconv_b"]
    rst = jnp.concatenate([oc_nhwc, up], axis=-1)
    p = 1 if pad else 0

    def block(z, w, b, scale, shift):
        y = lax.conv_general_dilated(
            z, w, (1, 1), [(p, p), (p, p)],
            dimension_numbers=('NHWC', 'HWIO', 'NHWC'),
            precision=lax.Precision.HIGHEST)
        return jnp.maximum((y + b) * scale + shift, 0.0)

    rst = block(rst, params["conv1_w"], params["conv1_b"],
                params["bn1_scale"], params["bn1_shift"])
    rst = block(rst, params["conv2_w"], params["conv2_b"],
                params["bn2_scale"], params["bn2_shift"])
    return jnp.transpose(rst, (0, 3, 1, 2))


if __name__ == "__main__":
    in_channels, out_channels = 8, 4      # U-Net convention: in = 2 * out
    N, H, W = 2, 8, 8                     # x spatial 8x8 -> upsampled 16x16

    key = jax.random.PRNGKey(0)
    kp, kx, kc = jax.random.split(key, 3)
    params = init_params(kp, in_channels, out_channels)

    x = jax.random.normal(kx, (N, in_channels, H, W), jnp.float32)
    out_c = jax.random.normal(
        kc, (N, in_channels - out_channels, 2 * H, 2 * W), jnp.float32)

    fwd = jax.jit(expansion_forward, static_argnames=("pad",))
    out = jax.block_until_ready(fwd(params, out_c, x, pad=False))

    assert out.shape == (N, out_channels, 2 * H - 4, 2 * W - 4), out.shape
    ref = reference_forward(params, out_c, x, pad=False)
    # Tolerances re-derived for the bf16 compute path (f32 accumulation): observed
    # error is <1e-2 relative; 5e-2 gives margin vs the f32 HIGHEST reference.
    np.testing.assert_allclose(np.asarray(out), np.asarray(ref),
                               rtol=5e-2, atol=5e-2)
    print("KERNEL_OK")
</pallas_src>

<mosaic_0001>
module attributes {stable_mosaic.version = 11 : i64} {
  func.func @_deconv_kernel(%arg0: i32, %arg1: memref<1x64x8xbf16, #tpu.memory_space<vmem>>, %arg2: memref<8x16xbf16, #tpu.memory_space<vmem>>, %arg3: memref<1x16xf32, #tpu.memory_space<vmem>>, %arg4: memref<1x64x16xbf16, #tpu.memory_space<vmem>>) attributes {dimension_semantics = [#tpu.dimension_semantics<parallel>], iteration_bounds = array<i64: 2>, scalar_prefetch = 0 : i64, scratch_operands = 0 : i64, tpu.core_type = #tpu.core_type<tc>, window_params = [{transform_indices = @transform_0, window_bounds = array<i64: 1, 64, 8>}, {pipeline_mode = #tpu.pipeline_mode<synchronous>, transform_indices = @transform_1, window_bounds = array<i64: 8, 16>}, {pipeline_mode = #tpu.pipeline_mode<synchronous>, transform_indices = @transform_2, window_bounds = array<i64: 1, 16>}, {transform_indices = @transform_3, window_bounds = array<i64: 1, 64, 16>}]} {
    %c0 = arith.constant 0 : index
    %c0_0 = arith.constant 0 : index
    %c0_1 = arith.constant 0 : index
    %0 = vector.load %arg1[%c0, %c0_0, %c0_1] : memref<1x64x8xbf16, #tpu.memory_space<vmem>>, vector<1x64x8xbf16>
    %1 = vector.shape_cast %0 : vector<1x64x8xbf16> to vector<64x8xbf16>
    %c0_2 = arith.constant 0 : index
    %c0_3 = arith.constant 0 : index
    %2 = vector.load %arg2[%c0_2, %c0_3] : memref<8x16xbf16, #tpu.memory_space<vmem>>, vector<8x16xbf16>
    %cst = arith.constant dense<0.000000e+00> : vector<64x16xf32>
    %3 = tpu.matmul %1, %2, %cst {dimension_numbers = #tpu.dot_dimension_numbers<[1], [0], [0], [1], [0, 0, 1, 1], [], []>} : vector<64x8xbf16>, vector<8x16xbf16>, vector<64x16xf32> -> vector<64x16xf32>
    %c0_4 = arith.constant 0 : index
    %c0_5 = arith.constant 0 : index
    %4 = vector.load %arg3[%c0_4, %c0_5] : memref<1x16xf32, #tpu.memory_space<vmem>>, vector<1x16xf32>
    %5 = vector.broadcast %4 : vector<1x16xf32> to vector<64x16xf32>
    %6 = arith.addf %3, %5 : vector<64x16xf32>
    %7 = arith.truncf %6 : vector<64x16xf32> to vector<64x16xbf16>
    %c0_6 = arith.constant 0 : index
    %c0_7 = arith.constant 0 : index
    %c0_8 = arith.constant 0 : index
    %8 = vector.load %arg4[%c0_6, %c0_7, %c0_8] : memref<1x64x16xbf16, #tpu.memory_space<vmem>>, vector<1x64x16xbf16>
    %9 = vector.shape_cast %8 : vector<1x64x16xbf16> to vector<64x16xbf16>
    %10 = vector.shape_cast %7 : vector<64x16xbf16> to vector<1x64x16xbf16>
    tpu.vector_store %arg4[%c0_6, %c0_7, %c0_8], %10 {strides = array<i32>} : memref<1x64x16xbf16, #tpu.memory_space<vmem>>, vector<1x64x16xbf16>,
    return
  }
  func.func @transform_0(%arg0: i32) -> (i32, i32, i32) {
    %c0_i32 = arith.constant 0 : i32
    %c0_i32_0 = arith.constant 0 : i32
    %c0_i32_1 = arith.constant 0 : i32
    return %arg0, %c0_i32, %c0_i32_0 : i32, i32, i32
  }
  func.func @transform_1(%arg0: i32) -> (i32, i32) {
    %c0_i32 = arith.constant 0 : i32
    %c0_i32_0 = arith.constant 0 : i32
    %c0_i32_1 = arith.constant 0 : i32
    return %c0_i32, %c0_i32_0 : i32, i32
  }
  func.func @transform_2(%arg0: i32) -> (i32, i32) {
    %c0_i32 = arith.constant 0 : i32
    %c0_i32_0 = arith.constant 0 : i32
    %c0_i32_1 = arith.constant 0 : i32
    return %c0_i32, %c0_i32_0 : i32, i32
  }
  func.func @transform_3(%arg0: i32) -> (i32, i32, i32) {
    %c0_i32 = arith.constant 0 : i32
    %c0_i32_0 = arith.constant 0 : i32
    %c0_i32_1 = arith.constant 0 : i32
    return %arg0, %c0_i32, %c0_i32_0 : i32, i32, i32
  }
}

module attributes {stable_mosaic.version = 11 : i64} {
  func.func @kernel(%arg0: i32, %arg1: memref<1x272x4xbf16, #tpu.memory_space<vmem>>, %arg2: memref<1x272x4xbf16, #tpu.memory_space<vmem>>, %arg3: memref<9x4x4xbf16, #tpu.memory_space<vmem>>, %arg4: memref<9x4x4xbf16, #tpu.memory_space<vmem>>, %arg5: memref<1x4xf32, #tpu.memory_space<vmem>>, %arg6: memref<9x4x4xbf16, #tpu.memory_space<vmem>>, %arg7: memref<1x4xf32, #tpu.memory_space<vmem>>, %arg8: memref<1x192x4xf32, #tpu.memory_space<vmem>>, %arg9: memref<264x4xf32, #tpu.memory_space<vmem>>) attributes {dimension_semantics = [#tpu.dimension_semantics<parallel>], iteration_bounds = array<i64: 2>, scalar_prefetch = 0 : i64, scratch_operands = 1 : i64, tpu.core_type = #tpu.core_type<tc>, window_params = [{transform_indices = @transform_0, window_bounds = array<i64: 1, 272, 4>}, {transform_indices = @transform_1, window_bounds = array<i64: 1, 272, 4>}, {pipeline_mode = #tpu.pipeline_mode<synchronous>, transform_indices = @transform_2, window_bounds = array<i64: 9, 4, 4>}, {pipeline_mode = #tpu.pipeline_mode<synchronous>, transform_indices = @transform_3, window_bounds = array<i64: 9, 4, 4>}, {pipeline_mode = #tpu.pipeline_mode<synchronous>, transform_indices = @transform_4, window_bounds = array<i64: 1, 4>}, {pipeline_mode = #tpu.pipeline_mode<synchronous>, transform_indices = @transform_5, window_bounds = array<i64: 9, 4, 4>}, {pipeline_mode = #tpu.pipeline_mode<synchronous>, transform_indices = @transform_6, window_bounds = array<i64: 1, 4>}, {transform_indices = @transform_7, window_bounds = array<i64: 1, 192, 4>}]} {
    %c0 = arith.constant 0 : index
    %c0_0 = arith.constant 0 : index
    %c0_1 = arith.constant 0 : index
    %0 = vector.load %arg1[%c0, %c0_0, %c0_1] : memref<1x272x4xbf16, #tpu.memory_space<vmem>>, vector<1x272x4xbf16>
    %1 = vector.shape_cast %0 : vector<1x272x4xbf16> to vector<272x4xbf16>
    %2 = arith.extf %1 : vector<272x4xbf16> to vector<272x4xf32>
    %c0_2 = arith.constant 0 : index
    %c0_3 = arith.constant 0 : index
    %c0_4 = arith.constant 0 : index
    %3 = vector.load %arg2[%c0_2, %c0_3, %c0_4] : memref<1x272x4xbf16, #tpu.memory_space<vmem>>, vector<1x272x4xbf16>
    %4 = vector.shape_cast %3 : vector<1x272x4xbf16> to vector<272x4xbf16>
    %5 = arith.extf %4 : vector<272x4xbf16> to vector<272x4xf32>
    %cst = arith.constant 0.000000e+00 : f32
    %6 = vector.broadcast %cst : f32 to vector<224x4xf32>
    %7 = vector.extract_strided_slice %2 {offsets = [0, 0], sizes = [224, 4], strides = [1, 1]} : vector<272x4xf32> to vector<224x4xf32>
    %8 = arith.truncf %7 : vector<224x4xf32> to vector<224x4xbf16>
    %9 = vector.extract_strided_slice %5 {offsets = [0, 0], sizes = [224, 4], strides = [1, 1]} : vector<272x4xf32> to vector<224x4xf32>
    %10 = arith.truncf %9 : vector<224x4xf32> to vector<224x4xbf16>
    %c0_5 = arith.constant 0 : index
    %c0_6 = arith.constant 0 : index
    %c0_7 = arith.constant 0 : index
    %11 = vector.load %arg3[%c0_5, %c0_6, %c0_7] : memref<9x4x4xbf16, #tpu.memory_space<vmem>>, vector<1x4x4xbf16>
    %12 = vector.shape_cast %11 : vector<1x4x4xbf16> to vector<4x4xbf16>
    %cst_8 = arith.constant dense<0.000000e+00> : vector<224x4xf32>
    %13 = tpu.matmul %8, %12, %cst_8 {dimension_numbers = #tpu.dot_dimension_numbers<[1], [0], [0], [1], [0, 0, 1, 1], [], []>} : vector<224x4xbf16>, vector<4x4xbf16>, vector<224x4xf32> -> vector<224x4xf32>
    %14 = arith.addf %6, %13 : vector<224x4xf32>
    %c0_9 = arith.constant 0 : index
    %c0_10 = arith.constant 0 : index
    %c0_11 = arith.constant 0 : index
    %15 = vector.load %arg4[%c0_9, %c0_10, %c0_11] : memref<9x4x4xbf16, #tpu.memory_space<vmem>>, vector<1x4x4xbf16>
    %16 = vector.shape_cast %15 : vector<1x4x4xbf16> to vector<4x4xbf16>
    %cst_12 = arith.constant dense<0.000000e+00> : vector<224x4xf32>
    %17 = tpu.matmul %10, %16, %cst_12 {dimension_numbers = #tpu.dot_dimension_numbers<[1], [0], [0], [1], [0, 0, 1, 1], [], []>} : vector<224x4xbf16>, vector<4x4xbf16>, vector<224x4xf32> -> vector<224x4xf32>
    %18 = arith.addf %14, %17 : vector<224x4xf32>
    %19 = vector.extract_strided_slice %2 {offsets = [1, 0], sizes = [224, 4], strides = [1, 1]} : vector<272x4xf32> to vector<224x4xf32>
    %20 = arith.truncf %19 : vector<224x4xf32> to vector<224x4xbf16>
    %21 = vector.extract_strided_slice %5 {offsets = [1, 0], sizes = [224, 4], strides = [1, 1]} : vector<272x4xf32> to vector<224x4xf32>
    %22 = arith.truncf %21 : vector<224x4xf32> to vector<224x4xbf16>
    %c1 = arith.constant 1 : index
    %c0_13 = arith.constant 0 : index
    %c0_14 = arith.constant 0 : index
    %23 = vector.load %arg3[%c1, %c0_13, %c0_14] : memref<9x4x4xbf16, #tpu.memory_space<vmem>>, vector<1x4x4xbf16>
    %24 = vector.shape_cast %23 : vector<1x4x4xbf16> to vector<4x4xbf16>
    %cst_15 = arith.constant dense<0.000000e+00> : vector<224x4xf32>
    %25 = tpu.matmul %20, %24, %cst_15 {dimension_numbers = #tpu.dot_dimension_numbers<[1], [0], [0], [1], [0, 0, 1, 1], [], []>} : vector<224x4xbf16>, vector<4x4xbf16>, vector<224x4xf32> -> vector<224x4xf32>
    %26 = arith.addf %18, %25 : vector<224x4xf32>
    %c1_16 = arith.constant 1 : index
    %c0_17 = arith.constant 0 : index
    %c0_18 = arith.constant 0 : index
    %27 = vector.load %arg4[%c1_16, %c0_17, %c0_18] : memref<9x4x4xbf16, #tpu.memory_space<vmem>>, vector<1x4x4xbf16>
    %28 = vector.shape_cast %27 : vector<1x4x4xbf16> to vector<4x4xbf16>
    %cst_19 = arith.constant dense<0.000000e+00> : vector<224x4xf32>
    %29 = tpu.matmul %22, %28, %cst_19 {dimension_numbers = #tpu.dot_dimension_numbers<[1], [0], [0], [1], [0, 0, 1, 1], [], []>} : vector<224x4xbf16>, vector<4x4xbf16>, vector<224x4xf32> -> vector<224x4xf32>
    %30 = arith.addf %26, %29 : vector<224x4xf32>
    %31 = vector.extract_strided_slice %2 {offsets = [2, 0], sizes = [224, 4], strides = [1, 1]} : vector<272x4xf32> to vector<224x4xf32>
    %32 = arith.truncf %31 : vector<224x4xf32> to vector<224x4xbf16>
    %33 = vector.extract_strided_slice %5 {offsets = [2, 0], sizes = [224, 4], strides = [1, 1]} : vector<272x4xf32> to vector<224x4xf32>
    %34 = arith.truncf %33 : vector<224x4xf32> to vector<224x4xbf16>
    %c2 = arith.constant 2 : index
    %c0_20 = arith.constant 0 : index
    %c0_21 = arith.constant 0 : index
    %35 = vector.load %arg3[%c2, %c0_20, %c0_21] : memref<9x4x4xbf16, #tpu.memory_space<vmem>>, vector<1x4x4xbf16>
    %36 = vector.shape_cast %35 : vector<1x4x4xbf16> to vector<4x4xbf16>
    %cst_22 = arith.constant dense<0.000000e+00> : vector<224x4xf32>
    %37 = tpu.matmul %32, %36, %cst_22 {dimension_numbers = #tpu.dot_dimension_numbers<[1], [0], [0], [1], [0, 0, 1, 1], [], []>} : vector<224x4xbf16>, vector<4x4xbf16>, vector<224x4xf32> -> vector<224x4xf32>
    %38 = arith.addf %30, %37 : vector<224x4xf32>
    %c2_23 = arith.constant 2 : index
    %c0_24 = arith.constant 0 : index
    %c0_25 = arith.constant 0 : index
    %39 = vector.load %arg4[%c2_23, %c0_24, %c0_25] : memref<9x4x4xbf16, #tpu.memory_space<vmem>>, vector<1x4x4xbf16>
    %40 = vector.shape_cast %39 : vector<1x4x4xbf16> to vector<4x4xbf16>
    %cst_26 = arith.constant dense<0.000000e+00> : vector<224x4xf32>
    %41 = tpu.matmul %34, %40, %cst_26 {dimension_numbers = #tpu.dot_dimension_numbers<[1], [0], [0], [1], [0, 0, 1, 1], [], []>} : vector<224x4xbf16>, vector<4x4xbf16>, vector<224x4xf32> -> vector<224x4xf32>
    %42 = arith.addf %38, %41 : vector<224x4xf32>
    %43 = vector.extract_strided_slice %2 {offsets = [16, 0], sizes = [224, 4], strides = [1, 1]} : vector<272x4xf32> to vector<224x4xf32>
    %44 = arith.truncf %43 : vector<224x4xf32> to vector<224x4xbf16>
    %45 = vector.extract_strided_slice %5 {offsets = [16, 0], sizes = [224, 4], strides = [1, 1]} : vector<272x4xf32> to vector<224x4xf32>
    %46 = arith.truncf %45 : vector<224x4xf32> to vector<224x4xbf16>
    %c3 = arith.constant 3 : index
    %c0_27 = arith.constant 0 : index
    %c0_28 = arith.constant 0 : index
    %47 = vector.load %arg3[%c3, %c0_27, %c0_28] : memref<9x4x4xbf16, #tpu.memory_space<vmem>>, vector<1x4x4xbf16>
    %48 = vector.shape_cast %47 : vector<1x4x4xbf16> to vector<4x4xbf16>
    %cst_29 = arith.constant dense<0.000000e+00> : vector<224x4xf32>
    %49 = tpu.matmul %44, %48, %cst_29 {dimension_numbers = #tpu.dot_dimension_numbers<[1], [0], [0], [1], [0, 0, 1, 1], [], []>} : vector<224x4xbf16>, vector<4x4xbf16>, vector<224x4xf32> -> vector<224x4xf32>
    %50 = arith.addf %42, %49 : vector<224x4xf32>
    %c3_30 = arith.constant 3 : index
    %c0_31 = arith.constant 0 : index
    %c0_32 = arith.constant 0 : index
    %51 = vector.load %arg4[%c3_30, %c0_31, %c0_32] : memref<9x4x4xbf16, #tpu.memory_space<vmem>>, vector<1x4x4xbf16>
    %52 = vector.shape_cast %51 : vector<1x4x4xbf16> to vector<4x4xbf16>
    %cst_33 = arith.constant dense<0.000000e+00> : vector<224x4xf32>
    %53 = tpu.matmul %46, %52, %cst_33 {dimension_numbers = #tpu.dot_dimension_numbers<[1], [0], [0], [1], [0, 0, 1, 1], [], []>} : vector<224x4xbf16>, vector<4x4xbf16>, vector<224x4xf32> -> vector<224x4xf32>
    %54 = arith.addf %50, %53 : vector<224x4xf32>
    %55 = vector.extract_strided_slice %2 {offsets = [17, 0], sizes = [224, 4], strides = [1, 1]} : vector<272x4xf32> to vector<224x4xf32>
    %56 = arith.truncf %55 : vector<224x4xf32> to vector<224x4xbf16>
    %57 = vector.extract_strided_slice %5 {offsets = [17, 0], sizes = [224, 4], strides = [1, 1]} : vector<272x4xf32> to vector<224x4xf32>
    %58 = arith.truncf %57 : vector<224x4xf32> to vector<224x4xbf16>
    %c4 = arith.constant 4 : index
    %c0_34 = arith.constant 0 : index
    %c0_35 = arith.constant 0 : index
    %59 = vector.load %arg3[%c4, %c0_34, %c0_35] : memref<9x4x4xbf16, #tpu.memory_space<vmem>>, vector<1x4x4xbf16>
    %60 = vector.shape_cast %59 : vector<1x4x4xbf16> to vector<4x4xbf16>
    %cst_36 = arith.constant dense<0.000000e+00> : vector<224x4xf32>
    %61 = tpu.matmul %56, %60, %cst_36 {dimension_numbers = #tpu.dot_dimension_numbers<[1], [0], [0], [1], [0, 0, 1, 1], [], []>} : vector<224x4xbf16>, vector<4x4xbf16>, vector<224x4xf32> -> vector<224x4xf32>
    %62 = arith.addf %54, %61 : vector<224x4xf32>
    %c4_37 = arith.constant 4 : index
    %c0_38 = arith.constant 0 : index
    %c0_39 = arith.constant 0 : index
    %63 = vector.load %arg4[%c4_37, %c0_38, %c0_39] : memref<9x4x4xbf16, #tpu.memory_space<vmem>>, vector<1x4x4xbf16>
    %64 = vector.shape_cast %63 : vector<1x4x4xbf16> to vector<4x4xbf16>
    %cst_40 = arith.constant dense<0.000000e+00> : vector<224x4xf32>
    %65 = tpu.matmul %58, %64, %cst_40 {dimension_numbers = #tpu.dot_dimension_numbers<[1], [0], [0], [1], [0, 0, 1, 1], [], []>} : vector<224x4xbf16>, vector<4x4xbf16>, vector<224x4xf32> -> vector<224x4xf32>
    %66 = arith.addf %62, %65 : vector<224x4xf32>
    %67 = vector.extract_strided_slice %2 {offsets = [18, 0], sizes = [224, 4], strides = [1, 1]} : vector<272x4xf32> to vector<224x4xf32>
    %68 = arith.truncf %67 : vector<224x4xf32> to vector<224x4xbf16>
    %69 = vector.extract_strided_slice %5 {offsets = [18, 0], sizes = [224, 4], strides = [1, 1]} : vector<272x4xf32> to vector<224x4xf32>
    %70 = arith.truncf %69 : vector<224x4xf32> to vector<224x4xbf16>
    %c5 = arith.constant 5 : index
    %c0_41 = arith.constant 0 : index
    %c0_42 = arith.constant 0 : index
    %71 = vector.load %arg3[%c5, %c0_41, %c0_42] : memref<9x4x4xbf16, #tpu.memory_space<vmem>>, vector<1x4x4xbf16>
    %72 = vector.shape_cast %71 : vector<1x4x4xbf16> to vector<4x4xbf16>
    %cst_43 = arith.constant dense<0.000000e+00> : vector<224x4xf32>
    %73 = tpu.matmul %68, %72, %cst_43 {dimension_numbers = #tpu.dot_dimension_numbers<[1], [0], [0], [1], [0, 0, 1, 1], [], []>} : vector<224x4xbf16>, vector<4x4xbf16>, vector<224x4xf32> -> vector<224x4xf32>
    %74 = arith.addf %66, %73 : vector<224x4xf32>
    %c5_44 = arith.constant 5 : index
    %c0_45 = arith.constant 0 : index
    %c0_46 = arith.constant 0 : index
    %75 = vector.load %arg4[%c5_44, %c0_45, %c0_46] : memref<9x4x4xbf16, #tpu.memory_space<vmem>>, vector<1x4x4xbf16>
    %76 = vector.shape_cast %75 : vector<1x4x4xbf16> to vector<4x4xbf16>
    %cst_47 = arith.constant dense<0.000000e+00> : vector<224x4xf32>
    %77 = tpu.matmul %70, %76, %cst_47 {dimension_numbers = #tpu.dot_dimension_numbers<[1], [0], [0], [1], [0, 0, 1, 1], [], []>} : vector<224x4xbf16>, vector<4x4xbf16>, vector<224x4xf32> -> vector<224x4xf32>
    %78 = arith.addf %74, %77 : vector<224x4xf32>
    %79 = vector.extract_strided_slice %2 {offsets = [32, 0], sizes = [224, 4], strides = [1, 1]} : vector<272x4xf32> to vector<224x4xf32>
    %80 = arith.truncf %79 : vector<224x4xf32> to vector<224x4xbf16>
    %81 = vector.extract_strided_slice %5 {offsets = [32, 0], sizes = [224, 4], strides = [1, 1]} : vector<272x4xf32> to vector<224x4xf32>
    %82 = arith.truncf %81 : vector<224x4xf32> to vector<224x4xbf16>
    %c6 = arith.constant 6 : index
    %c0_48 = arith.constant 0 : index
    %c0_49 = arith.constant 0 : index
    %83 = vector.load %arg3[%c6, %c0_48, %c0_49] : memref<9x4x4xbf16, #tpu.memory_space<vmem>>, vector<1x4x4xbf16>
    %84 = vector.shape_cast %83 : vector<1x4x4xbf16> to vector<4x4xbf16>
    %cst_50 = arith.constant dense<0.000000e+00> : vector<224x4xf32>
    %85 = tpu.matmul %80, %84, %cst_50 {dimension_numbers = #tpu.dot_dimension_numbers<[1], [0], [0], [1], [0, 0, 1, 1], [], []>} : vector<224x4xbf16>, vector<4x4xbf16>, vector<224x4xf32> -> vector<224x4xf32>
    %86 = arith.addf %78, %85 : vector<224x4xf32>
    %c6_51 = arith.constant 6 : index
    %c0_52 = arith.constant 0 : index
    %c0_53 = arith.constant 0 : index
    %87 = vector.load %arg4[%c6_51, %c0_52, %c0_53] : memref<9x4x4xbf16, #tpu.memory_space<vmem>>, vector<1x4x4xbf16>
    %88 = vector.shape_cast %87 : vector<1x4x4xbf16> to vector<4x4xbf16>
    %cst_54 = arith.constant dense<0.000000e+00> : vector<224x4xf32>
    %89 = tpu.matmul %82, %88, %cst_54 {dimension_numbers = #tpu.dot_dimension_numbers<[1], [0], [0], [1], [0, 0, 1, 1], [], []>} : vector<224x4xbf16>, vector<4x4xbf16>, vector<224x4xf32> -> vector<224x4xf32>
    %90 = arith.addf %86, %89 : vector<224x4xf32>
    %91 = vector.extract_strided_slice %2 {offsets = [33, 0], sizes = [224, 4], strides = [1, 1]} : vector<272x4xf32> to vector<224x4xf32>
    %92 = arith.truncf %91 : vector<224x4xf32> to vector<224x4xbf16>
    %93 = vector.extract_strided_slice %5 {offsets = [33, 0], sizes = [224, 4], strides = [1, 1]} : vector<272x4xf32> to vector<224x4xf32>
    %94 = arith.truncf %93 : vector<224x4xf32> to vector<224x4xbf16>
    %c7 = arith.constant 7 : index
    %c0_55 = arith.constant 0 : index
    %c0_56 = arith.constant 0 : index
    %95 = vector.load %arg3[%c7, %c0_55, %c0_56] : memref<9x4x4xbf16, #tpu.memory_space<vmem>>, vector<1x4x4xbf16>
    %96 = vector.shape_cast %95 : vector<1x4x4xbf16> to vector<4x4xbf16>
    %cst_57 = arith.constant dense<0.000000e+00> : vector<224x4xf32>
    %97 = tpu.matmul %92, %96, %cst_57 {dimension_numbers = #tpu.dot_dimension_numbers<[1], [0], [0], [1], [0, 0, 1, 1], [], []>} : vector<224x4xbf16>, vector<4x4xbf16>, vector<224x4xf32> -> vector<224x4xf32>
    %98 = arith.addf %90, %97 : vector<224x4xf32>
    %c7_58 = arith.constant 7 : index
    %c0_59 = arith.constant 0 : index
    %c0_60 = arith.constant 0 : index
    %99 = vector.load %arg4[%c7_58, %c0_59, %c0_60] : memref<9x4x4xbf16, #tpu.memory_space<vmem>>, vector<1x4x4xbf16>
    %100 = vector.shape_cast %99 : vector<1x4x4xbf16> to vector<4x4xbf16>
    %cst_61 = arith.constant dense<0.000000e+00> : vector<224x4xf32>
    %101 = tpu.matmul %94, %100, %cst_61 {dimension_numbers = #tpu.dot_dimension_numbers<[1], [0], [0], [1], [0, 0, 1, 1], [], []>} : vector<224x4xbf16>, vector<4x4xbf16>, vector<224x4xf32> -> vector<224x4xf32>
    %102 = arith.addf %98, %101 : vector<224x4xf32>
    %103 = vector.extract_strided_slice %2 {offsets = [34, 0], sizes = [224, 4], strides = [1, 1]} : vector<272x4xf32> to vector<224x4xf32>
    %104 = arith.truncf %103 : vector<224x4xf32> to vector<224x4xbf16>
    %105 = vector.extract_strided_slice %5 {offsets = [34, 0], sizes = [224, 4], strides = [1, 1]} : vector<272x4xf32> to vector<224x4xf32>
    %106 = arith.truncf %105 : vector<224x4xf32> to vector<224x4xbf16>
    %c8 = arith.constant 8 : index
    %c0_62 = arith.constant 0 : index
    %c0_63 = arith.constant 0 : index
    %107 = vector.load %arg3[%c8, %c0_62, %c0_63] : memref<9x4x4xbf16, #tpu.memory_space<vmem>>, vector<1x4x4xbf16>
    %108 = vector.shape_cast %107 : vector<1x4x4xbf16> to vector<4x4xbf16>
    %cst_64 = arith.constant dense<0.000000e+00> : vector<224x4xf32>
    %109 = tpu.matmul %104, %108, %cst_64 {dimension_numbers = #tpu.dot_dimension_numbers<[1], [0], [0], [1], [0, 0, 1, 1], [], []>} : vector<224x4xbf16>, vector<4x4xbf16>, vector<224x4xf32> -> vector<224x4xf32>
    %110 = arith.addf %102, %109 : vector<224x4xf32>
    %c8_65 = arith.constant 8 : index
    %c0_66 = arith.constant 0 : index
    %c0_67 = arith.constant 0 : index
    %111 = vector.load %arg4[%c8_65, %c0_66, %c0_67] : memref<9x4x4xbf16, #tpu.memory_space<vmem>>, vector<1x4x4xbf16>
    %112 = vector.shape_cast %111 : vector<1x4x4xbf16> to vector<4x4xbf16>
    %cst_68 = arith.constant dense<0.000000e+00> : vector<224x4xf32>
    %113 = tpu.matmul %106, %112, %cst_68 {dimension_numbers = #tpu.dot_dimension_numbers<[1], [0], [0], [1], [0, 0, 1, 1], [], []>} : vector<224x4xbf16>, vector<4x4xbf16>, vector<224x4xf32> -> vector<224x4xf32>
    %114 = arith.addf %110, %113 : vector<224x4xf32>
    %c0_69 = arith.constant 0 : index
    %c0_70 = arith.constant 0 : index
    %115 = vector.load %arg5[%c0_69, %c0_70] : memref<1x4xf32, #tpu.memory_space<vmem>>, vector<1x4xf32>
    %116 = vector.broadcast %115 : vector<1x4xf32> to vector<224x4xf32>
    %117 = arith.addf %114, %116 : vector<224x4xf32>
    %cst_71 = arith.constant 0.000000e+00 : f32
    %118 = vector.broadcast %cst_71 : f32 to vector<224x4xf32>
    %119 = arith.maximumf %117, %118 : vector<224x4xf32>
    %cst_72 = arith.constant 0.000000e+00 : f32
    %120 = vector.broadcast %cst_72 : f32 to vector<264x4xf32>
    %c0_73 = arith.constant 0 : index
    %c0_74 = arith.constant 0 : index
    %121 = vector.load %arg9[%c0_73, %c0_74] : memref<264x4xf32, #tpu.memory_space<vmem>>, vector<264x4xf32>
    tpu.vector_store %arg9[%c0_73, %c0_74], %120 {strides = array<i32>} : memref<264x4xf32, #tpu.memory_space<vmem>>, vector<264x4xf32>,
    %c0_75 = arith.constant 0 : index
    %c0_76 = arith.constant 0 : index
    %122 = vector.load %arg9[%c0_75, %c0_76] : memref<264x4xf32, #tpu.memory_space<vmem>>, vector<224x4xf32>
    tpu.vector_store %arg9[%c0_75, %c0_76], %119 {strides = array<i32>} : memref<264x4xf32, #tpu.memory_space<vmem>>, vector<224x4xf32>,
    %c0_77 = arith.constant 0 : index
    %c0_78 = arith.constant 0 : index
    %123 = vector.load %arg9[%c0_77, %c0_78] : memref<264x4xf32, #tpu.memory_space<vmem>>, vector<264x4xf32>
    %cst_79 = arith.constant 0.000000e+00 : f32
    %124 = vector.broadcast %cst_79 : f32 to vector<192x4xf32>
    %125 = vector.extract_strided_slice %123 {offsets = [0, 0], sizes = [192, 4], strides = [1, 1]} : vector<264x4xf32> to vector<192x4xf32>
    %126 = arith.truncf %125 : vector<192x4xf32> to vector<192x4xbf16>
    %c0_80 = arith.constant 0 : index
    %c0_81 = arith.constant 0 : index
    %c0_82 = arith.constant 0 : index
    %127 = vector.load %arg6[%c0_80, %c0_81, %c0_82] : memref<9x4x4xbf16, #tpu.memory_space<vmem>>, vector<1x4x4xbf16>
    %128 = vector.shape_cast %127 : vector<1x4x4xbf16> to vector<4x4xbf16>
    %cst_83 = arith.constant dense<0.000000e+00> : vector<192x4xf32>
    %129 = tpu.matmul %126, %128, %cst_83 {dimension_numbers = #tpu.dot_dimension_numbers<[1], [0], [0], [1], [0, 0, 1, 1], [], []>} : vector<192x4xbf16>, vector<4x4xbf16>, vector<192x4xf32> -> vector<192x4xf32>
    %130 = arith.addf %124, %129 : vector<192x4xf32>
    %131 = vector.extract_strided_slice %123 {offsets = [1, 0], sizes = [192, 4], strides = [1, 1]} : vector<264x4xf32> to vector<192x4xf32>
    %132 = arith.truncf %131 : vector<192x4xf32> to vector<192x4xbf16>
    %c1_84 = arith.constant 1 : index
    %c0_85 = arith.constant 0 : index
    %c0_86 = arith.constant 0 : index
    %133 = vector.load %arg6[%c1_84, %c0_85, %c0_86] : memref<9x4x4xbf16, #tpu.memory_space<vmem>>, vector<1x4x4xbf16>
    %134 = vector.shape_cast %133 : vector<1x4x4xbf16> to vector<4x4xbf16>
    %cst_87 = arith.constant dense<0.000000e+00> : vector<192x4xf32>
    %135 = tpu.matmul %132, %134, %cst_87 {dimension_numbers = #tpu.dot_dimension_numbers<[1], [0], [0], [1], [0, 0, 1, 1], [], []>} : vector<192x4xbf16>, vector<4x4xbf16>, vector<192x4xf32> -> vector<192x4xf32>
    %136 = arith.addf %130, %135 : vector<192x4xf32>
    %137 = vector.extract_strided_slice %123 {offsets = [2, 0], sizes = [192, 4], strides = [1, 1]} : vector<264x4xf32> to vector<192x4xf32>
    %138 = arith.truncf %137 : vector<192x4xf32> to vector<192x4xbf16>
    %c2_88 = arith.constant 2 : index
    %c0_89 = arith.constant 0 : index
    %c0_90 = arith.constant 0 : index
    %139 = vector.load %arg6[%c2_88, %c0_89, %c0_90] : memref<9x4x4xbf16, #tpu.memory_space<vmem>>, vector<1x4x4xbf16>
    %140 = vector.shape_cast %139 : vector<1x4x4xbf16> to vector<4x4xbf16>
    %cst_91 = arith.constant dense<0.000000e+00> : vector<192x4xf32>
    %141 = tpu.matmul %138, %140, %cst_91 {dimension_numbers = #tpu.dot_dimension_numbers<[1], [0], [0], [1], [0, 0, 1, 1], [], []>} : vector<192x4xbf16>, vector<4x4xbf16>, vector<192x4xf32> -> vector<192x4xf32>
    %142 = arith.addf %136, %141 : vector<192x4xf32>
    %143 = vector.extract_strided_slice %123 {offsets = [16, 0], sizes = [192, 4], strides = [1, 1]} : vector<264x4xf32> to vector<192x4xf32>
    %144 = arith.truncf %143 : vector<192x4xf32> to vector<192x4xbf16>
    %c3_92 = arith.constant 3 : index
    %c0_93 = arith.constant 0 : index
    %c0_94 = arith.constant 0 : index
    %145 = vector.load %arg6[%c3_92, %c0_93, %c0_94] : memref<9x4x4xbf16, #tpu.memory_space<vmem>>, vector<1x4x4xbf16>
    %146 = vector.shape_cast %145 : vector<1x4x4xbf16> to vector<4x4xbf16>
    %cst_95 = arith.constant dense<0.000000e+00> : vector<192x4xf32>
    %147 = tpu.matmul %144, %146, %cst_95 {dimension_numbers = #tpu.dot_dimension_numbers<[1], [0], [0], [1], [0, 0, 1, 1], [], []>} : vector<192x4xbf16>, vector<4x4xbf16>, vector<192x4xf32> -> vector<192x4xf32>
    %148 = arith.addf %142, %147 : vector<192x4xf32>
    %149 = vector.extract_strided_slice %123 {offsets = [17, 0], sizes = [192, 4], strides = [1, 1]} : vector<264x4xf32> to vector<192x4xf32>
    %150 = arith.truncf %149 : vector<192x4xf32> to vector<192x4xbf16>
    %c4_96 = arith.constant 4 : index
    %c0_97 = arith.constant 0 : index
    %c0_98 = arith.constant 0 : index
    %151 = vector.load %arg6[%c4_96, %c0_97, %c0_98] : memref<9x4x4xbf16, #tpu.memory_space<vmem>>, vector<1x4x4xbf16>
    %152 = vector.shape_cast %151 : vector<1x4x4xbf16> to vector<4x4xbf16>
    %cst_99 = arith.constant dense<0.000000e+00> : vector<192x4xf32>
    %153 = tpu.matmul %150, %152, %cst_99 {dimension_numbers = #tpu.dot_dimension_numbers<[1], [0], [0], [1], [0, 0, 1, 1], [], []>} : vector<192x4xbf16>, vector<4x4xbf16>, vector<192x4xf32> -> vector<192x4xf32>
    %154 = arith.addf %148, %153 : vector<192x4xf32>
    %155 = vector.extract_strided_slice %123 {offsets = [18, 0], sizes = [192, 4], strides = [1, 1]} : vector<264x4xf32> to vector<192x4xf32>
    %156 = arith.truncf %155 : vector<192x4xf32> to vector<192x4xbf16>
    %c5_100 = arith.constant 5 : index
    %c0_101 = arith.constant 0 : index
    %c0_102 = arith.constant 0 : index
    %157 = vector.load %arg6[%c5_100, %c0_101, %c0_102] : memref<9x4x4xbf16, #tpu.memory_space<vmem>>, vector<1x4x4xbf16>
    %158 = vector.shape_cast %157 : vector<1x4x4xbf16> to vector<4x4xbf16>
    %cst_103 = arith.constant dense<0.000000e+00> : vector<192x4xf32>
    %159 = tpu.matmul %156, %158, %cst_103 {dimension_numbers = #tpu.dot_dimension_numbers<[1], [0], [0], [1], [0, 0, 1, 1], [], []>} : vector<192x4xbf16>, vector<4x4xbf16>, vector<192x4xf32> -> vector<192x4xf32>
    %160 = arith.addf %154, %159 : vector<192x4xf32>
    %161 = vector.extract_strided_slice %123 {offsets = [32, 0], sizes = [192, 4], strides = [1, 1]} : vector<264x4xf32> to vector<192x4xf32>
    %162 = arith.truncf %161 : vector<192x4xf32> to vector<192x4xbf16>
    %c6_104 = arith.constant 6 : index
    %c0_105 = arith.constant 0 : index
    %c0_106 = arith.constant 0 : index
    %163 = vector.load %arg6[%c6_104, %c0_105, %c0_106] : memref<9x4x4xbf16, #tpu.memory_space<vmem>>, vector<1x4x4xbf16>
    %164 = vector.shape_cast %163 : vector<1x4x4xbf16> to vector<4x4xbf16>
    %cst_107 = arith.constant dense<0.000000e+00> : vector<192x4xf32>
    %165 = tpu.matmul %162, %164, %cst_107 {dimension_numbers = #tpu.dot_dimension_numbers<[1], [0], [0], [1], [0, 0, 1, 1], [], []>} : vector<192x4xbf16>, vector<4x4xbf16>, vector<192x4xf32> -> vector<192x4xf32>
    %166 = arith.addf %160, %165 : vector<192x4xf32>
    %167 = vector.extract_strided_slice %123 {offsets = [33, 0], sizes = [192, 4], strides = [1, 1]} : vector<264x4xf32> to vector<192x4xf32>
    %168 = arith.truncf %167 : vector<192x4xf32> to vector<192x4xbf16>
    %c7_108 = arith.constant 7 : index
    %c0_109 = arith.constant 0 : index
    %c0_110 = arith.constant 0 : index
    %169 = vector.load %arg6[%c7_108, %c0_109, %c0_110] : memref<9x4x4xbf16, #tpu.memory_space<vmem>>, vector<1x4x4xbf16>
    %170 = vector.shape_cast %169 : vector<1x4x4xbf16> to vector<4x4xbf16>
    %cst_111 = arith.constant dense<0.000000e+00> : vector<192x4xf32>
    %171 = tpu.matmul %168, %170, %cst_111 {dimension_numbers = #tpu.dot_dimension_numbers<[1], [0], [0], [1], [0, 0, 1, 1], [], []>} : vector<192x4xbf16>, vector<4x4xbf16>, vector<192x4xf32> -> vector<192x4xf32>
    %172 = arith.addf %166, %171 : vector<192x4xf32>
    %173 = vector.extract_strided_slice %123 {offsets = [34, 0], sizes = [192, 4], strides = [1, 1]} : vector<264x4xf32> to vector<192x4xf32>
    %174 = arith.truncf %173 : vector<192x4xf32> to vector<192x4xbf16>
    %c8_112 = arith.constant 8 : index
    %c0_113 = arith.constant 0 : index
    %c0_114 = arith.constant 0 : index
    %175 = vector.load %arg6[%c8_112, %c0_113, %c0_114] : memref<9x4x4xbf16, #tpu.memory_space<vmem>>, vector<1x4x4xbf16>
    %176 = vector.shape_cast %175 : vector<1x4x4xbf16> to vector<4x4xbf16>
    %cst_115 = arith.constant dense<0.000000e+00> : vector<192x4xf32>
    %177 = tpu.matmul %174, %176, %cst_115 {dimension_numbers = #tpu.dot_dimension_numbers<[1], [0], [0], [1], [0, 0, 1, 1], [], []>} : vector<192x4xbf16>, vector<4x4xbf16>, vector<192x4xf32> -> vector<192x4xf32>
    %178 = arith.addf %172, %177 : vector<192x4xf32>
    %c0_116 = arith.constant 0 : index
    %c0_117 = arith.constant 0 : index
    %179 = vector.load %arg7[%c0_116, %c0_117] : memref<1x4xf32, #tpu.memory_space<vmem>>, vector<1x4xf32>
    %180 = vector.broadcast %179 : vector<1x4xf32> to vector<192x4xf32>
    %181 = arith.addf %178, %180 : vector<192x4xf32>
    %cst_118 = arith.constant 0.000000e+00 : f32
    %182 = vector.broadcast %cst_118 : f32 to vector<192x4xf32>
    %183 = arith.maximumf %181, %182 : vector<192x4xf32>
    %c0_119 = arith.constant 0 : index
    %c0_120 = arith.constant 0 : index
    %c0_121 = arith.constant 0 : index
    %184 = vector.load %arg8[%c0_119, %c0_120, %c0_121] : memref<1x192x4xf32, #tpu.memory_space<vmem>>, vector<1x192x4xf32>
    %185 = vector.shape_cast %184 : vector<1x192x4xf32> to vector<192x4xf32>
    %186 = vector.shape_cast %183 : vector<192x4xf32> to vector<1x192x4xf32>
    tpu.vector_store %arg8[%c0_119, %c0_120, %c0_121], %186 {strides = array<i32>} : memref<1x192x4xf32, #tpu.memory_space<vmem>>, vector<1x192x4xf32>,
    return
  }
  func.func @transform_0(%arg0: i32) -> (i32, i32, i32) {
    %c0_i32 = arith.constant 0 : i32
    %c0_i32_0 = arith.constant 0 : i32
    %c0_i32_1 = arith.constant 0 : i32
    return %arg0, %c0_i32, %c0_i32_0 : i32, i32, i32
  }
  func.func @transform_1(%arg0: i32) -> (i32, i32, i32) {
    %c0_i32 = arith.constant 0 : i32
    %c0_i32_0 = arith.constant 0 : i32
    %c0_i32_1 = arith.constant 0 : i32
    return %arg0, %c0_i32, %c0_i32_0 : i32, i32, i32
  }
  func.func @transform_2(%arg0: i32) -> (i32, i32, i32) {
    %c0_i32 = arith.constant 0 : i32
    %c0_i32_0 = arith.constant 0 : i32
    %c0_i32_1 = arith.constant 0 : i32
    %c0_i32_2 = arith.constant 0 : i32
    return %c0_i32, %c0_i32_0, %c0_i32_1 : i32, i32, i32
  }
  func.func @transform_3(%arg0: i32) -> (i32, i32, i32) {
    %c0_i32 = arith.constant 0 : i32
    %c0_i32_0 = arith.constant 0 : i32
    %c0_i32_1 = arith.constant 0 : i32
    %c0_i32_2 = arith.constant 0 : i32
    return %c0_i32, %c0_i32_0, %c0_i32_1 : i32, i32, i32
  }
  func.func @transform_4(%arg0: i32) -> (i32, i32) {
    %c0_i32 = arith.constant 0 : i32
    %c0_i32_0 = arith.constant 0 : i32
    %c0_i32_1 = arith.constant 0 : i32
    return %c0_i32, %c0_i32_0 : i32, i32
  }
  func.func @transform_5(%arg0: i32) -> (i32, i32, i32) {
    %c0_i32 = arith.constant 0 : i32
    %c0_i32_0 = arith.constant 0 : i32
    %c0_i32_1 = arith.constant 0 : i32
    %c0_i32_2 = arith.constant 0 : i32
    return %c0_i32, %c0_i32_0, %c0_i32_1 : i32, i32, i32
  }
  func.func @transform_6(%arg0: i32) -> (i32, i32) {
    %c0_i32 = arith.constant 0 : i32
    %c0_i32_0 = arith.constant 0 : i32
    %c0_i32_1 = arith.constant 0 : i32
    return %c0_i32, %c0_i32_0 : i32, i32
  }
  func.func @transform_7(%arg0: i32) -> (i32, i32, i32) {
    %c0_i32 = arith.constant 0 : i32
    %c0_i32_0 = arith.constant 0 : i32
    %c0_i32_1 = arith.constant 0 : i32
    return %arg0, %c0_i32, %c0_i32_0 : i32, i32, i32
  }
}

</mosaic_0001>

<llo_original>
// kernel: tile.9
$region0: #{tile.9}
  %s0 = inlined_call_operand.vmem [shape: f32[4,4], index: 0, kind: input, shape index: {}]
  %s1 = inlined_call_operand.vmem [shape: f32[1,16], index: 1, kind: output, shape index: {}]
  $region1: #{tile.9} parent=0
    #allocation0 [shape = 'u8[4096]{0}', space=vmem, size = 0x1000, scoped, tag = 'scoped mem for output reshape']
    #allocation1 [shape = 'u8[4096]{0}', space=vmem, size = 0x1000, scoped, tag = 'scoped mem for input reshape']
    %s3 = ssub.s32 16, 1
    %v4 = vld [vmem:[%s0] sm:%s3]
    %5 = vst [vmem:[#allocation1] sm:%s3] %v4
    %v6 = vld [vmem:[#allocation1] sm:$0x1]
    %vm7 = vcmask 31744
    %8 = vst.msk [vmem:[#allocation0] sm:$0x1] %vm7, %v6
    %s9 = scalar_lea.vmem [#allocation1], 3
    %v10 = vld [vmem:[%s9] sm:$0x1]
    %11 = vrot.lane.b32.xlu0 %v10, 12
    %v12 = vpop.permute.xlu0 %11
    %vm13 = vcmask 130144
    %14 = vst.msk [vmem:[#allocation0] sm:$0x1] %vm13, %v12
    %s15 = scalar_lea.vmem [#allocation1], 2
    %v16 = vld [vmem:[%s15] sm:$0x1]
    %17 = vrot.lane.b32.xlu0 %v16, 8
    %v18 = vpop.permute.xlu0 %17
    %vm19 = vcmask 97344
    %20 = vst.msk [vmem:[#allocation0] sm:$0x1] %vm19, %v18
    %s21 = scalar_lea.vmem [#allocation1], 1
    %v22 = vld [vmem:[%s21] sm:$0x1]
    %23 = vrot.lane.b32.xlu0 %v22, 4
    %v24 = vpop.permute.xlu0 %23
    %vm25 = vcmask 64544
    %26 = vst.msk [vmem:[#allocation0] sm:$0x1] %vm25, %v24
    %s28 = ssub.s32 2, 1
    %v29 = vld [vmem:[#allocation0] sm:%s28]
    %s31 = ssub.s32 2, 1
    %32 = vst [vmem:[%s1] sm:%s31] %v29

// kernel: tile.8
$region0: #{tile.8}
  #allocation2 [shape = 's32[1]{0}', space=sflag, size = 0x4, scoped, tag = 'scoped memory for tile.8']
  %s0 = inlined_call_operand.hbm [shape: f32[4], index: 0, kind: input, shape index: {}]
  %s1 = inlined_call_operand.vmem [shape: f32[4,4], index: 1, kind: output, shape index: {}]
  $region1: #{tile.8} parent=0
    #allocation0 [shape = 'u8[512]{0}', space=vmem, size = 0x400, scoped, tag = 'operand span for operand 0']
    #allocation1 [shape = 's32[1]{0}', space=sflag, size = 0x4, scoped, tag = 'scoped memory for tile.8']
    %2 = vsyncpa [#allocation1], 0
    // Predicated region
    $region2: #{tile.8} parent=1 // pred_check
      _
    $region3: #{tile.8} parent=1 // pred_check_branch
      %4 = sbr.rel (0) target = $region5
    $region4: #{tile.8} parent=1 // pred_region
      %6 = vsyncadd [#allocation1], 0
      %s8 = sshll.u32 %s0, 4
      %s9 = int_to_ptr.hbm [resolvable:$true] %s8
      %s10 = sshll.u32 [#allocation0], 4
      %s11 = int_to_ptr.vmem [resolvable:$true] %s10
      %13 = dma.hbm_to_vmem [thread:$0]  %s9, 16, %s11, [#allocation1]
    $region5: #{tile.8} parent=1 // pred_fallthru
      _
    // Predicated region
    $region6: #{tile.8} parent=1 // pred_check
      _
    $region7: #{tile.8} parent=1 // pred_check_branch
      %15 = sbr.rel (0) target = $region9
    $region8: #{tile.8} parent=1 // pred_region
      %17 = dma.done [#allocation1], 16
    $region9: #{tile.8} parent=1 // pred_fallthru
      _
    %v18 = vld [vmem:[#allocation0] ss:$0 sm:$0xff]
    %19 = vst [vmem:[%s1] sm:$0xf] %v18
    %20 = vsyncpa [#allocation1], 1

// kernel: expansion_forward.2
$region0: #{expansion_forward.2}
  #allocation0 [shape = 'u32[]', space=smem, size = 0x4, offset = 0x4, fixed_abs, tag = 'smem constant byte address 0x4 - core index']
  #allocation1 [shape = 'u32[72,128]{1,0:T(1,128)}', space=vmem, size = 0x9000, scoped, tag = 'internal scratch']
  %s0 = inlined_call_operand.vmem [shape: bf16[2,64,8], index: 0, kind: input, shape index: {}]
  %s1 = inlined_call_operand.vmem [shape: bf16[8,16], index: 1, kind: input, shape index: {}]
  %s2 = inlined_call_operand.vmem [shape: f32[1,16], index: 2, kind: input, shape index: {}]
  %s3 = inlined_call_operand.vmem [shape: bf16[2,64,16], index: 3, kind: output, shape index: {}]
  %s4 = sld [smem:[#allocation0]]
  $region45: #{expansion_forward.2} parent=0
    _
  %s6 = ssub.s32 1, %s4
  %s7 = scalar_select 0, %s6, %s4
  loop: start=0, step=1, limit=4
  $region2: #{expansion_forward.2} parent=0 // loop_pre_header
    _
  $region3: #{expansion_forward.2} parent=0 // loop_header
    %s9 = sphi 0, %s13
    %p10 = scmp.ge.s32.totalorder %s9, 4
    %s19 = sphi 0, %s21
    %s22 = sphi 0, %s19
    %s23 = sphi 0, %s22
    %s39 = sphi 0, %s23
    %s43 = sphi 0, %s43
    %s45 = sphi 0, %s43
    %s46 = sphi 0, %s45
    %s60 = sphi 0, %s46
    %s64 = sphi 0, %s64
    %s66 = sphi 0, %s64
    %s67 = sphi 0, %s66
    %s81 = sphi 0, %s67
    %s87 = sphi 0, %s89
    %s90 = sphi 0, %s87
    %s91 = sphi 0, %s90
    %s107 = sphi 0, %s91
  $region4: #{expansion_forward.2} parent=0 // loop_header_branch
    %12 = sbr.rel (%p10) target = $region8
  $region5: #{expansion_forward.2} parent=0 // loop_body
    %s14 = ssub.s32 %s9, 1
    %s15 = ssub.s32 %s9, 2
    %s16 = sadd.s32 %s9, 1
    %s17 = ssub.s32 %s9, %s16
    %p18 = scmp.eq.s32.totalorder %s17, 0
    %s20 = sadd.s32 %s19, 1
    %s21 = scalar_select %p18, %s19, %s20
    %p24 = pneg %p18
    %p25 = scmp.eq.s32.totalorder %s9, 1
    %p26 = por %p24, %p25
    %p27 = scmp.ne.s32.totalorder %s19, %s22
    %p28 = scmp.eq.s32.totalorder %s9, 0
    %p29 = por %p27, %p28
    %p30 = scmp.ne.s32.totalorder %s19, %s22
    %p31 = scmp.eq.s32.totalorder %s14, 1
    %p32 = por %p30, %p31
    %p33 = scmp.ne.s32.totalorder %s22, %s23
    %p34 = scmp.eq.s32.totalorder %s14, 0
    %p35 = por %p33, %p34
    %p36 = scmp.ne.s32.totalorder %s22, %s23
    %p37 = scmp.eq.s32.totalorder %s15, 1
    %p38 = por %p36, %p37
    %p40 = scmp.ne.s32.totalorder %s23, %s39
    %p41 = scmp.eq.s32.totalorder %s15, 0
    %p42 = por %p40, %p41
    %s44 = sadd.s32 %s43, 1
    %p47 = scmp.eq.s32.totalorder %s9, 1
    %p48 = scmp.ne.s32.totalorder %s43, %s45
    %p49 = scmp.eq.s32.totalorder %s9, 0
    %p50 = por %p48, %p49
    %p51 = scmp.ne.s32.totalorder %s43, %s45
    %p52 = scmp.eq.s32.totalorder %s14, 1
    %p53 = por %p51, %p52
    %p54 = scmp.ne.s32.totalorder %s45, %s46
    %p55 = scmp.eq.s32.totalorder %s14, 0
    %p56 = por %p54, %p55
    %p57 = scmp.ne.s32.totalorder %s45, %s46
    %p58 = scmp.eq.s32.totalorder %s15, 1
    %p59 = por %p57, %p58
    %p61 = scmp.ne.s32.totalorder %s46, %s60
    %p62 = scmp.eq.s32.totalorder %s15, 0
    %p63 = por %p61, %p62
    %s65 = sadd.s32 %s64, 1
    %p68 = scmp.eq.s32.totalorder %s9, 1
    %p69 = scmp.ne.s32.totalorder %s64, %s66
    %p70 = scmp.eq.s32.totalorder %s9, 0
    %p71 = por %p69, %p70
    %p72 = scmp.ne.s32.totalorder %s64, %s66
    %p73 = scmp.eq.s32.totalorder %s14, 1
    %p74 = por %p72, %p73
    %p75 = scmp.ne.s32.totalorder %s66, %s67
    %p76 = scmp.eq.s32.totalorder %s14, 0
    %p77 = por %p75, %p76
    %p78 = scmp.ne.s32.totalorder %s66, %s67
    %p79 = scmp.eq.s32.totalorder %s15, 1
    %p80 = por %p78, %p79
    %p82 = scmp.ne.s32.totalorder %s67, %s81
    %p83 = scmp.eq.s32.totalorder %s15, 0
    %p84 = por %p82, %p83
    %s85 = ssub.s32 %s9, %s16
    %p86 = scmp.eq.s32.totalorder %s85, 0
    %s88 = sadd.s32 %s87, 1
    %s89 = scalar_select %p86, %s87, %s88
    %p92 = pneg %p86
    %p93 = scmp.eq.s32.totalorder %s9, 1
    %p94 = por %p92, %p93
    %p95 = scmp.ne.s32.totalorder %s87, %s90
    %p96 = scmp.eq.s32.totalorder %s9, 0
    %p97 = por %p95, %p96
    %p98 = scmp.ne.s32.totalorder %s87, %s90
    %p99 = scmp.eq.s32.totalorder %s14, 1
    %p100 = por %p98, %p99
    %p101 = scmp.ne.s32.totalorder %s90, %s91
    %p102 = scmp.eq.s32.totalorder %s14, 0
    %p103 = por %p101, %p102
    %p104 = scmp.ne.s32.totalorder %s90, %s91
    %p105 = scmp.eq.s32.totalorder %s15, 1
    %p106 = por %p104, %p105
    %p108 = scmp.ne.s32.totalorder %s91, %s107
    %p109 = scmp.eq.s32.totalorder %s15, 0
    %p110 = por %p108, %p109
    %p111 = scmp.le.s32.totalorder 1, %s9
    %p112 = scmp.lt.s32.totalorder %s9, 3
    %p113 = pnand %p111, %p112
    %p114 = pneg %p113
    // Predicated region
    $region9: #{expansion_forward.2} parent=5 // pred_check
      _
    $region10: #{expansion_forward.2} parent=5 // pred_check_branch
      %116 = sbr.rel (%p113) target = $region12
    $region11: #{expansion_forward.2} parent=5 // pred_region
      %s117 = ssub.s32 %s9, 1
      // Predicated region
      $region13: #{expansion_forward.2} parent=11 // pred_check
        %p118 = pneg %p56
      $region14: #{expansion_forward.2} parent=11 // pred_check_branch
        %120 = sbr.rel (%p118) target = $region16
      $region15: #{expansion_forward.2} parent=11 // pred_region
        _
      $region16: #{expansion_forward.2} parent=11 // pred_fallthru
        _
      // Predicated region
      $region17: #{expansion_forward.2} parent=11 // pred_check
        %p121 = pneg %p77
      $region18: #{expansion_forward.2} parent=11 // pred_check_branch
        %123 = sbr.rel (%p121) target = $region20
      $region19: #{expansion_forward.2} parent=11 // pred_region
        _
      $region20: #{expansion_forward.2} parent=11 // pred_fallthru
        _
    $region12: #{expansion_forward.2} parent=5 // pred_fallthru
      _
    %p124 = scmp.lt.s32.totalorder %s9, 2
    // Predicated region
    $region21: #{expansion_forward.2} parent=5 // pred_check
      %p125 = pneg %p124
    $region22: #{expansion_forward.2} parent=5 // pred_check_branch
      %127 = sbr.rel (%p125) target = $region24
    $region23: #{expansion_forward.2} parent=5 // pred_region
      // Predicated region
      $region25: #{expansion_forward.2} parent=23 // pred_check
        %p128 = pneg %p29
      $region26: #{expansion_forward.2} parent=23 // pred_check_branch
        %130 = sbr.rel (%p128) target = $region28
      $region27: #{expansion_forward.2} parent=23 // pred_region
        %p131 = scmp.lt.s32.totalorder %s9, 1
        %s132 = scalar_select %p131, %s9, 1
        %s133 = smul.addr %s132, 8
        %s134 = smul.addr %s133, 4
        %s135 = scalar_lea.vmem %s0, %s134
      $region28: #{expansion_forward.2} parent=23 // pred_fallthru
        _
    $region24: #{expansion_forward.2} parent=5 // pred_fallthru
      _
    %p136 = scmp.le.s32.totalorder 1, %s9
    %p137 = scmp.lt.s32.totalorder %s9, 3
    %p138 = pnand %p136, %p137
    %p139 = pneg %p138
    // Predicated region
    $region29: #{expansion_forward.2} parent=5 // pred_check
      _
    $region30: #{expansion_forward.2} parent=5 // pred_check_branch
      %141 = sbr.rel (%p138) target = $region32
    $region31: #{expansion_forward.2} parent=5 // pred_region
      %s142 = ssub.s32 %s9, 1
      %p143 = scmp.lt.s32.totalorder %s14, 1
      %s144 = scalar_select %p143, %s14, 1
      %s145 = smul.addr %s144, 8
      %s146 = smul.addr %s145, 4
      %s147 = scalar_lea.vmem %s0, %s146
      %p148 = pneg %p35
      %p149 = pneg %p32
      %p150 = pneg %p56
      %p151 = pneg %p53
      %p152 = pneg %p77
      %p153 = pneg %p74
      %p154 = pneg %p103
      %p155 = pneg %p100
      %p156 = scmp.lt.s32.totalorder %s14, 1
      %s157 = scalar_select %p156, %s14, 1
      %s158 = smul.addr %s157, 8
      %s159 = smul.addr %s158, 4
      %s160 = scalar_lea.vmem %s3, %s159
      %p161 = scmp.lt.s32.totalorder %s14, 1
      %s162 = scalar_select %p161, %s14, 1
      %s163 = smul.addr %s162, 8
      %s164 = smul.addr %s163, 4
      %s165 = scalar_lea.vmem %s0, %s164
      %p166 = scmp.lt.s32.totalorder %s14, 1
      %s167 = scalar_select %p166, %s14, 1
      %s168 = smul.addr %s167, 8
      %s169 = smul.addr %s168, 4
      %s170 = scalar_lea.vmem %s3, %s169
      %v172 = vld [vmem:[%s165] sm:$0xf]
      %v173 = vld [vmem:[%s165 + $0x4] sm:$0xf]
      %v174 = vld [vmem:[%s165 + $0x8] sm:$0xf]
      %v175 = vld [vmem:[%s165 + $0xc] sm:$0xf]
      %v176 = vld [vmem:[%s165 + $0x10] sm:$0xf]
      %v177 = vld [vmem:[%s165 + $0x14] sm:$0xf]
      %v178 = vld [vmem:[%s165 + $0x18] sm:$0xf]
      %v179 = vld [vmem:[%s165 + $0x1c] sm:$0xf]
      %v180 = vld [vmem:[%s1] sm:$0xf]
      %v181 = vld [vmem:[%s2] sm:$0x1]
      %v183 = vperm.slane %v181, 0
      %v193 = vunpack.c.l.b16 %v172
      %v194 = vunpack.c.l.b16 %v173
      %v195 = vunpack.c.l.b16 %v174
      %v196 = vunpack.c.l.b16 %v175
      %v197 = vunpack.c.l.b16 %v176
      %v198 = vunpack.c.l.b16 %v177
      %v199 = vunpack.c.l.b16 %v178
      %v200 = vunpack.c.l.b16 %v179
      %v201 = vpack.c.b16 %v194, %v193
      %v202 = vpack.c.b16 %v196, %v195
      %v203 = vpack.c.b16 %v198, %v197
      %v204 = vpack.c.b16 %v200, %v199
      %vm205 = vcmask 64512
      %v207 = vsel %vm205, %v201, 0
      %v210 = vsel %vm205, %v202, 0
      %v213 = vsel %vm205, %v203, 0
      %v216 = vsel %vm205, %v204, 0
      %vm218 = vcmask 1043456
      %v220 = vsel %vm218, %v180, 0
      %222 = vmatpush.bf16.msra.mxu0 0
      %223 = vmatpush.bf16.msra.mxu0 0
      %224 = vmatpush.bf16.msra.mxu0 0
      %225 = vmatpush.bf16.msra.mxu0 0
      %226 = vmatpush.bf16.msra.mxu0 0
      %227 = vmatpush.bf16.msra.mxu0 0
      %228 = vmatpush.bf16.msra.mxu0 0
      %229 = vmatpush.bf16.msra.mxu0 %v220
      %230 = vmatmul.bf16.gmra.mxu0 %v207
      %v231 = vpop.f32.mrf.mxu0
      %v232 = vadd.f32 %v183, %v231
      %v233 = vpop.f32.mrf.mxu0
      %v234 = vadd.f32 %v183, %v233
      %235 = vmatmul.bf16.gmra.mxu0 %v210
      %v236 = vpop.f32.mrf.mxu0
      %v237 = vadd.f32 %v183, %v236
      %v238 = vpop.f32.mrf.mxu0
      %v239 = vadd.f32 %v183, %v238
      %240 = vmatmul.bf16.gmra.mxu0 %v213
      %v241 = vpop.f32.mrf.mxu0
      %v242 = vadd.f32 %v183, %v241
      %v243 = vpop.f32.mrf.mxu0
      %v244 = vadd.f32 %v183, %v243
      %245 = vmatmul.bf16.gmra.mxu0 %v216
      %v246 = vpop.f32.mrf.mxu0
      %v247 = vadd.f32 %v183, %v246
      %v248 = vpop.f32.mrf.mxu0
      %v249 = vadd.f32 %v183, %v248
      %250 = vdwg.mxu0
      %v251 = vpack.c.bf16 %v232, %v232
      %v252 = vpack.c.bf16 %v234, %v234
      %v253 = vpack.c.bf16 %v237, %v237
      %v254 = vpack.c.bf16 %v239, %v239
      %v255 = vpack.c.bf16 %v242, %v242
      %v256 = vpack.c.bf16 %v244, %v244
      %v257 = vpack.c.bf16 %v247, %v247
      %v258 = vpack.c.bf16 %v249, %v249
      %vm259 = vcmask 125952
      %260 = vst.msk [vmem:[%s170] sm:$0xf] %vm259, %v251
      %261 = vst.msk [vmem:[%s170 + $0x4] sm:$0xf] %vm259, %v252
      %262 = vst.msk [vmem:[%s170 + $0x8] sm:$0xf] %vm259, %v253
      %263 = vst.msk [vmem:[%s170 + $0xc] sm:$0xf] %vm259, %v254
      %264 = vst.msk [vmem:[%s170 + $0x10] sm:$0xf] %vm259, %v255
      %265 = vst.msk [vmem:[%s170 + $0x14] sm:$0xf] %vm259, %v256
      %266 = vst.msk [vmem:[%s170 + $0x18] sm:$0xf] %vm259, %v257
      %267 = vst.msk [vmem:[%s170 + $0x1c] sm:$0xf] %vm259, %v258
      %p268 = scmp.lt.s32.totalorder %s14, 1
      %s269 = scalar_select %p268, %s14, 1
      %s270 = smul.addr %s269, 8
      %s271 = smul.addr %s270, 4
      %s272 = scalar_lea.vmem %s3, %s271
      // Predicated region
      $region33: #{expansion_forward.2} parent=31 // pred_check
        %p273 = pneg %p100
      $region34: #{expansion_forward.2} parent=31 // pred_check_branch
        %275 = sbr.rel (%p273) target = $region36
      $region35: #{expansion_forward.2} parent=31 // pred_region
        _
      $region36: #{expansion_forward.2} parent=31 // pred_fallthru
        _
    $region32: #{expansion_forward.2} parent=5 // pred_fallthru
      _
    %p276 = scmp.le.s32.totalorder 2, %s9
    // Predicated region
    $region37: #{expansion_forward.2} parent=5 // pred_check
      %p277 = pneg %p276
    $region38: #{expansion_forward.2} parent=5 // pred_check_branch
      %279 = sbr.rel (%p277) target = $region40
    $region39: #{expansion_forward.2} parent=5 // pred_region
      %s280 = ssub.s32 %s9, 2
      // Predicated region
      $region41: #{expansion_forward.2} parent=39 // pred_check
        %p281 = pneg %p106
      $region42: #{expansion_forward.2} parent=39 // pred_check_branch
        %283 = sbr.rel (%p281) target = $region44
      $region43: #{expansion_forward.2} parent=39 // pred_region
        %p284 = scmp.lt.s32.totalorder %s15, 1
        %s285 = scalar_select %p284, %s15, 1
        %s286 = smul.addr %s285, 8
        %s287 = smul.addr %s286, 4
        %s288 = scalar_lea.vmem %s3, %s287
      $region44: #{expansion_forward.2} parent=39 // pred_fallthru
        _
    $region40: #{expansion_forward.2} parent=5 // pred_fallthru
      _
  $region6: #{expansion_forward.2} parent=0 // loop_footer
    %s13 = sadd.s32 1, %s9
  $region7: #{expansion_forward.2} parent=0 // loop_footer_branch
    %8 = sbr.rel target = $region3
  $region8: #{expansion_forward.2} parent=0 // loop_exit
    _

// kernel: expansion_forward.3
$region0: #{expansion_forward.3}
  #allocation0 [shape = 'u32[]', space=smem, size = 0x4, offset = 0x4, fixed_abs, tag = 'smem constant byte address 0x4 - core index']
  #allocation1 [shape = 'u32[72,128]{1,0:T(1,128)}', space=vmem, size = 0x9000, scoped, tag = 'internal scratch']
  #allocation2 [shape = 'f32[264,4]{1,0:T(8,128)}', space=vmem, size = 0x21000, scoped, tag = 'scratch operand']
  %s0 = inlined_call_operand.vmem [shape: bf16[2,272,4], index: 0, kind: input, shape index: {}]
  %s1 = inlined_call_operand.vmem [shape: bf16[2,272,4], index: 1, kind: input, shape index: {}]
  %s2 = inlined_call_operand.vmem [shape: bf16[9,4,4], index: 2, kind: input, shape index: {}]
  %s3 = inlined_call_operand.vmem [shape: bf16[9,4,4], index: 3, kind: input, shape index: {}]
  %s4 = inlined_call_operand.vmem [shape: f32[1,4], index: 4, kind: input, shape index: {}]
  %s5 = inlined_call_operand.vmem [shape: bf16[9,4,4], index: 5, kind: input, shape index: {}]
  %s6 = inlined_call_operand.vmem [shape: f32[1,4], index: 6, kind: input, shape index: {}]
  %s7 = inlined_call_operand.vmem [shape: f32[2,192,4], index: 7, kind: output, shape index: {}]
  %s8 = sld [smem:[#allocation0]]
  $region61: #{expansion_forward.3} parent=0
    _
  %s10 = ssub.s32 1, %s8
  %s11 = scalar_select 0, %s10, %s8
  loop: start=0, step=1, limit=4
  $region2: #{expansion_forward.3} parent=0 // loop_pre_header
    _
  $region3: #{expansion_forward.3} parent=0 // loop_header
    %s13 = sphi 0, %s17
    %p14 = scmp.ge.s32.totalorder %s13, 4
    %s23 = sphi 0, %s25
    %s26 = sphi 0, %s23
    %s27 = sphi 0, %s26
    %s43 = sphi 0, %s27
    %s49 = sphi 0, %s51
    %s52 = sphi 0, %s49
    %s53 = sphi 0, %s52
    %s69 = sphi 0, %s53
    %s73 = sphi 0, %s73
    %s75 = sphi 0, %s73
    %s76 = sphi 0, %s75
    %s90 = sphi 0, %s76
    %s94 = sphi 0, %s94
    %s96 = sphi 0, %s94
    %s97 = sphi 0, %s96
    %s111 = sphi 0, %s97
    %s115 = sphi 0, %s115
    %s117 = sphi 0, %s115
    %s118 = sphi 0, %s117
    %s132 = sphi 0, %s118
    %s136 = sphi 0, %s136
    %s138 = sphi 0, %s136
    %s139 = sphi 0, %s138
    %s153 = sphi 0, %s139
    %s157 = sphi 0, %s157
    %s159 = sphi 0, %s157
    %s160 = sphi 0, %s159
    %s174 = sphi 0, %s160
    %s180 = sphi 0, %s182
    %s183 = sphi 0, %s180
    %s184 = sphi 0, %s183
    %s200 = sphi 0, %s184
  $region4: #{expansion_forward.3} parent=0 // loop_header_branch
    %16 = sbr.rel (%p14) target = $region8
  $region5: #{expansion_forward.3} parent=0 // loop_body
    %s18 = ssub.s32 %s13, 1
    %s19 = ssub.s32 %s13, 2
    %s20 = sadd.s32 %s13, 1
    %s21 = ssub.s32 %s13, %s20
    %p22 = scmp.eq.s32.totalorder %s21, 0
    %s24 = sadd.s32 %s23, 1
    %s25 = scalar_select %p22, %s23, %s24
    %p28 = pneg %p22
    %p29 = scmp.eq.s32.totalorder %s13, 1
    %p30 = por %p28, %p29
    %p31 = scmp.ne.s32.totalorder %s23, %s26
    %p32 = scmp.eq.s32.totalorder %s13, 0
    %p33 = por %p31, %p32
    %p34 = scmp.ne.s32.totalorder %s23, %s26
    %p35 = scmp.eq.s32.totalorder %s18, 1
    %p36 = por %p34, %p35
    %p37 = scmp.ne.s32.totalorder %s26, %s27
    %p38 = scmp.eq.s32.totalorder %s18, 0
    %p39 = por %p37, %p38
    %p40 = scmp.ne.s32.totalorder %s26, %s27
    %p41 = scmp.eq.s32.totalorder %s19, 1
    %p42 = por %p40, %p41
    %p44 = scmp.ne.s32.totalorder %s27, %s43
    %p45 = scmp.eq.s32.totalorder %s19, 0
    %p46 = por %p44, %p45
    %s47 = ssub.s32 %s13, %s20
    %p48 = scmp.eq.s32.totalorder %s47, 0
    %s50 = sadd.s32 %s49, 1
    %s51 = scalar_select %p48, %s49, %s50
    %p54 = pneg %p48
    %p55 = scmp.eq.s32.totalorder %s13, 1
    %p56 = por %p54, %p55
    %p57 = scmp.ne.s32.totalorder %s49, %s52
    %p58 = scmp.eq.s32.totalorder %s13, 0
    %p59 = por %p57, %p58
    %p60 = scmp.ne.s32.totalorder %s49, %s52
    %p61 = scmp.eq.s32.totalorder %s18, 1
    %p62 = por %p60, %p61
    %p63 = scmp.ne.s32.totalorder %s52, %s53
    %p64 = scmp.eq.s32.totalorder %s18, 0
    %p65 = por %p63, %p64
    %p66 = scmp.ne.s32.totalorder %s52, %s53
    %p67 = scmp.eq.s32.totalorder %s19, 1
    %p68 = por %p66, %p67
    %p70 = scmp.ne.s32.totalorder %s53, %s69
    %p71 = scmp.eq.s32.totalorder %s19, 0
    %p72 = por %p70, %p71
    %s74 = sadd.s32 %s73, 1
    %p77 = scmp.eq.s32.totalorder %s13, 1
    %p78 = scmp.ne.s32.totalorder %s73, %s75
    %p79 = scmp.eq.s32.totalorder %s13, 0
    %p80 = por %p78, %p79
    %p81 = scmp.ne.s32.totalorder %s73, %s75
    %p82 = scmp.eq.s32.totalorder %s18, 1
    %p83 = por %p81, %p82
    %p84 = scmp.ne.s32.totalorder %s75, %s76
    %p85 = scmp.eq.s32.totalorder %s18, 0
    %p86 = por %p84, %p85
    %p87 = scmp.ne.s32.totalorder %s75, %s76
    %p88 = scmp.eq.s32.totalorder %s19, 1
    %p89 = por %p87, %p88
    %p91 = scmp.ne.s32.totalorder %s76, %s90
    %p92 = scmp.eq.s32.totalorder %s19, 0
    %p93 = por %p91, %p92
    %s95 = sadd.s32 %s94, 1
    %p98 = scmp.eq.s32.totalorder %s13, 1
    %p99 = scmp.ne.s32.totalorder %s94, %s96
    %p100 = scmp.eq.s32.totalorder %s13, 0
    %p101 = por %p99, %p100
    %p102 = scmp.ne.s32.totalorder %s94, %s96
    %p103 = scmp.eq.s32.totalorder %s18, 1
    %p104 = por %p102, %p103
    %p105 = scmp.ne.s32.totalorder %s96, %s97
    %p106 = scmp.eq.s32.totalorder %s18, 0
    %p107 = por %p105, %p106
    %p108 = scmp.ne.s32.totalorder %s96, %s97
    %p109 = scmp.eq.s32.totalorder %s19, 1
    %p110 = por %p108, %p109
    %p112 = scmp.ne.s32.totalorder %s97, %s111
    %p113 = scmp.eq.s32.totalorder %s19, 0
    %p114 = por %p112, %p113
    %s116 = sadd.s32 %s115, 1
    %p119 = scmp.eq.s32.totalorder %s13, 1
    %p120 = scmp.ne.s32.totalorder %s115, %s117
    %p121 = scmp.eq.s32.totalorder %s13, 0
    %p122 = por %p120, %p121
    %p123 = scmp.ne.s32.totalorder %s115, %s117
    %p124 = scmp.eq.s32.totalorder %s18, 1
    %p125 = por %p123, %p124
    %p126 = scmp.ne.s32.totalorder %s117, %s118
    %p127 = scmp.eq.s32.totalorder %s18, 0
    %p128 = por %p126, %p127
    %p129 = scmp.ne.s32.totalorder %s117, %s118
    %p130 = scmp.eq.s32.totalorder %s19, 1
    %p131 = por %p129, %p130
    %p133 = scmp.ne.s32.totalorder %s118, %s132
    %p134 = scmp.eq.s32.totalorder %s19, 0
    %p135 = por %p133, %p134
    %s137 = sadd.s32 %s136, 1
    %p140 = scmp.eq.s32.totalorder %s13, 1
    %p141 = scmp.ne.s32.totalorder %s136, %s138
    %p142 = scmp.eq.s32.totalorder %s13, 0
    %p143 = por %p141, %p142
    %p144 = scmp.ne.s32.totalorder %s136, %s138
    %p145 = scmp.eq.s32.totalorder %s18, 1
    %p146 = por %p144, %p145
    %p147 = scmp.ne.s32.totalorder %s138, %s139
    %p148 = scmp.eq.s32.totalorder %s18, 0
    %p149 = por %p147, %p148
    %p150 = scmp.ne.s32.totalorder %s138, %s139
    %p151 = scmp.eq.s32.totalorder %s19, 1
    %p152 = por %p150, %p151
    %p154 = scmp.ne.s32.totalorder %s139, %s153
    %p155 = scmp.eq.s32.totalorder %s19, 0
    %p156 = por %p154, %p155
    %s158 = sadd.s32 %s157, 1
    %p161 = scmp.eq.s32.totalorder %s13, 1
    %p162 = scmp.ne.s32.totalorder %s157, %s159
    %p163 = scmp.eq.s32.totalorder %s13, 0
    %p164 = por %p162, %p163
    %p165 = scmp.ne.s32.totalorder %s157, %s159
    %p166 = scmp.eq.s32.totalorder %s18, 1
    %p167 = por %p165, %p166
    %p168 = scmp.ne.s32.totalorder %s159, %s160
    %p169 = scmp.eq.s32.totalorder %s18, 0
    %p170 = por %p168, %p169
    %p171 = scmp.ne.s32.totalorder %s159, %s160
    %p172 = scmp.eq.s32.totalorder %s19, 1
    %p173 = por %p171, %p172
    %p175 = scmp.ne.s32.totalorder %s160, %s174
    %p176 = scmp.eq.s32.totalorder %s19, 0
    %p177 = por %p175, %p176
    %s178 = ssub.s32 %s13, %s20
    %p179 = scmp.eq.s32.totalorder %s178, 0
    %s181 = sadd.s32 %s180, 1
    %s182 = scalar_select %p179, %s180, %s181
    %p185 = pneg %p179
    %p186 = scmp.eq.s32.totalorder %s13, 1
    %p187 = por %p185, %p186
    %p188 = scmp.ne.s32.totalorder %s180, %s183
    %p189 = scmp.eq.s32.totalorder %s13, 0
    %p190 = por %p188, %p189
    %p191 = scmp.ne.s32.totalorder %s180, %s183
    %p192 = scmp.eq.s32.totalorder %s18, 1
    %p193 = por %p191, %p192
    %p194 = scmp.ne.s32.totalorder %s183, %s184
    %p195 = scmp.eq.s32.totalorder %s18, 0
    %p196 = por %p194, %p195
    %p197 = scmp.ne.s32.totalorder %s183, %s184
    %p198 = scmp.eq.s32.totalorder %s19, 1
    %p199 = por %p197, %p198
    %p201 = scmp.ne.s32.totalorder %s184, %s200
    %p202 = scmp.eq.s32.totalorder %s19, 0
    %p203 = por %p201, %p202
    %p204 = scmp.le.s32.totalorder 1, %s13
    %p205 = scmp.lt.s32.totalorder %s13, 3
    %p206 = pnand %p204, %p205
    %p207 = pneg %p206
    // Predicated region
    $region9: #{expansion_forward.3} parent=5 // pred_check
      _
    $region10: #{expansion_forward.3} parent=5 // pred_check_branch
      %209 = sbr.rel (%p206) target = $region12
    $region11: #{expansion_forward.3} parent=5 // pred_region
      %s210 = ssub.s32 %s13, 1
      // Predicated region
      $region13: #{expansion_forward.3} parent=11 // pred_check
        %p211 = pneg %p86
      $region14: #{expansion_forward.3} parent=11 // pred_check_branch
        %213 = sbr.rel (%p211) target = $region16
      $region15: #{expansion_forward.3} parent=11 // pred_region
        _
      $region16: #{expansion_forward.3} parent=11 // pred_fallthru
        _
      // Predicated region
      $region17: #{expansion_forward.3} parent=11 // pred_check
        %p214 = pneg %p107
      $region18: #{expansion_forward.3} parent=11 // pred_check_branch
        %216 = sbr.rel (%p214) target = $region20
      $region19: #{expansion_forward.3} parent=11 // pred_region
        _
      $region20: #{expansion_forward.3} parent=11 // pred_fallthru
        _
      // Predicated region
      $region21: #{expansion_forward.3} parent=11 // pred_check
        %p217 = pneg %p128
      $region22: #{expansion_forward.3} parent=11 // pred_check_branch
        %219 = sbr.rel (%p217) target = $region24
      $region23: #{expansion_forward.3} parent=11 // pred_region
        _
      $region24: #{expansion_forward.3} parent=11 // pred_fallthru
        _
      // Predicated region
      $region25: #{expansion_forward.3} parent=11 // pred_check
        %p220 = pneg %p149
      $region26: #{expansion_forward.3} parent=11 // pred_check_branch
        %222 = sbr.rel (%p220) target = $region28
      $region27: #{expansion_forward.3} parent=11 // pred_region
        _
      $region28: #{expansion_forward.3} parent=11 // pred_fallthru
        _
      // Predicated region
      $region29: #{expansion_forward.3} parent=11 // pred_check
        %p223 = pneg %p170
      $region30: #{expansion_forward.3} parent=11 // pred_check_branch
        %225 = sbr.rel (%p223) target = $region32
      $region31: #{expansion_forward.3} parent=11 // pred_region
        _
      $region32: #{expansion_forward.3} parent=11 // pred_fallthru
        _
    $region12: #{expansion_forward.3} parent=5 // pred_fallthru
      _
    %p226 = scmp.lt.s32.totalorder %s13, 2
    // Predicated region
    $region33: #{expansion_forward.3} parent=5 // pred_check
      %p227 = pneg %p226
    $region34: #{expansion_forward.3} parent=5 // pred_check_branch
      %229 = sbr.rel (%p227) target = $region36
    $region35: #{expansion_forward.3} parent=5 // pred_region
      // Predicated region
      $region37: #{expansion_forward.3} parent=35 // pred_check
        %p230 = pneg %p33
      $region38: #{expansion_forward.3} parent=35 // pred_check_branch
        %232 = sbr.rel (%p230) target = $region40
      $region39: #{expansion_forward.3} parent=35 // pred_region
        %p233 = scmp.lt.s32.totalorder %s13, 1
        %s234 = scalar_select %p233, %s13, 1
        %s235 = smul.addr %s234, 34
        %s236 = smul.addr %s235, 4
        %s237 = scalar_lea.vmem %s0, %s236
      $region40: #{expansion_forward.3} parent=35 // pred_fallthru
        _
      // Predicated region
      $region41: #{expansion_forward.3} parent=35 // pred_check
        %p238 = pneg %p59
      $region42: #{expansion_forward.3} parent=35 // pred_check_branch
        %240 = sbr.rel (%p238) target = $region44
      $region43: #{expansion_forward.3} parent=35 // pred_region
        %p241 = scmp.lt.s32.totalorder %s13, 1
        %s242 = scalar_select %p241, %s13, 1
        %s243 = smul.addr %s242, 34
        %s244 = smul.addr %s243, 4
        %s245 = scalar_lea.vmem %s1, %s244
      $region44: #{expansion_forward.3} parent=35 // pred_fallthru
        _
    $region36: #{expansion_forward.3} parent=5 // pred_fallthru
      _
    %p246 = scmp.le.s32.totalorder 1, %s13
    %p247 = scmp.lt.s32.totalorder %s13, 3
    %p248 = pnand %p246, %p247
    %p249 = pneg %p248
    // Predicated region
    $region45: #{expansion_forward.3} parent=5 // pred_check
      _
    $region46: #{expansion_forward.3} parent=5 // pred_check_branch
      %251 = sbr.rel (%p248) target = $region48
    $region47: #{expansion_forward.3} parent=5 // pred_region
      %s252 = ssub.s32 %s13, 1
      %p253 = scmp.lt.s32.totalorder %s18, 1
      %s254 = scalar_select %p253, %s18, 1
      %s255 = smul.addr %s254, 34
      %s256 = smul.addr %s255, 4
      %s257 = scalar_lea.vmem %s0, %s256
      %p258 = pneg %p39
      %p259 = pneg %p36
      %p260 = scmp.lt.s32.totalorder %s18, 1
      %s261 = scalar_select %p260, %s18, 1
      %s262 = smul.addr %s261, 34
      %s263 = smul.addr %s262, 4
      %s264 = scalar_lea.vmem %s1, %s263
      %p265 = pneg %p65
      %p266 = pneg %p62
      %p267 = pneg %p86
      %p268 = pneg %p83
      %p269 = pneg %p107
      %p270 = pneg %p104
      %p271 = pneg %p128
      %p272 = pneg %p125
      %p273 = pneg %p149
      %p274 = pneg %p146
      %p275 = pneg %p170
      %p276 = pneg %p167
      %p277 = pneg %p196
      %p278 = pneg %p193
      %p279 = scmp.lt.s32.totalorder %s18, 1
      %s280 = scalar_select %p279, %s18, 1
      %s281 = smul.addr %s280, 24
      %s282 = smul.addr %s281, 8
      %s283 = scalar_lea.vmem %s7, %s282
      %p284 = scmp.lt.s32.totalorder %s18, 1
      %s285 = scalar_select %p284, %s18, 1
      %s286 = smul.addr %s285, 34
      %s287 = smul.addr %s286, 4
      %s288 = scalar_lea.vmem %s0, %s287
      %p289 = scmp.lt.s32.totalorder %s18, 1
      %s290 = scalar_select %p289, %s18, 1
      %s291 = smul.addr %s290, 34
      %s292 = smul.addr %s291, 4
      %s293 = scalar_lea.vmem %s1, %s292
      %p294 = scmp.lt.s32.totalorder %s18, 1
      %s295 = scalar_select %p294, %s18, 1
      %s296 = smul.addr %s295, 24
      %s297 = smul.addr %s296, 8
      %s298 = scalar_lea.vmem %s7, %s297
      %v300 = vld [vmem:[%s288] sm:$0xf]
      %v301 = vld [vmem:[%s288 + $0x4] sm:$0xf]
      %v302 = vld [vmem:[%s288 + $0x8] sm:$0xf]
      %v303 = vld [vmem:[%s288 + $0xc] sm:$0xf]
      %v304 = vld [vmem:[%s288 + $0x10] sm:$0xf]
      %v305 = vld [vmem:[%s288 + $0x14] sm:$0xf]
      %v306 = vld [vmem:[%s288 + $0x18] sm:$0xf]
      %v307 = vld [vmem:[%s288 + $0x1c] sm:$0xf]
      %v308 = vld [vmem:[%s288 + $0x20] sm:$0xf]
      %v309 = vld [vmem:[%s288 + $0x24] sm:$0xf]
      %v310 = vld [vmem:[%s288 + $0x28] sm:$0xf]
      %v311 = vld [vmem:[%s288 + $0x2c] sm:$0xf]
      %v312 = vld [vmem:[%s288 + $0x30] sm:$0xf]
      %v313 = vld [vmem:[%s288 + $0x34] sm:$0xf]
      %v314 = vld [vmem:[%s288 + $0x38] sm:$0xf]
      %v315 = vld [vmem:[%s288 + $0x3c] sm:$0xf]
      %v316 = vld [vmem:[%s288 + $0x40] sm:$0xf]
      %v317 = vld [vmem:[%s288 + $0x44] sm:$0xf]
      %v318 = vld [vmem:[%s288 + $0x48] sm:$0xf]
      %v319 = vld [vmem:[%s288 + $0x4c] sm:$0xf]
      %v320 = vld [vmem:[%s288 + $0x50] sm:$0xf]
      %v321 = vld [vmem:[%s288 + $0x54] sm:$0xf]
      %v322 = vld [vmem:[%s288 + $0x58] sm:$0xf]
      %v323 = vld [vmem:[%s288 + $0x5c] sm:$0xf]
      %v324 = vld [vmem:[%s288 + $0x60] sm:$0xf]
      %v325 = vld [vmem:[%s288 + $0x64] sm:$0xf]
      %v326 = vld [vmem:[%s288 + $0x68] sm:$0xf]
      %v327 = vld [vmem:[%s288 + $0x6c] sm:$0xf]
      %v328 = vld [vmem:[%s288 + $0x70] sm:$0xf]
      %v329 = vld [vmem:[%s288 + $0x74] sm:$0xf]
      %v330 = vld [vmem:[%s288 + $0x78] sm:$0xf]
      %v331 = vld [vmem:[%s288 + $0x7c] sm:$0xf]
      %v332 = vld [vmem:[%s288 + $0x80] sm:$0xf]
      %v333 = vunpack.c.l.bf16 %v300
      %v334 = vunpack.c.l.bf16 %v301
      %v335 = vunpack.c.l.bf16 %v302
      %v336 = vunpack.c.l.bf16 %v303
      %v337 = vunpack.c.l.bf16 %v304
      %v338 = vunpack.c.l.bf16 %v305
      %v339 = vunpack.c.l.bf16 %v306
      %v340 = vunpack.c.l.bf16 %v307
      %v341 = vunpack.c.l.bf16 %v308
      %v342 = vunpack.c.l.bf16 %v309
      %v343 = vunpack.c.l.bf16 %v310
      %v344 = vunpack.c.l.bf16 %v311
      %v345 = vunpack.c.l.bf16 %v312
      %v346 = vunpack.c.l.bf16 %v313
      %v347 = vunpack.c.l.bf16 %v314
      %v348 = vunpack.c.l.bf16 %v315
      %v349 = vunpack.c.l.bf16 %v316
      %v350 = vunpack.c.l.bf16 %v317
      %v351 = vunpack.c.l.bf16 %v318
      %v352 = vunpack.c.l.bf16 %v319
      %v353 = vunpack.c.l.bf16 %v320
      %v354 = vunpack.c.l.bf16 %v321
      %v355 = vunpack.c.l.bf16 %v322
      %v356 = vunpack.c.l.bf16 %v323
      %v357 = vunpack.c.l.bf16 %v324
      %v358 = vunpack.c.l.bf16 %v325
      %v359 = vunpack.c.l.bf16 %v326
      %v360 = vunpack.c.l.bf16 %v327
      %v361 = vunpack.c.l.bf16 %v328
      %v362 = vunpack.c.l.bf16 %v329
      %v363 = vunpack.c.l.bf16 %v330
      %v364 = vunpack.c.l.bf16 %v331
      %v365 = vunpack.c.l.bf16 %v332
      %v366 = vld [vmem:[%s293] sm:$0xf]
      %v367 = vld [vmem:[%s293 + $0x4] sm:$0xf]
      %v368 = vld [vmem:[%s293 + $0x8] sm:$0xf]
      %v369 = vld [vmem:[%s293 + $0xc] sm:$0xf]
      %v370 = vld [vmem:[%s293 + $0x10] sm:$0xf]
      %v371 = vld [vmem:[%s293 + $0x14] sm:$0xf]
      %v372 = vld [vmem:[%s293 + $0x18] sm:$0xf]
      %v373 = vld [vmem:[%s293 + $0x1c] sm:$0xf]
      %v374 = vld [vmem:[%s293 + $0x20] sm:$0xf]
      %v375 = vld [vmem:[%s293 + $0x24] sm:$0xf]
      %v376 = vld [vmem:[%s293 + $0x28] sm:$0xf]
      %v377 = vld [vmem:[%s293 + $0x2c] sm:$0xf]
      %v378 = vld [vmem:[%s293 + $0x30] sm:$0xf]
      %v379 = vld [vmem:[%s293 + $0x34] sm:$0xf]
      %v380 = vld [vmem:[%s293 + $0x38] sm:$0xf]
      %v381 = vld [vmem:[%s293 + $0x3c] sm:$0xf]
      %v382 = vld [vmem:[%s293 + $0x40] sm:$0xf]
      %v383 = vld [vmem:[%s293 + $0x44] sm:$0xf]
      %v384 = vld [vmem:[%s293 + $0x48] sm:$0xf]
      %v385 = vld [vmem:[%s293 + $0x4c] sm:$0xf]
      %v386 = vld [vmem:[%s293 + $0x50] sm:$0xf]
      %v387 = vld [vmem:[%s293 + $0x54] sm:$0xf]
      %v388 = vld [vmem:[%s293 + $0x58] sm:$0xf]
      %v389 = vld [vmem:[%s293 + $0x5c] sm:$0xf]
      %v390 = vld [vmem:[%s293 + $0x60] sm:$0xf]
      %v391 = vld [vmem:[%s293 + $0x64] sm:$0xf]
      %v392 = vld [vmem:[%s293 + $0x68] sm:$0xf]
      %v393 = vld [vmem:[%s293 + $0x6c] sm:$0xf]
      %v394 = vld [vmem:[%s293 + $0x70] sm:$0xf]
      %v395 = vld [vmem:[%s293 + $0x74] sm:$0xf]
      %v396 = vld [vmem:[%s293 + $0x78] sm:$0xf]
      %v397 = vld [vmem:[%s293 + $0x7c] sm:$0xf]
      %v398 = vld [vmem:[%s293 + $0x80] sm:$0xf]
      %v399 = vunpack.c.l.bf16 %v366
      %v400 = vunpack.c.l.bf16 %v367
      %v401 = vunpack.c.l.bf16 %v368
      %v402 = vunpack.c.l.bf16 %v369
      %v403 = vunpack.c.l.bf16 %v370
      %v404 = vunpack.c.l.bf16 %v371
      %v405 = vunpack.c.l.bf16 %v372
      %v406 = vunpack.c.l.bf16 %v373
      %v407 = vunpack.c.l.bf16 %v374
      %v408 = vunpack.c.l.bf16 %v375
      %v409 = vunpack.c.l.bf16 %v376
      %v410 = vunpack.c.l.bf16 %v377
      %v411 = vunpack.c.l.bf16 %v378
      %v412 = vunpack.c.l.bf16 %v379
      %v413 = vunpack.c.l.bf16 %v380
      %v414 = vunpack.c.l.bf16 %v381
      %v415 = vunpack.c.l.bf16 %v382
      %v416 = vunpack.c.l.bf16 %v383
      %v417 = vunpack.c.l.bf16 %v384
      %v418 = vunpack.c.l.bf16 %v385
      %v419 = vunpack.c.l.bf16 %v386
      %v420 = vunpack.c.l.bf16 %v387
      %v421 = vunpack.c.l.bf16 %v388
      %v422 = vunpack.c.l.bf16 %v389
      %v423 = vunpack.c.l.bf16 %v390
      %v424 = vunpack.c.l.bf16 %v391
      %v425 = vunpack.c.l.bf16 %v392
      %v426 = vunpack.c.l.bf16 %v393
      %v427 = vunpack.c.l.bf16 %v394
      %v428 = vunpack.c.l.bf16 %v395
      %v429 = vunpack.c.l.bf16 %v396
      %v430 = vunpack.c.l.bf16 %v397
      %v431 = vunpack.c.l.bf16 %v398
      %v432 = vpack.c.bf16 %v334, %v333
      %v433 = vpack.c.bf16 %v336, %v335
      %v434 = vpack.c.bf16 %v338, %v337
      %v435 = vpack.c.bf16 %v340, %v339
      %v436 = vpack.c.bf16 %v342, %v341
      %v437 = vpack.c.bf16 %v344, %v343
      %v438 = vpack.c.bf16 %v346, %v345
      %v439 = vpack.c.bf16 %v348, %v347
      %v440 = vpack.c.bf16 %v350, %v349
      %v441 = vpack.c.bf16 %v352, %v351
      %v442 = vpack.c.bf16 %v354, %v353
      %v443 = vpack.c.bf16 %v356, %v355
      %v444 = vpack.c.bf16 %v358, %v357
      %v445 = vpack.c.bf16 %v360, %v359
      %v446 = vpack.c.bf16 %v400, %v399
      %v447 = vpack.c.bf16 %v402, %v401
      %v448 = vpack.c.bf16 %v404, %v403
      %v449 = vpack.c.bf16 %v406, %v405
      %v450 = vpack.c.bf16 %v408, %v407
      %v451 = vpack.c.bf16 %v410, %v409
      %v452 = vpack.c.bf16 %v412, %v411
      %v453 = vpack.c.bf16 %v414, %v413
      %v454 = vpack.c.bf16 %v416, %v415
      %v455 = vpack.c.bf16 %v418, %v417
      %v456 = vpack.c.bf16 %v420, %v419
      %v457 = vpack.c.bf16 %v422, %v421
      %v458 = vpack.c.bf16 %v424, %v423
      %v459 = vpack.c.bf16 %v426, %v425
      %v460 = vld [vmem:[%s2] sm:$0x3]
      %v461 = vld [vmem:[%s3] sm:$0x3]
      %vm462 = vcmask 31744
      %v464 = vsel %vm462, %v446, 0
      %v467 = vsel %vm462, %v447, 0
      %v470 = vsel %vm462, %v448, 0
      %v473 = vsel %vm462, %v449, 0
      %v476 = vsel %vm462, %v450, 0
      %v479 = vsel %vm462, %v451, 0
      %v482 = vsel %vm462, %v452, 0
      %v485 = vsel %vm462, %v453, 0
      %v488 = vsel %vm462, %v454, 0
      %v491 = vsel %vm462, %v455, 0
      %v494 = vsel %vm462, %v456, 0
      %v497 = vsel %vm462, %v457, 0
      %v500 = vsel %vm462, %v458, 0
      %v503 = vsel %vm462, %v459, 0
      %vm505 = vcmask 1041408
      %v507 = vsel %vm505, %v461, 0
      %509 = vmatpush.bf16.msra.mxu0 0
      %510 = vmatpush.bf16.msra.mxu0 0
      %511 = vmatpush.bf16.msra.mxu0 0
      %512 = vmatpush.bf16.msra.mxu0 0
      %513 = vmatpush.bf16.msra.mxu0 0
      %514 = vmatpush.bf16.msra.mxu0 0
      %515 = vmatpush.bf16.msra.mxu0 0
      %516 = vmatpush.bf16.msra.mxu0 %v507
      %517 = vmatmul.bf16.gmra.mxu0 %v464
      %v518 = vpop.f32.mrf.mxu0
      %v519 = vadd.f32 0.0, %v518
      %v520 = vpop.f32.mrf.mxu0
      %v521 = vadd.f32 0.0, %v520
      %522 = vmatmul.bf16.gmra.mxu0 %v467
      %v523 = vpop.f32.mrf.mxu0
      %v524 = vadd.f32 0.0, %v523
      %v525 = vpop.f32.mrf.mxu0
      %v526 = vadd.f32 0.0, %v525
      %527 = vmatmul.bf16.gmra.mxu0 %v470
      %v528 = vpop.f32.mrf.mxu0
      %v529 = vadd.f32 0.0, %v528
      %v530 = vpop.f32.mrf.mxu0
      %v531 = vadd.f32 0.0, %v530
      %532 = vmatmul.bf16.gmra.mxu0 %v473
      %v533 = vpop.f32.mrf.mxu0
      %v534 = vadd.f32 0.0, %v533
      %v535 = vpop.f32.mrf.mxu0
      %v536 = vadd.f32 0.0, %v535
      %537 = vmatmul.bf16.gmra.mxu0 %v476
      %v538 = vpop.f32.mrf.mxu0
      %v539 = vadd.f32 0.0, %v538
      %v540 = vpop.f32.mrf.mxu0
      %v541 = vadd.f32 0.0, %v540
      %542 = vmatmul.bf16.gmra.mxu0 %v479
      %v543 = vpop.f32.mrf.mxu0
      %v544 = vadd.f32 0.0, %v543
      %v545 = vpop.f32.mrf.mxu0
      %v546 = vadd.f32 0.0, %v545
      %547 = vmatmul.bf16.gmra.mxu0 %v482
      %v548 = vpop.f32.mrf.mxu0
      %v549 = vadd.f32 0.0, %v548
      %v550 = vpop.f32.mrf.mxu0
      %v551 = vadd.f32 0.0, %v550
      %552 = vmatmul.bf16.gmra.mxu0 %v485
      %v553 = vpop.f32.mrf.mxu0
      %v554 = vadd.f32 0.0, %v553
      %v555 = vpop.f32.mrf.mxu0
      %v556 = vadd.f32 0.0, %v555
      %557 = vmatmul.bf16.gmra.mxu0 %v488
      %v558 = vpop.f32.mrf.mxu0
      %v559 = vadd.f32 0.0, %v558
      %v560 = vpop.f32.mrf.mxu0
      %v561 = vadd.f32 0.0, %v560
      %562 = vmatmul.bf16.gmra.mxu0 %v491
      %v563 = vpop.f32.mrf.mxu0
      %v564 = vadd.f32 0.0, %v563
      %v565 = vpop.f32.mrf.mxu0
      %v566 = vadd.f32 0.0, %v565
      %567 = vmatmul.bf16.gmra.mxu0 %v494
      %v568 = vpop.f32.mrf.mxu0
      %v569 = vadd.f32 0.0, %v568
      %v570 = vpop.f32.mrf.mxu0
      %v571 = vadd.f32 0.0, %v570
      %572 = vmatmul.bf16.gmra.mxu0 %v497
      %v573 = vpop.f32.mrf.mxu0
      %v574 = vadd.f32 0.0, %v573
      %v575 = vpop.f32.mrf.mxu0
      %v576 = vadd.f32 0.0, %v575
      %577 = vmatmul.bf16.gmra.mxu0 %v500
      %v578 = vpop.f32.mrf.mxu0
      %v579 = vadd.f32 0.0, %v578
      %v580 = vpop.f32.mrf.mxu0
      %v581 = vadd.f32 0.0, %v580
      %582 = vmatmul.bf16.gmra.mxu0 %v503
      %v583 = vpop.f32.mrf.mxu0
      %v584 = vadd.f32 0.0, %v583
      %v585 = vpop.f32.mrf.mxu0
      %v586 = vadd.f32 0.0, %v585
      %587 = vdwg.mxu0
      %v589 = vsel %vm462, %v432, 0
      %v592 = vsel %vm462, %v433, 0
      %v595 = vsel %vm462, %v434, 0
      %v598 = vsel %vm462, %v435, 0
      %v601 = vsel %vm462, %v436, 0
      %v604 = vsel %vm462, %v437, 0
      %v607 = vsel %vm462, %v438, 0
      %v610 = vsel %vm462, %v439, 0
      %v613 = vsel %vm462, %v440, 0
      %v616 = vsel %vm462, %v441, 0
      %v619 = vsel %vm462, %v442, 0
      %v622 = vsel %vm462, %v443, 0
      %v625 = vsel %vm462, %v444, 0
      %v628 = vsel %vm462, %v445, 0
      %v631 = vsel %vm505, %v460, 0
      %633 = vmatpush.bf16.msra.mxu0 0
      %634 = vmatpush.bf16.msra.mxu0 0
      %635 = vmatpush.bf16.msra.mxu0 0
      %636 = vmatpush.bf16.msra.mxu0 0
      %637 = vmatpush.bf16.msra.mxu0 0
      %638 = vmatpush.bf16.msra.mxu0 0
      %639 = vmatpush.bf16.msra.mxu0 0
      %640 = vmatpush.bf16.msra.mxu0 %v631
      %641 = vmatmul.bf16.gmra.mxu0 %v589
      %v642 = vpop.f32.mrf.mxu0
      %v643 = vadd.f32 %v519, %v642
      %v644 = vpop.f32.mrf.mxu0
      %v645 = vadd.f32 %v521, %v644
      %646 = vmatmul.bf16.gmra.mxu0 %v592
      %v647 = vpop.f32.mrf.mxu0
      %v648 = vadd.f32 %v524, %v647
      %v649 = vpop.f32.mrf.mxu0
      %v650 = vadd.f32 %v526, %v649
      %651 = vmatmul.bf16.gmra.mxu0 %v595
      %v652 = vpop.f32.mrf.mxu0
      %v653 = vadd.f32 %v529, %v652
      %v654 = vpop.f32.mrf.mxu0
      %v655 = vadd.f32 %v531, %v654
      %656 = vmatmul.bf16.gmra.mxu0 %v598
      %v657 = vpop.f32.mrf.mxu0
      %v658 = vadd.f32 %v534, %v657
      %v659 = vpop.f32.mrf.mxu0
      %v660 = vadd.f32 %v536, %v659
      %661 = vmatmul.bf16.gmra.mxu0 %v601
      %v662 = vpop.f32.mrf.mxu0
      %v663 = vadd.f32 %v539, %v662
      %v664 = vpop.f32.mrf.mxu0
      %v665 = vadd.f32 %v541, %v664
      %666 = vmatmul.bf16.gmra.mxu0 %v604
      %v667 = vpop.f32.mrf.mxu0
      %v668 = vadd.f32 %v544, %v667
      %v669 = vpop.f32.mrf.mxu0
      %v670 = vadd.f32 %v546, %v669
      %671 = vmatmul.bf16.gmra.mxu0 %v607
      %v672 = vpop.f32.mrf.mxu0
      %v673 = vadd.f32 %v549, %v672
      %v674 = vpop.f32.mrf.mxu0
      %v675 = vadd.f32 %v551, %v674
      %676 = vmatmul.bf16.gmra.mxu0 %v610
      %v677 = vpop.f32.mrf.mxu0
      %v678 = vadd.f32 %v554, %v677
      %v679 = vpop.f32.mrf.mxu0
      %v680 = vadd.f32 %v556, %v679
      %681 = vmatmul.bf16.gmra.mxu0 %v613
      %v682 = vpop.f32.mrf.mxu0
      %v683 = vadd.f32 %v559, %v682
      %v684 = vpop.f32.mrf.mxu0
      %v685 = vadd.f32 %v561, %v684
      %686 = vmatmul.bf16.gmra.mxu0 %v616
      %v687 = vpop.f32.mrf.mxu0
      %v688 = vadd.f32 %v564, %v687
      %v689 = vpop.f32.mrf.mxu0
      %v690 = vadd.f32 %v566, %v689
      %691 = vmatmul.bf16.gmra.mxu0 %v619
      %v692 = vpop.f32.mrf.mxu0
      %v693 = vadd.f32 %v569, %v692
      %v694 = vpop.f32.mrf.mxu0
      %v695 = vadd.f32 %v571, %v694
      %696 = vmatmul.bf16.gmra.mxu0 %v622
      %v697 = vpop.f32.mrf.mxu0
      %v698 = vadd.f32 %v574, %v697
      %v699 = vpop.f32.mrf.mxu0
      %v700 = vadd.f32 %v576, %v699
      %701 = vmatmul.bf16.gmra.mxu0 %v625
      %v702 = vpop.f32.mrf.mxu0
      %v703 = vadd.f32 %v579, %v702
      %v704 = vpop.f32.mrf.mxu0
      %v705 = vadd.f32 %v581, %v704
      %706 = vmatmul.bf16.gmra.mxu0 %v628
      %v707 = vpop.f32.mrf.mxu0
      %v708 = vadd.f32 %v584, %v707
      %v709 = vpop.f32.mrf.mxu0
      %v710 = vadd.f32 %v586, %v709
      %711 = vdwg.mxu0
      %v712 = vpack.c.bf16 %v361, %v361
      %v713 = vpack.c.bf16 %v427, %v427
      %s714 = scalar_lea.vmem %s2, 2
      %v715 = vld [vmem:[%s714] sm:$0x3]
      %vm716 = vsmask.f32 7424
      %v717 = vshrl.u32 %v432, 16
      %v719 = vshll.u32 %v432, 16
      %v721 = vrot.slane %v719, 1
      %v722 = vor.u32 %v717, %v721
      %v723 = vshll.u32 %v433, 16
      %v725 = vrot.slane %v723, 1
      %v726 = vsel %vm716, %v722, %v725
      %v727 = vshrl.u32 %v433, 16
      %v729 = vor.u32 %v727, %v725
      %v730 = vshll.u32 %v434, 16
      %v732 = vrot.slane %v730, 1
      %v733 = vsel %vm716, %v729, %v732
      %v734 = vshrl.u32 %v434, 16
      %v736 = vor.u32 %v734, %v732
      %v737 = vshll.u32 %v435, 16
      %v739 = vrot.slane %v737, 1
      %v740 = vsel %vm716, %v736, %v739
      %v741 = vshrl.u32 %v435, 16
      %v743 = vor.u32 %v741, %v739
      %v744 = vshll.u32 %v436, 16
      %v746 = vrot.slane %v744, 1
      %v747 = vsel %vm716, %v743, %v746
      %v748 = vshrl.u32 %v436, 16
      %v750 = vor.u32 %v748, %v746
      %v751 = vshll.u32 %v437, 16
      %v753 = vrot.slane %v751, 1
      %v754 = vsel %vm716, %v750, %v753
      %v755 = vshrl.u32 %v437, 16
      %v757 = vor.u32 %v755, %v753
      %v758 = vshll.u32 %v438, 16
      %v760 = vrot.slane %v758, 1
      %v761 = vsel %vm716, %v757, %v760
      %v762 = vshrl.u32 %v438, 16
      %v764 = vor.u32 %v762, %v760
      %v765 = vshll.u32 %v439, 16
      %v767 = vrot.slane %v765, 1
      %v768 = vsel %vm716, %v764, %v767
      %v769 = vshrl.u32 %v439, 16
      %v771 = vor.u32 %v769, %v767
      %v772 = vshll.u32 %v440, 16
      %v774 = vrot.slane %v772, 1
      %v775 = vsel %vm716, %v771, %v774
      %v776 = vshrl.u32 %v440, 16
      %v778 = vor.u32 %v776, %v774
      %v779 = vshll.u32 %v441, 16
      %v781 = vrot.slane %v779, 1
      %v782 = vsel %vm716, %v778, %v781
      %v783 = vshrl.u32 %v441, 16
      %v785 = vor.u32 %v783, %v781
      %v786 = vshll.u32 %v442, 16
      %v788 = vrot.slane %v786, 1
      %v789 = vsel %vm716, %v785, %v788
      %v790 = vshrl.u32 %v442, 16
      %v792 = vor.u32 %v790, %v788
      %v793 = vshll.u32 %v443, 16
      %v795 = vrot.slane %v793, 1
      %v796 = vsel %vm716, %v792, %v795
      %v797 = vshrl.u32 %v443, 16
      %v799 = vor.u32 %v797, %v795
      %v800 = vshll.u32 %v444, 16
      %v802 = vrot.slane %v800, 1
      %v803 = vsel %vm716, %v799, %v802
      %v804 = vshrl.u32 %v444, 16
      %v806 = vor.u32 %v804, %v802
      %v807 = vshll.u32 %v445, 16
      %v809 = vrot.slane %v807, 1
      %v810 = vsel %vm716, %v806, %v809
      %v811 = vshrl.u32 %v445, 16
      %v813 = vor.u32 %v811, %v809
      %v815 = vshll.u32 %v712, 16
      %v817 = vrot.slane %v815, 1
      %v818 = vsel %vm716, %v813, %v817
      %v820 = vsel %vm462, %v726, 0
      %v823 = vsel %vm462, %v733, 0
      %v826 = vsel %vm462, %v740, 0
      %v829 = vsel %vm462, %v747, 0
      %v832 = vsel %vm462, %v754, 0
      %v835 = vsel %vm462, %v761, 0
      %v838 = vsel %vm462, %v768, 0
      %v841 = vsel %vm462, %v775, 0
      %v844 = vsel %vm462, %v782, 0
      %v847 = vsel %vm462, %v789, 0
      %v850 = vsel %vm462, %v796, 0
      %v853 = vsel %vm462, %v803, 0
      %v856 = vsel %vm462, %v810, 0
      %v859 = vsel %vm462, %v818, 0
      %v862 = vsel %vm505, %v715, 0
      %864 = vmatpush.bf16.msra.mxu0 0
      %865 = vmatpush.bf16.msra.mxu0 0
      %866 = vmatpush.bf16.msra.mxu0 0
      %867 = vmatpush.bf16.msra.mxu0 0
      %868 = vmatpush.bf16.msra.mxu0 0
      %869 = vmatpush.bf16.msra.mxu0 0
      %870 = vmatpush.bf16.msra.mxu0 0
      %871 = vmatpush.bf16.msra.mxu0 %v862
      %872 = vmatmul.bf16.gmra.mxu0 %v820
      %v873 = vpop.f32.mrf.mxu0
      %v874 = vadd.f32 0.0, %v873
      %v875 = vpop.f32.mrf.mxu0
      %v876 = vadd.f32 0.0, %v875
      %877 = vmatmul.bf16.gmra.mxu0 %v823
      %v878 = vpop.f32.mrf.mxu0
      %v879 = vadd.f32 0.0, %v878
      %v880 = vpop.f32.mrf.mxu0
      %v881 = vadd.f32 0.0, %v880
      %882 = vmatmul.bf16.gmra.mxu0 %v826
      %v883 = vpop.f32.mrf.mxu0
      %v884 = vadd.f32 0.0, %v883
      %v885 = vpop.f32.mrf.mxu0
      %v886 = vadd.f32 0.0, %v885
      %887 = vmatmul.bf16.gmra.mxu0 %v829
      %v888 = vpop.f32.mrf.mxu0
      %v889 = vadd.f32 0.0, %v888
      %v890 = vpop.f32.mrf.mxu0
      %v891 = vadd.f32 0.0, %v890
      %892 = vmatmul.bf16.gmra.mxu0 %v832
      %v893 = vpop.f32.mrf.mxu0
      %v894 = vadd.f32 0.0, %v893
      %v895 = vpop.f32.mrf.mxu0
      %v896 = vadd.f32 0.0, %v895
      %897 = vmatmul.bf16.gmra.mxu0 %v835
      %v898 = vpop.f32.mrf.mxu0
      %v899 = vadd.f32 0.0, %v898
      %v900 = vpop.f32.mrf.mxu0
      %v901 = vadd.f32 0.0, %v900
      %902 = vmatmul.bf16.gmra.mxu0 %v838
      %v903 = vpop.f32.mrf.mxu0
      %v904 = vadd.f32 0.0, %v903
      %v905 = vpop.f32.mrf.mxu0
      %v906 = vadd.f32 0.0, %v905
      %907 = vmatmul.bf16.gmra.mxu0 %v841
      %v908 = vpop.f32.mrf.mxu0
      %v909 = vadd.f32 0.0, %v908
      %v910 = vpop.f32.mrf.mxu0
      %v911 = vadd.f32 0.0, %v910
      %912 = vmatmul.bf16.gmra.mxu0 %v844
      %v913 = vpop.f32.mrf.mxu0
      %v914 = vadd.f32 0.0, %v913
      %v915 = vpop.f32.mrf.mxu0
      %v916 = vadd.f32 0.0, %v915
      %917 = vmatmul.bf16.gmra.mxu0 %v847
      %v918 = vpop.f32.mrf.mxu0
      %v919 = vadd.f32 0.0, %v918
      %v920 = vpop.f32.mrf.mxu0
      %v921 = vadd.f32 0.0, %v920
      %922 = vmatmul.bf16.gmra.mxu0 %v850
      %v923 = vpop.f32.mrf.mxu0
      %v924 = vadd.f32 0.0, %v923
      %v925 = vpop.f32.mrf.mxu0
      %v926 = vadd.f32 0.0, %v925
      %927 = vmatmul.bf16.gmra.mxu0 %v853
      %v928 = vpop.f32.mrf.mxu0
      %v929 = vadd.f32 0.0, %v928
      %v930 = vpop.f32.mrf.mxu0
      %v931 = vadd.f32 0.0, %v930
      %932 = vmatmul.bf16.gmra.mxu0 %v856
      %v933 = vpop.f32.mrf.mxu0
      %v934 = vadd.f32 0.0, %v933
      %v935 = vpop.f32.mrf.mxu0
      %v936 = vadd.f32 0.0, %v935
      %937 = vmatmul.bf16.gmra.mxu0 %v859
      %v938 = vpop.f32.mrf.mxu0
      %v939 = vadd.f32 0.0, %v938
      %v940 = vpop.f32.mrf.mxu0
      %v941 = vadd.f32 0.0, %v940
      %942 = vdwg.mxu0
      %v943 = vadd.f32 %v643, %v874
      %v944 = vadd.f32 %v645, %v876
      %v945 = vadd.f32 %v648, %v879
      %v946 = vadd.f32 %v650, %v881
      %v947 = vadd.f32 %v653, %v884
      %v948 = vadd.f32 %v655, %v886
      %v949 = vadd.f32 %v658, %v889
      %v950 = vadd.f32 %v660, %v891
      %v951 = vadd.f32 %v663, %v894
      %v952 = vadd.f32 %v665, %v896
      %v953 = vadd.f32 %v668, %v899
      %v954 = vadd.f32 %v670, %v901
      %v955 = vadd.f32 %v673, %v904
      %v956 = vadd.f32 %v675, %v906
      %v957 = vadd.f32 %v678, %v909
      %v958 = vadd.f32 %v680, %v911
      %v959 = vadd.f32 %v683, %v914
      %v960 = vadd.f32 %v685, %v916
      %v961 = vadd.f32 %v688, %v919
      %v962 = vadd.f32 %v690, %v921
      %v963 = vadd.f32 %v693, %v924
      %v964 = vadd.f32 %v695, %v926
      %v965 = vadd.f32 %v698, %v929
      %v966 = vadd.f32 %v700, %v931
      %v967 = vadd.f32 %v703, %v934
      %v968 = vadd.f32 %v705, %v936
      %v969 = vadd.f32 %v708, %v939
      %v970 = vadd.f32 %v710, %v941
      %s971 = scalar_lea.vmem %s3, 2
      %v972 = vld [vmem:[%s971] sm:$0x3]
      %v973 = vshrl.u32 %v446, 16
      %v975 = vshll.u32 %v446, 16
      %v977 = vrot.slane %v975, 1
      %v978 = vor.u32 %v973, %v977
      %v979 = vshll.u32 %v447, 16
      %v981 = vrot.slane %v979, 1
      %v982 = vsel %vm716, %v978, %v981
      %v983 = vshrl.u32 %v447, 16
      %v985 = vor.u32 %v983, %v981
      %v986 = vshll.u32 %v448, 16
      %v988 = vrot.slane %v986, 1
      %v989 = vsel %vm716, %v985, %v988
      %v990 = vshrl.u32 %v448, 16
      %v992 = vor.u32 %v990, %v988
      %v993 = vshll.u32 %v449, 16
      %v995 = vrot.slane %v993, 1
      %v996 = vsel %vm716, %v992, %v995
      %v997 = vshrl.u32 %v449, 16
      %v999 = vor.u32 %v997, %v995
      %v1000 = vshll.u32 %v450, 16
      %v1002 = vrot.slane %v1000, 1
      %v1003 = vsel %vm716, %v999, %v1002
      %v1004 = vshrl.u32 %v450, 16
      %v1006 = vor.u32 %v1004, %v1002
      %v1007 = vshll.u32 %v451, 16
      %v1009 = vrot.slane %v1007, 1
      %v1010 = vsel %vm716, %v1006, %v1009
      %v1011 = vshrl.u32 %v451, 16
      %v1013 = vor.u32 %v1011, %v1009
      %v1014 = vshll.u32 %v452, 16
      %v1016 = vrot.slane %v1014, 1
      %v1017 = vsel %vm716, %v1013, %v1016
      %v1018 = vshrl.u32 %v452, 16
      %v1020 = vor.u32 %v1018, %v1016
      %v1021 = vshll.u32 %v453, 16
      %v1023 = vrot.slane %v1021, 1
      %v1024 = vsel %vm716, %v1020, %v1023
      %v1025 = vshrl.u32 %v453, 16
      %v1027 = vor.u32 %v1025, %v1023
      %v1028 = vshll.u32 %v454, 16
      %v1030 = vrot.slane %v1028, 1
      %v1031 = vsel %vm716, %v1027, %v1030
      %v1032 = vshrl.u32 %v454, 16
      %v1034 = vor.u32 %v1032, %v1030
      %v1035 = vshll.u32 %v455, 16
      %v1037 = vrot.slane %v1035, 1
      %v1038 = vsel %vm716, %v1034, %v1037
      %v1039 = vshrl.u32 %v455, 16
      %v1041 = vor.u32 %v1039, %v1037
      %v1042 = vshll.u32 %v456, 16
      %v1044 = vrot.slane %v1042, 1
      %v1045 = vsel %vm716, %v1041, %v1044
      %v1046 = vshrl.u32 %v456, 16
      %v1048 = vor.u32 %v1046, %v1044
      %v1049 = vshll.u32 %v457, 16
      %v1051 = vrot.slane %v1049, 1
      %v1052 = vsel %vm716, %v1048, %v1051
      %v1053 = vshrl.u32 %v457, 16
      %v1055 = vor.u32 %v1053, %v1051
      %v1056 = vshll.u32 %v458, 16
      %v1058 = vrot.slane %v1056, 1
      %v1059 = vsel %vm716, %v1055, %v1058
      %v1060 = vshrl.u32 %v458, 16
      %v1062 = vor.u32 %v1060, %v1058
      %v1063 = vshll.u32 %v459, 16
      %v1065 = vrot.slane %v1063, 1
      %v1066 = vsel %vm716, %v1062, %v1065
      %v1067 = vshrl.u32 %v459, 16
      %v1069 = vor.u32 %v1067, %v1065
      %v1071 = vshll.u32 %v713, 16
      %v1073 = vrot.slane %v1071, 1
      %v1074 = vsel %vm716, %v1069, %v1073
      %v1076 = vsel %vm462, %v982, 0
      %v1079 = vsel %vm462, %v989, 0
      %v1082 = vsel %vm462, %v996, 0
      %v1085 = vsel %vm462, %v1003, 0
      %v1088 = vsel %vm462, %v1010, 0
      %v1091 = vsel %vm462, %v1017, 0
      %v1094 = vsel %vm462, %v1024, 0
      %v1097 = vsel %vm462, %v1031, 0
      %v1100 = vsel %vm462, %v1038, 0
      %v1103 = vsel %vm462, %v1045, 0
      %v1106 = vsel %vm462, %v1052, 0
      %v1109 = vsel %vm462, %v1059, 0
      %v1112 = vsel %vm462, %v1066, 0
      %v1115 = vsel %vm462, %v1074, 0
      %v1118 = vsel %vm505, %v972, 0
      %1120 = vmatpush.bf16.msra.mxu0 0
      %1121 = vmatpush.bf16.msra.mxu0 0
      %1122 = vmatpush.bf16.msra.mxu0 0
      %1123 = vmatpush.bf16.msra.mxu0 0
      %1124 = vmatpush.bf16.msra.mxu0 0
      %1125 = vmatpush.bf16.msra.mxu0 0
      %1126 = vmatpush.bf16.msra.mxu0 0
      %1127 = vmatpush.bf16.msra.mxu0 %v1118
      %1128 = vmatmul.bf16.gmra.mxu0 %v1076
      %v1129 = vpop.f32.mrf.mxu0
      %v1130 = vadd.f32 0.0, %v1129
      %v1131 = vpop.f32.mrf.mxu0
      %v1132 = vadd.f32 0.0, %v1131
      %1133 = vmatmul.bf16.gmra.mxu0 %v1079
      %v1134 = vpop.f32.mrf.mxu0
      %v1135 = vadd.f32 0.0, %v1134
      %v1136 = vpop.f32.mrf.mxu0
      %v1137 = vadd.f32 0.0, %v1136
      %1138 = vmatmul.bf16.gmra.mxu0 %v1082
      %v1139 = vpop.f32.mrf.mxu0
      %v1140 = vadd.f32 0.0, %v1139
      %v1141 = vpop.f32.mrf.mxu0
      %v1142 = vadd.f32 0.0, %v1141
      %1143 = vmatmul.bf16.gmra.mxu0 %v1085
      %v1144 = vpop.f32.mrf.mxu0
      %v1145 = vadd.f32 0.0, %v1144
      %v1146 = vpop.f32.mrf.mxu0
      %v1147 = vadd.f32 0.0, %v1146
      %1148 = vmatmul.bf16.gmra.mxu0 %v1088
      %v1149 = vpop.f32.mrf.mxu0
      %v1150 = vadd.f32 0.0, %v1149
      %v1151 = vpop.f32.mrf.mxu0
      %v1152 = vadd.f32 0.0, %v1151
      %1153 = vmatmul.bf16.gmra.mxu0 %v1091
      %v1154 = vpop.f32.mrf.mxu0
      %v1155 = vadd.f32 0.0, %v1154
      %v1156 = vpop.f32.mrf.mxu0
      %v1157 = vadd.f32 0.0, %v1156
      %1158 = vmatmul.bf16.gmra.mxu0 %v1094
      %v1159 = vpop.f32.mrf.mxu0
      %v1160 = vadd.f32 0.0, %v1159
      %v1161 = vpop.f32.mrf.mxu0
      %v1162 = vadd.f32 0.0, %v1161
      %1163 = vmatmul.bf16.gmra.mxu0 %v1097
      %v1164 = vpop.f32.mrf.mxu0
      %v1165 = vadd.f32 0.0, %v1164
      %v1166 = vpop.f32.mrf.mxu0
      %v1167 = vadd.f32 0.0, %v1166
      %1168 = vmatmul.bf16.gmra.mxu0 %v1100
      %v1169 = vpop.f32.mrf.mxu0
      %v1170 = vadd.f32 0.0, %v1169
      %v1171 = vpop.f32.mrf.mxu0
      %v1172 = vadd.f32 0.0, %v1171
      %1173 = vmatmul.bf16.gmra.mxu0 %v1103
      %v1174 = vpop.f32.mrf.mxu0
      %v1175 = vadd.f32 0.0, %v1174
      %v1176 = vpop.f32.mrf.mxu0
      %v1177 = vadd.f32 0.0, %v1176
      %1178 = vmatmul.bf16.gmra.mxu0 %v1106
      %v1179 = vpop.f32.mrf.mxu0
      %v1180 = vadd.f32 0.0, %v1179
      %v1181 = vpop.f32.mrf.mxu0
      %v1182 = vadd.f32 0.0, %v1181
      %1183 = vmatmul.bf16.gmra.mxu0 %v1109
      %v1184 = vpop.f32.mrf.mxu0
      %v1185 = vadd.f32 0.0, %v1184
      %v1186 = vpop.f32.mrf.mxu0
      %v1187 = vadd.f32 0.0, %v1186
      %1188 = vmatmul.bf16.gmra.mxu0 %v1112
      %v1189 = vpop.f32.mrf.mxu0
      %v1190 = vadd.f32 0.0, %v1189
      %v1191 = vpop.f32.mrf.mxu0
      %v1192 = vadd.f32 0.0, %v1191
      %1193 = vmatmul.bf16.gmra.mxu0 %v1115
      %v1194 = vpop.f32.mrf.mxu0
      %v1195 = vadd.f32 0.0, %v1194
      %v1196 = vpop.f32.mrf.mxu0
      %v1197 = vadd.f32 0.0, %v1196
      %1198 = vdwg.mxu0
      %v1199 = vadd.f32 %v943, %v1130
      %v1200 = vadd.f32 %v944, %v1132
      %v1201 = vadd.f32 %v945, %v1135
      %v1202 = vadd.f32 %v946, %v1137
      %v1203 = vadd.f32 %v947, %v1140
      %v1204 = vadd.f32 %v948, %v1142
      %v1205 = vadd.f32 %v949, %v1145
      %v1206 = vadd.f32 %v950, %v1147
      %v1207 = vadd.f32 %v951, %v1150
      %v1208 = vadd.f32 %v952, %v1152
      %v1209 = vadd.f32 %v953, %v1155
      %v1210 = vadd.f32 %v954, %v1157
      %v1211 = vadd.f32 %v955, %v1160
      %v1212 = vadd.f32 %v956, %v1162
      %v1213 = vadd.f32 %v957, %v1165
      %v1214 = vadd.f32 %v958, %v1167
      %v1215 = vadd.f32 %v959, %v1170
      %v1216 = vadd.f32 %v960, %v1172
      %v1217 = vadd.f32 %v961, %v1175
      %v1218 = vadd.f32 %v962, %v1177
      %v1219 = vadd.f32 %v963, %v1180
      %v1220 = vadd.f32 %v964, %v1182
      %v1221 = vadd.f32 %v965, %v1185
      %v1222 = vadd.f32 %v966, %v1187
      %v1223 = vadd.f32 %v967, %v1190
      %v1224 = vadd.f32 %v968, %v1192
      %v1225 = vadd.f32 %v969, %v1195
      %v1226 = vadd.f32 %v970, %v1197
      %s1227 = scalar_lea.vmem %s2, 4
      %v1228 = vld [vmem:[%s1227] sm:$0x3]
      %vm1244 = vcmask 1046528
      %v1245 = vrot.slane %v432, 1
      %v1246 = vrot.slane %v433, 1
      %v1247 = vsel %vm1244, %v1245, %v1246
      %v1248 = vrot.slane %v434, 1
      %v1249 = vsel %vm1244, %v1246, %v1248
      %v1250 = vrot.slane %v435, 1
      %v1251 = vsel %vm1244, %v1248, %v1250
      %v1252 = vrot.slane %v436, 1
      %v1253 = vsel %vm1244, %v1250, %v1252
      %v1254 = vrot.slane %v437, 1
      %v1255 = vsel %vm1244, %v1252, %v1254
      %v1256 = vrot.slane %v438, 1
      %v1257 = vsel %vm1244, %v1254, %v1256
      %v1258 = vrot.slane %v439, 1
      %v1259 = vsel %vm1244, %v1256, %v1258
      %v1260 = vrot.slane %v440, 1
      %v1261 = vsel %vm1244, %v1258, %v1260
      %v1262 = vrot.slane %v441, 1
      %v1263 = vsel %vm1244, %v1260, %v1262
      %v1264 = vrot.slane %v442, 1
      %v1265 = vsel %vm1244, %v1262, %v1264
      %v1266 = vrot.slane %v443, 1
      %v1267 = vsel %vm1244, %v1264, %v1266
      %v1268 = vrot.slane %v444, 1
      %v1269 = vsel %vm1244, %v1266, %v1268
      %v1270 = vrot.slane %v445, 1
      %v1271 = vsel %vm1244, %v1268, %v1270
      %v1272 = vrot.slane %v712, 1
      %v1273 = vsel %vm1244, %v1270, %v1272
      %v1275 = vsel %vm462, %v1247, 0
      %v1278 = vsel %vm462, %v1249, 0
      %v1281 = vsel %vm462, %v1251, 0
      %v1284 = vsel %vm462, %v1253, 0
      %v1287 = vsel %vm462, %v1255, 0
      %v1290 = vsel %vm462, %v1257, 0
      %v1293 = vsel %vm462, %v1259, 0
      %v1296 = vsel %vm462, %v1261, 0
      %v1299 = vsel %vm462, %v1263, 0
      %v1302 = vsel %vm462, %v1265, 0
      %v1305 = vsel %vm462, %v1267, 0
      %v1308 = vsel %vm462, %v1269, 0
      %v1311 = vsel %vm462, %v1271, 0
      %v1314 = vsel %vm462, %v1273, 0
      %v1317 = vsel %vm505, %v1228, 0
      %1319 = vmatpush.bf16.msra.mxu0 0
      %1320 = vmatpush.bf16.msra.mxu0 0
      %1321 = vmatpush.bf16.msra.mxu0 0
      %1322 = vmatpush.bf16.msra.mxu0 0
      %1323 = vmatpush.bf16.msra.mxu0 0
      %1324 = vmatpush.bf16.msra.mxu0 0
      %1325 = vmatpush.bf16.msra.mxu0 0
      %1326 = vmatpush.bf16.msra.mxu0 %v1317
      %1327 = vmatmul.bf16.gmra.mxu0 %v1275
      %v1328 = vpop.f32.mrf.mxu0
      %v1329 = vadd.f32 0.0, %v1328
      %v1330 = vpop.f32.mrf.mxu0
      %v1331 = vadd.f32 0.0, %v1330
      %1332 = vmatmul.bf16.gmra.mxu0 %v1278
      %v1333 = vpop.f32.mrf.mxu0
      %v1334 = vadd.f32 0.0, %v1333
      %v1335 = vpop.f32.mrf.mxu0
      %v1336 = vadd.f32 0.0, %v1335
      %1337 = vmatmul.bf16.gmra.mxu0 %v1281
      %v1338 = vpop.f32.mrf.mxu0
      %v1339 = vadd.f32 0.0, %v1338
      %v1340 = vpop.f32.mrf.mxu0
      %v1341 = vadd.f32 0.0, %v1340
      %1342 = vmatmul.bf16.gmra.mxu0 %v1284
      %v1343 = vpop.f32.mrf.mxu0
      %v1344 = vadd.f32 0.0, %v1343
      %v1345 = vpop.f32.mrf.mxu0
      %v1346 = vadd.f32 0.0, %v1345
      %1347 = vmatmul.bf16.gmra.mxu0 %v1287
      %v1348 = vpop.f32.mrf.mxu0
      %v1349 = vadd.f32 0.0, %v1348
      %v1350 = vpop.f32.mrf.mxu0
      %v1351 = vadd.f32 0.0, %v1350
      %1352 = vmatmul.bf16.gmra.mxu0 %v1290
      %v1353 = vpop.f32.mrf.mxu0
      %v1354 = vadd.f32 0.0, %v1353
      %v1355 = vpop.f32.mrf.mxu0
      %v1356 = vadd.f32 0.0, %v1355
      %1357 = vmatmul.bf16.gmra.mxu0 %v1293
      %v1358 = vpop.f32.mrf.mxu0
      %v1359 = vadd.f32 0.0, %v1358
      %v1360 = vpop.f32.mrf.mxu0
      %v1361 = vadd.f32 0.0, %v1360
      %1362 = vmatmul.bf16.gmra.mxu0 %v1296
      %v1363 = vpop.f32.mrf.mxu0
      %v1364 = vadd.f32 0.0, %v1363
      %v1365 = vpop.f32.mrf.mxu0
      %v1366 = vadd.f32 0.0, %v1365
      %1367 = vmatmul.bf16.gmra.mxu0 %v1299
      %v1368 = vpop.f32.mrf.mxu0
      %v1369 = vadd.f32 0.0, %v1368
      %v1370 = vpop.f32.mrf.mxu0
      %v1371 = vadd.f32 0.0, %v1370
      %1372 = vmatmul.bf16.gmra.mxu0 %v1302
      %v1373 = vpop.f32.mrf.mxu0
      %v1374 = vadd.f32 0.0, %v1373
      %v1375 = vpop.f32.mrf.mxu0
      %v1376 = vadd.f32 0.0, %v1375
      %1377 = vmatmul.bf16.gmra.mxu0 %v1305
      %v1378 = vpop.f32.mrf.mxu0
      %v1379 = vadd.f32 0.0, %v1378
      %v1380 = vpop.f32.mrf.mxu0
      %v1381 = vadd.f32 0.0, %v1380
      %1382 = vmatmul.bf16.gmra.mxu0 %v1308
      %v1383 = vpop.f32.mrf.mxu0
      %v1384 = vadd.f32 0.0, %v1383
      %v1385 = vpop.f32.mrf.mxu0
      %v1386 = vadd.f32 0.0, %v1385
      %1387 = vmatmul.bf16.gmra.mxu0 %v1311
      %v1388 = vpop.f32.mrf.mxu0
      %v1389 = vadd.f32 0.0, %v1388
      %v1390 = vpop.f32.mrf.mxu0
      %v1391 = vadd.f32 0.0, %v1390
      %1392 = vmatmul.bf16.gmra.mxu0 %v1314
      %v1393 = vpop.f32.mrf.mxu0
      %v1394 = vadd.f32 0.0, %v1393
      %v1395 = vpop.f32.mrf.mxu0
      %v1396 = vadd.f32 0.0, %v1395
      %1397 = vdwg.mxu0
      %v1398 = vadd.f32 %v1199, %v1329
      %v1399 = vadd.f32 %v1200, %v1331
      %v1400 = vadd.f32 %v1201, %v1334
      %v1401 = vadd.f32 %v1202, %v1336
      %v1402 = vadd.f32 %v1203, %v1339
      %v1403 = vadd.f32 %v1204, %v1341
      %v1404 = vadd.f32 %v1205, %v1344
      %v1405 = vadd.f32 %v1206, %v1346
      %v1406 = vadd.f32 %v1207, %v1349
      %v1407 = vadd.f32 %v1208, %v1351
      %v1408 = vadd.f32 %v1209, %v1354
      %v1409 = vadd.f32 %v1210, %v1356
      %v1410 = vadd.f32 %v1211, %v1359
      %v1411 = vadd.f32 %v1212, %v1361
      %v1412 = vadd.f32 %v1213, %v1364
      %v1413 = vadd.f32 %v1214, %v1366
      %v1414 = vadd.f32 %v1215, %v1369
      %v1415 = vadd.f32 %v1216, %v1371
      %v1416 = vadd.f32 %v1217, %v1374
      %v1417 = vadd.f32 %v1218, %v1376
      %v1418 = vadd.f32 %v1219, %v1379
      %v1419 = vadd.f32 %v1220, %v1381
      %v1420 = vadd.f32 %v1221, %v1384
      %v1421 = vadd.f32 %v1222, %v1386
      %v1422 = vadd.f32 %v1223, %v1389
      %v1423 = vadd.f32 %v1224, %v1391
      %v1424 = vadd.f32 %v1225, %v1394
      %v1425 = vadd.f32 %v1226, %v1396
      %s1426 = scalar_lea.vmem %s3, 4
      %v1427 = vld [vmem:[%s1426] sm:$0x3]
      %v1443 = vrot.slane %v446, 1
      %v1444 = vrot.slane %v447, 1
      %v1445 = vsel %vm1244, %v1443, %v1444
      %v1446 = vrot.slane %v448, 1
      %v1447 = vsel %vm1244, %v1444, %v1446
      %v1448 = vrot.slane %v449, 1
      %v1449 = vsel %vm1244, %v1446, %v1448
      %v1450 = vrot.slane %v450, 1
      %v1451 = vsel %vm1244, %v1448, %v1450
      %v1452 = vrot.slane %v451, 1
      %v1453 = vsel %vm1244, %v1450, %v1452
      %v1454 = vrot.slane %v452, 1
      %v1455 = vsel %vm1244, %v1452, %v1454
      %v1456 = vrot.slane %v453, 1
      %v1457 = vsel %vm1244, %v1454, %v1456
      %v1458 = vrot.slane %v454, 1
      %v1459 = vsel %vm1244, %v1456, %v1458
      %v1460 = vrot.slane %v455, 1
      %v1461 = vsel %vm1244, %v1458, %v1460
      %v1462 = vrot.slane %v456, 1
      %v1463 = vsel %vm1244, %v1460, %v1462
      %v1464 = vrot.slane %v457, 1
      %v1465 = vsel %vm1244, %v1462, %v1464
      %v1466 = vrot.slane %v458, 1
      %v1467 = vsel %vm1244, %v1464, %v1466
      %v1468 = vrot.slane %v459, 1
      %v1469 = vsel %vm1244, %v1466, %v1468
      %v1470 = vrot.slane %v713, 1
      %v1471 = vsel %vm1244, %v1468, %v1470
      %v1473 = vsel %vm462, %v1445, 0
      %v1476 = vsel %vm462, %v1447, 0
      %v1479 = vsel %vm462, %v1449, 0
      %v1482 = vsel %vm462, %v1451, 0
      %v1485 = vsel %vm462, %v1453, 0
      %v1488 = vsel %vm462, %v1455, 0
      %v1491 = vsel %vm462, %v1457, 0
      %v1494 = vsel %vm462, %v1459, 0
      %v1497 = vsel %vm462, %v1461, 0
      %v1500 = vsel %vm462, %v1463, 0
      %v1503 = vsel %vm462, %v1465, 0
      %v1506 = vsel %vm462, %v1467, 0
      %v1509 = vsel %vm462, %v1469, 0
      %v1512 = vsel %vm462, %v1471, 0
      %v1515 = vsel %vm505, %v1427, 0
      %1517 = vmatpush.bf16.msra.mxu0 0
      %1518 = vmatpush.bf16.msra.mxu0 0
      %1519 = vmatpush.bf16.msra.mxu0 0
      %1520 = vmatpush.bf16.msra.mxu0 0
      %1521 = vmatpush.bf16.msra.mxu0 0
      %1522 = vmatpush.bf16.msra.mxu0 0
      %1523 = vmatpush.bf16.msra.mxu0 0
      %1524 = vmatpush.bf16.msra.mxu0 %v1515
      %1525 = vmatmul.bf16.gmra.mxu0 %v1473
      %v1526 = vpop.f32.mrf.mxu0
      %v1527 = vadd.f32 0.0, %v1526
      %v1528 = vpop.f32.mrf.mxu0
      %v1529 = vadd.f32 0.0, %v1528
      %1530 = vmatmul.bf16.gmra.mxu0 %v1476
      %v1531 = vpop.f32.mrf.mxu0
      %v1532 = vadd.f32 0.0, %v1531
      %v1533 = vpop.f32.mrf.mxu0
      %v1534 = vadd.f32 0.0, %v1533
      %1535 = vmatmul.bf16.gmra.mxu0 %v1479
      %v1536 = vpop.f32.mrf.mxu0
      %v1537 = vadd.f32 0.0, %v1536
      %v1538 = vpop.f32.mrf.mxu0
      %v1539 = vadd.f32 0.0, %v1538
      %1540 = vmatmul.bf16.gmra.mxu0 %v1482
      %v1541 = vpop.f32.mrf.mxu0
      %v1542 = vadd.f32 0.0, %v1541
      %v1543 = vpop.f32.mrf.mxu0
      %v1544 = vadd.f32 0.0, %v1543
      %1545 = vmatmul.bf16.gmra.mxu0 %v1485
      %v1546 = vpop.f32.mrf.mxu0
      %v1547 = vadd.f32 0.0, %v1546
      %v1548 = vpop.f32.mrf.mxu0
      %v1549 = vadd.f32 0.0, %v1548
      %1550 = vmatmul.bf16.gmra.mxu0 %v1488
      %v1551 = vpop.f32.mrf.mxu0
      %v1552 = vadd.f32 0.0, %v1551
      %v1553 = vpop.f32.mrf.mxu0
      %v1554 = vadd.f32 0.0, %v1553
      %1555 = vmatmul.bf16.gmra.mxu0 %v1491
      %v1556 = vpop.f32.mrf.mxu0
      %v1557 = vadd.f32 0.0, %v1556
      %v1558 = vpop.f32.mrf.mxu0
      %v1559 = vadd.f32 0.0, %v1558
      %1560 = vmatmul.bf16.gmra.mxu0 %v1494
      %v1561 = vpop.f32.mrf.mxu0
      %v1562 = vadd.f32 0.0, %v1561
      %v1563 = vpop.f32.mrf.mxu0
      %v1564 = vadd.f32 0.0, %v1563
      %1565 = vmatmul.bf16.gmra.mxu0 %v1497
      %v1566 = vpop.f32.mrf.mxu0
      %v1567 = vadd.f32 0.0, %v1566
      %v1568 = vpop.f32.mrf.mxu0
      %v1569 = vadd.f32 0.0, %v1568
      %1570 = vmatmul.bf16.gmra.mxu0 %v1500
      %v1571 = vpop.f32.mrf.mxu0
      %v1572 = vadd.f32 0.0, %v1571
      %v1573 = vpop.f32.mrf.mxu0
      %v1574 = vadd.f32 0.0, %v1573
      %1575 = vmatmul.bf16.gmra.mxu0 %v1503
      %v1576 = vpop.f32.mrf.mxu0
      %v1577 = vadd.f32 0.0, %v1576
      %v1578 = vpop.f32.mrf.mxu0
      %v1579 = vadd.f32 0.0, %v1578
      %1580 = vmatmul.bf16.gmra.mxu0 %v1506
      %v1581 = vpop.f32.mrf.mxu0
      %v1582 = vadd.f32 0.0, %v1581
      %v1583 = vpop.f32.mrf.mxu0
      %v1584 = vadd.f32 0.0, %v1583
      %1585 = vmatmul.bf16.gmra.mxu0 %v1509
      %v1586 = vpop.f32.mrf.mxu0
      %v1587 = vadd.f32 0.0, %v1586
      %v1588 = vpop.f32.mrf.mxu0
      %v1589 = vadd.f32 0.0, %v1588
      %1590 = vmatmul.bf16.gmra.mxu0 %v1512
      %v1591 = vpop.f32.mrf.mxu0
      %v1592 = vadd.f32 0.0, %v1591
      %v1593 = vpop.f32.mrf.mxu0
      %v1594 = vadd.f32 0.0, %v1593
      %1595 = vdwg.mxu0
      %v1596 = vadd.f32 %v1398, %v1527
      %v1597 = vadd.f32 %v1399, %v1529
      %v1598 = vadd.f32 %v1400, %v1532
      %v1599 = vadd.f32 %v1401, %v1534
      %v1600 = vadd.f32 %v1402, %v1537
      %v1601 = vadd.f32 %v1403, %v1539
      %v1602 = vadd.f32 %v1404, %v1542
      %v1603 = vadd.f32 %v1405, %v1544
      %v1604 = vadd.f32 %v1406, %v1547
      %v1605 = vadd.f32 %v1407, %v1549
      %v1606 = vadd.f32 %v1408, %v1552
      %v1607 = vadd.f32 %v1409, %v1554
      %v1608 = vadd.f32 %v1410, %v1557
      %v1609 = vadd.f32 %v1411, %v1559
      %v1610 = vadd.f32 %v1412, %v1562
      %v1611 = vadd.f32 %v1413, %v1564
      %v1612 = vadd.f32 %v1414, %v1567
      %v1613 = vadd.f32 %v1415, %v1569
      %v1614 = vadd.f32 %v1416, %v1572
      %v1615 = vadd.f32 %v1417, %v1574
      %v1616 = vadd.f32 %v1418, %v1577
      %v1617 = vadd.f32 %v1419, %v1579
      %v1618 = vadd.f32 %v1420, %v1582
      %v1619 = vadd.f32 %v1421, %v1584
      %v1620 = vadd.f32 %v1422, %v1587
      %v1621 = vadd.f32 %v1423, %v1589
      %v1622 = vadd.f32 %v1424, %v1592
      %v1623 = vadd.f32 %v1425, %v1594
      %v1624 = vpack.c.bf16 %v362, %v361
      %v1625 = vpack.c.bf16 %v428, %v427
      %s1626 = scalar_lea.vmem %s2, 6
      %v1627 = vld [vmem:[%s1626] sm:$0x3]
      %v1629 = vsel %vm462, %v1624, 0
      %v1632 = vsel %vm505, %v1627, 0
      %1634 = vmatpush.bf16.msra.mxu0 0
      %1635 = vmatpush.bf16.msra.mxu0 0
      %1636 = vmatpush.bf16.msra.mxu0 0
      %1637 = vmatpush.bf16.msra.mxu0 0
      %1638 = vmatpush.bf16.msra.mxu0 0
      %1639 = vmatpush.bf16.msra.mxu0 0
      %1640 = vmatpush.bf16.msra.mxu0 0
      %1641 = vmatpush.bf16.msra.mxu0 %v1632
      %1642 = vmatmul.bf16.gmra.mxu0 %v592
      %v1643 = vpop.f32.mrf.mxu0
      %v1644 = vadd.f32 0.0, %v1643
      %v1645 = vpop.f32.mrf.mxu0
      %v1646 = vadd.f32 0.0, %v1645
      %1647 = vmatmul.bf16.gmra.mxu0 %v595
      %v1648 = vpop.f32.mrf.mxu0
      %v1649 = vadd.f32 0.0, %v1648
      %v1650 = vpop.f32.mrf.mxu0
      %v1651 = vadd.f32 0.0, %v1650
      %1652 = vmatmul.bf16.gmra.mxu0 %v598
      %v1653 = vpop.f32.mrf.mxu0
      %v1654 = vadd.f32 0.0, %v1653
      %v1655 = vpop.f32.mrf.mxu0
      %v1656 = vadd.f32 0.0, %v1655
      %1657 = vmatmul.bf16.gmra.mxu0 %v601
      %v1658 = vpop.f32.mrf.mxu0
      %v1659 = vadd.f32 0.0, %v1658
      %v1660 = vpop.f32.mrf.mxu0
      %v1661 = vadd.f32 0.0, %v1660
      %1662 = vmatmul.bf16.gmra.mxu0 %v604
      %v1663 = vpop.f32.mrf.mxu0
      %v1664 = vadd.f32 0.0, %v1663
      %v1665 = vpop.f32.mrf.mxu0
      %v1666 = vadd.f32 0.0, %v1665
      %1667 = vmatmul.bf16.gmra.mxu0 %v607
      %v1668 = vpop.f32.mrf.mxu0
      %v1669 = vadd.f32 0.0, %v1668
      %v1670 = vpop.f32.mrf.mxu0
      %v1671 = vadd.f32 0.0, %v1670
      %1672 = vmatmul.bf16.gmra.mxu0 %v610
      %v1673 = vpop.f32.mrf.mxu0
      %v1674 = vadd.f32 0.0, %v1673
      %v1675 = vpop.f32.mrf.mxu0
      %v1676 = vadd.f32 0.0, %v1675
      %1677 = vmatmul.bf16.gmra.mxu0 %v613
      %v1678 = vpop.f32.mrf.mxu0
      %v1679 = vadd.f32 0.0, %v1678
      %v1680 = vpop.f32.mrf.mxu0
      %v1681 = vadd.f32 0.0, %v1680
      %1682 = vmatmul.bf16.gmra.mxu0 %v616
      %v1683 = vpop.f32.mrf.mxu0
      %v1684 = vadd.f32 0.0, %v1683
      %v1685 = vpop.f32.mrf.mxu0
      %v1686 = vadd.f32 0.0, %v1685
      %1687 = vmatmul.bf16.gmra.mxu0 %v619
      %v1688 = vpop.f32.mrf.mxu0
      %v1689 = vadd.f32 0.0, %v1688
      %v1690 = vpop.f32.mrf.mxu0
      %v1691 = vadd.f32 0.0, %v1690
      %1692 = vmatmul.bf16.gmra.mxu0 %v622
      %v1693 = vpop.f32.mrf.mxu0
      %v1694 = vadd.f32 0.0, %v1693
      %v1695 = vpop.f32.mrf.mxu0
      %v1696 = vadd.f32 0.0, %v1695
      %1697 = vmatmul.bf16.gmra.mxu0 %v625
      %v1698 = vpop.f32.mrf.mxu0
      %v1699 = vadd.f32 0.0, %v1698
      %v1700 = vpop.f32.mrf.mxu0
      %v1701 = vadd.f32 0.0, %v1700
      %1702 = vmatmul.bf16.gmra.mxu0 %v628
      %v1703 = vpop.f32.mrf.mxu0
      %v1704 = vadd.f32 0.0, %v1703
      %v1705 = vpop.f32.mrf.mxu0
      %v1706 = vadd.f32 0.0, %v1705
      %1707 = vmatmul.bf16.gmra.mxu0 %v1629
      %v1708 = vpop.f32.mrf.mxu0
      %v1709 = vadd.f32 0.0, %v1708
      %v1710 = vpop.f32.mrf.mxu0
      %v1711 = vadd.f32 0.0, %v1710
      %1712 = vdwg.mxu0
      %v1713 = vadd.f32 %v1596, %v1644
      %v1714 = vadd.f32 %v1597, %v1646
      %v1715 = vadd.f32 %v1598, %v1649
      %v1716 = vadd.f32 %v1599, %v1651
      %v1717 = vadd.f32 %v1600, %v1654
      %v1718 = vadd.f32 %v1601, %v1656
      %v1719 = vadd.f32 %v1602, %v1659
      %v1720 = vadd.f32 %v1603, %v1661
      %v1721 = vadd.f32 %v1604, %v1664
      %v1722 = vadd.f32 %v1605, %v1666
      %v1723 = vadd.f32 %v1606, %v1669
      %v1724 = vadd.f32 %v1607, %v1671
      %v1725 = vadd.f32 %v1608, %v1674
      %v1726 = vadd.f32 %v1609, %v1676
      %v1727 = vadd.f32 %v1610, %v1679
      %v1728 = vadd.f32 %v1611, %v1681
      %v1729 = vadd.f32 %v1612, %v1684
      %v1730 = vadd.f32 %v1613, %v1686
      %v1731 = vadd.f32 %v1614, %v1689
      %v1732 = vadd.f32 %v1615, %v1691
      %v1733 = vadd.f32 %v1616, %v1694
      %v1734 = vadd.f32 %v1617, %v1696
      %v1735 = vadd.f32 %v1618, %v1699
      %v1736 = vadd.f32 %v1619, %v1701
      %v1737 = vadd.f32 %v1620, %v1704
      %v1738 = vadd.f32 %v1621, %v1706
      %v1739 = vadd.f32 %v1622, %v1709
      %v1740 = vadd.f32 %v1623, %v1711
      %s1741 = scalar_lea.vmem %s3, 6
      %v1742 = vld [vmem:[%s1741] sm:$0x3]
      %v1744 = vsel %vm462, %v1625, 0
      %v1747 = vsel %vm505, %v1742, 0
      %1749 = vmatpush.bf16.msra.mxu0 0
      %1750 = vmatpush.bf16.msra.mxu0 0
      %1751 = vmatpush.bf16.msra.mxu0 0
      %1752 = vmatpush.bf16.msra.mxu0 0
      %1753 = vmatpush.bf16.msra.mxu0 0
      %1754 = vmatpush.bf16.msra.mxu0 0
      %1755 = vmatpush.bf16.msra.mxu0 0
      %1756 = vmatpush.bf16.msra.mxu0 %v1747
      %1757 = vmatmul.bf16.gmra.mxu0 %v467
      %v1758 = vpop.f32.mrf.mxu0
      %v1759 = vadd.f32 0.0, %v1758
      %v1760 = vpop.f32.mrf.mxu0
      %v1761 = vadd.f32 0.0, %v1760
      %1762 = vmatmul.bf16.gmra.mxu0 %v470
      %v1763 = vpop.f32.mrf.mxu0
      %v1764 = vadd.f32 0.0, %v1763
      %v1765 = vpop.f32.mrf.mxu0
      %v1766 = vadd.f32 0.0, %v1765
      %1767 = vmatmul.bf16.gmra.mxu0 %v473
      %v1768 = vpop.f32.mrf.mxu0
      %v1769 = vadd.f32 0.0, %v1768
      %v1770 = vpop.f32.mrf.mxu0
      %v1771 = vadd.f32 0.0, %v1770
      %1772 = vmatmul.bf16.gmra.mxu0 %v476
      %v1773 = vpop.f32.mrf.mxu0
      %v1774 = vadd.f32 0.0, %v1773
      %v1775 = vpop.f32.mrf.mxu0
      %v1776 = vadd.f32 0.0, %v1775
      %1777 = vmatmul.bf16.gmra.mxu0 %v479
      %v1778 = vpop.f32.mrf.mxu0
      %v1779 = vadd.f32 0.0, %v1778
      %v1780 = vpop.f32.mrf.mxu0
      %v1781 = vadd.f32 0.0, %v1780
      %1782 = vmatmul.bf16.gmra.mxu0 %v482
      %v1783 = vpop.f32.mrf.mxu0
      %v1784 = vadd.f32 0.0, %v1783
      %v1785 = vpop.f32.mrf.mxu0
      %v1786 = vadd.f32 0.0, %v1785
      %1787 = vmatmul.bf16.gmra.mxu0 %v485
      %v1788 = vpop.f32.mrf.mxu0
      %v1789 = vadd.f32 0.0, %v1788
      %v1790 = vpop.f32.mrf.mxu0
      %v1791 = vadd.f32 0.0, %v1790
      %1792 = vmatmul.bf16.gmra.mxu0 %v488
      %v1793 = vpop.f32.mrf.mxu0
      %v1794 = vadd.f32 0.0, %v1793
      %v1795 = vpop.f32.mrf.mxu0
      %v1796 = vadd.f32 0.0, %v1795
      %1797 = vmatmul.bf16.gmra.mxu0 %v491
      %v1798 = vpop.f32.mrf.mxu0
      %v1799 = vadd.f32 0.0, %v1798
      %v1800 = vpop.f32.mrf.mxu0
      %v1801 = vadd.f32 0.0, %v1800
      %1802 = vmatmul.bf16.gmra.mxu0 %v494
      %v1803 = vpop.f32.mrf.mxu0
      %v1804 = vadd.f32 0.0, %v1803
      %v1805 = vpop.f32.mrf.mxu0
      %v1806 = vadd.f32 0.0, %v1805
      %1807 = vmatmul.bf16.gmra.mxu0 %v497
      %v1808 = vpop.f32.mrf.mxu0
      %v1809 = vadd.f32 0.0, %v1808
      %v1810 = vpop.f32.mrf.mxu0
      %v1811 = vadd.f32 0.0, %v1810
      %1812 = vmatmul.bf16.gmra.mxu0 %v500
      %v1813 = vpop.f32.mrf.mxu0
      %v1814 = vadd.f32 0.0, %v1813
      %v1815 = vpop.f32.mrf.mxu0
      %v1816 = vadd.f32 0.0, %v1815
      %1817 = vmatmul.bf16.gmra.mxu0 %v503
      %v1818 = vpop.f32.mrf.mxu0
      %v1819 = vadd.f32 0.0, %v1818
      %v1820 = vpop.f32.mrf.mxu0
      %v1821 = vadd.f32 0.0, %v1820
      %1822 = vmatmul.bf16.gmra.mxu0 %v1744
      %v1823 = vpop.f32.mrf.mxu0
      %v1824 = vadd.f32 0.0, %v1823
      %v1825 = vpop.f32.mrf.mxu0
      %v1826 = vadd.f32 0.0, %v1825
      %1827 = vdwg.mxu0
      %v1828 = vadd.f32 %v1713, %v1759
      %v1829 = vadd.f32 %v1714, %v1761
      %v1830 = vadd.f32 %v1715, %v1764
      %v1831 = vadd.f32 %v1716, %v1766
      %v1832 = vadd.f32 %v1717, %v1769
      %v1833 = vadd.f32 %v1718, %v1771
      %v1834 = vadd.f32 %v1719, %v1774
      %v1835 = vadd.f32 %v1720, %v1776
      %v1836 = vadd.f32 %v1721, %v1779
      %v1837 = vadd.f32 %v1722, %v1781
      %v1838 = vadd.f32 %v1723, %v1784
      %v1839 = vadd.f32 %v1724, %v1786
      %v1840 = vadd.f32 %v1725, %v1789
      %v1841 = vadd.f32 %v1726, %v1791
      %v1842 = vadd.f32 %v1727, %v1794
      %v1843 = vadd.f32 %v1728, %v1796
      %v1844 = vadd.f32 %v1729, %v1799
      %v1845 = vadd.f32 %v1730, %v1801
      %v1846 = vadd.f32 %v1731, %v1804
      %v1847 = vadd.f32 %v1732, %v1806
      %v1848 = vadd.f32 %v1733, %v1809
      %v1849 = vadd.f32 %v1734, %v1811
      %v1850 = vadd.f32 %v1735, %v1814
      %v1851 = vadd.f32 %v1736, %v1816
      %v1852 = vadd.f32 %v1737, %v1819
      %v1853 = vadd.f32 %v1738, %v1821
      %v1854 = vadd.f32 %v1739, %v1824
      %v1855 = vadd.f32 %v1740, %v1826
      %v1856 = vpack.c.bf16 %v363, %v363
      %v1857 = vpack.c.bf16 %v429, %v429
      %s1858 = scalar_lea.vmem %s2, 8
      %v1859 = vld [vmem:[%s1858] sm:$0x3]
      %v1860 = vshll.u32 %v1624, 16
      %v1862 = vrot.slane %v1860, 1
      %v1863 = vsel %vm716, %v813, %v1862
      %v1864 = vshrl.u32 %v1624, 16
      %v1866 = vor.u32 %v1864, %v1862
      %v1868 = vshll.u32 %v1856, 16
      %v1870 = vrot.slane %v1868, 1
      %v1871 = vsel %vm716, %v1866, %v1870
      %v1873 = vsel %vm462, %v1863, 0
      %v1876 = vsel %vm462, %v1871, 0
      %v1879 = vsel %vm505, %v1859, 0
      %1881 = vmatpush.bf16.msra.mxu0 0
      %1882 = vmatpush.bf16.msra.mxu0 0
      %1883 = vmatpush.bf16.msra.mxu0 0
      %1884 = vmatpush.bf16.msra.mxu0 0
      %1885 = vmatpush.bf16.msra.mxu0 0
      %1886 = vmatpush.bf16.msra.mxu0 0
      %1887 = vmatpush.bf16.msra.mxu0 0
      %1888 = vmatpush.bf16.msra.mxu0 %v1879
      %1889 = vmatmul.bf16.gmra.mxu0 %v823
      %v1890 = vpop.f32.mrf.mxu0
      %v1891 = vadd.f32 0.0, %v1890
      %v1892 = vpop.f32.mrf.mxu0
      %v1893 = vadd.f32 0.0, %v1892
      %1894 = vmatmul.bf16.gmra.mxu0 %v826
      %v1895 = vpop.f32.mrf.mxu0
      %v1896 = vadd.f32 0.0, %v1895
      %v1897 = vpop.f32.mrf.mxu0
      %v1898 = vadd.f32 0.0, %v1897
      %1899 = vmatmul.bf16.gmra.mxu0 %v829
      %v1900 = vpop.f32.mrf.mxu0
      %v1901 = vadd.f32 0.0, %v1900
      %v1902 = vpop.f32.mrf.mxu0
      %v1903 = vadd.f32 0.0, %v1902
      %1904 = vmatmul.bf16.gmra.mxu0 %v832
      %v1905 = vpop.f32.mrf.mxu0
      %v1906 = vadd.f32 0.0, %v1905
      %v1907 = vpop.f32.mrf.mxu0
      %v1908 = vadd.f32 0.0, %v1907
      %1909 = vmatmul.bf16.gmra.mxu0 %v835
      %v1910 = vpop.f32.mrf.mxu0
      %v1911 = vadd.f32 0.0, %v1910
      %v1912 = vpop.f32.mrf.mxu0
      %v1913 = vadd.f32 0.0, %v1912
      %1914 = vmatmul.bf16.gmra.mxu0 %v838
      %v1915 = vpop.f32.mrf.mxu0
      %v1916 = vadd.f32 0.0, %v1915
      %v1917 = vpop.f32.mrf.mxu0
      %v1918 = vadd.f32 0.0, %v1917
      %1919 = vmatmul.bf16.gmra.mxu0 %v841
      %v1920 = vpop.f32.mrf.mxu0
      %v1921 = vadd.f32 0.0, %v1920
      %v1922 = vpop.f32.mrf.mxu0
      %v1923 = vadd.f32 0.0, %v1922
      %1924 = vmatmul.bf16.gmra.mxu0 %v844
      %v1925 = vpop.f32.mrf.mxu0
      %v1926 = vadd.f32 0.0, %v1925
      %v1927 = vpop.f32.mrf.mxu0
      %v1928 = vadd.f32 0.0, %v1927
      %1929 = vmatmul.bf16.gmra.mxu0 %v847
      %v1930 = vpop.f32.mrf.mxu0
      %v1931 = vadd.f32 0.0, %v1930
      %v1932 = vpop.f32.mrf.mxu0
      %v1933 = vadd.f32 0.0, %v1932
      %1934 = vmatmul.bf16.gmra.mxu0 %v850
      %v1935 = vpop.f32.mrf.mxu0
      %v1936 = vadd.f32 0.0, %v1935
      %v1937 = vpop.f32.mrf.mxu0
      %v1938 = vadd.f32 0.0, %v1937
      %1939 = vmatmul.bf16.gmra.mxu0 %v853
      %v1940 = vpop.f32.mrf.mxu0
      %v1941 = vadd.f32 0.0, %v1940
      %v1942 = vpop.f32.mrf.mxu0
      %v1943 = vadd.f32 0.0, %v1942
      %1944 = vmatmul.bf16.gmra.mxu0 %v856
      %v1945 = vpop.f32.mrf.mxu0
      %v1946 = vadd.f32 0.0, %v1945
      %v1947 = vpop.f32.mrf.mxu0
      %v1948 = vadd.f32 0.0, %v1947
      %1949 = vmatmul.bf16.gmra.mxu0 %v1873
      %v1950 = vpop.f32.mrf.mxu0
      %v1951 = vadd.f32 0.0, %v1950
      %v1952 = vpop.f32.mrf.mxu0
      %v1953 = vadd.f32 0.0, %v1952
      %1954 = vmatmul.bf16.gmra.mxu0 %v1876
      %v1955 = vpop.f32.mrf.mxu0
      %v1956 = vadd.f32 0.0, %v1955
      %v1957 = vpop.f32.mrf.mxu0
      %v1958 = vadd.f32 0.0, %v1957
      %1959 = vdwg.mxu0
      %v1960 = vadd.f32 %v1828, %v1891
      %v1961 = vadd.f32 %v1829, %v1893
      %v1962 = vadd.f32 %v1830, %v1896
      %v1963 = vadd.f32 %v1831, %v1898
      %v1964 = vadd.f32 %v1832, %v1901
      %v1965 = vadd.f32 %v1833, %v1903
      %v1966 = vadd.f32 %v1834, %v1906
      %v1967 = vadd.f32 %v1835, %v1908
      %v1968 = vadd.f32 %v1836, %v1911
      %v1969 = vadd.f32 %v1837, %v1913
      %v1970 = vadd.f32 %v1838, %v1916
      %v1971 = vadd.f32 %v1839, %v1918
      %v1972 = vadd.f32 %v1840, %v1921
      %v1973 = vadd.f32 %v1841, %v1923
      %v1974 = vadd.f32 %v1842, %v1926
      %v1975 = vadd.f32 %v1843, %v1928
      %v1976 = vadd.f32 %v1844, %v1931
      %v1977 = vadd.f32 %v1845, %v1933
      %v1978 = vadd.f32 %v1846, %v1936
      %v1979 = vadd.f32 %v1847, %v1938
      %v1980 = vadd.f32 %v1848, %v1941
      %v1981 = vadd.f32 %v1849, %v1943
      %v1982 = vadd.f32 %v1850, %v1946
      %v1983 = vadd.f32 %v1851, %v1948
      %v1984 = vadd.f32 %v1852, %v1951
      %v1985 = vadd.f32 %v1853, %v1953
      %v1986 = vadd.f32 %v1854, %v1956
      %v1987 = vadd.f32 %v1855, %v1958
      %s1988 = scalar_lea.vmem %s3, 8
      %v1989 = vld [vmem:[%s1988] sm:$0x3]
      %v1990 = vshll.u32 %v1625, 16
      %v1992 = vrot.slane %v1990, 1
      %v1993 = vsel %vm716, %v1069, %v1992
      %v1994 = vshrl.u32 %v1625, 16
      %v1996 = vor.u32 %v1994, %v1992
      %v1998 = vshll.u32 %v1857, 16
      %v2000 = vrot.slane %v1998, 1
      %v2001 = vsel %vm716, %v1996, %v2000
      %v2003 = vsel %vm462, %v1993, 0
      %v2006 = vsel %vm462, %v2001, 0
      %v2009 = vsel %vm505, %v1989, 0
      %2011 = vmatpush.bf16.msra.mxu0 0
      %2012 = vmatpush.bf16.msra.mxu0 0
      %2013 = vmatpush.bf16.msra.mxu0 0
      %2014 = vmatpush.bf16.msra.mxu0 0
      %2015 = vmatpush.bf16.msra.mxu0 0
      %2016 = vmatpush.bf16.msra.mxu0 0
      %2017 = vmatpush.bf16.msra.mxu0 0
      %2018 = vmatpush.bf16.msra.mxu0 %v2009
      %2019 = vmatmul.bf16.gmra.mxu0 %v1079
      %v2020 = vpop.f32.mrf.mxu0
      %v2021 = vadd.f32 0.0, %v2020
      %v2022 = vpop.f32.mrf.mxu0
      %v2023 = vadd.f32 0.0, %v2022
      %2024 = vmatmul.bf16.gmra.mxu0 %v1082
      %v2025 = vpop.f32.mrf.mxu0
      %v2026 = vadd.f32 0.0, %v2025
      %v2027 = vpop.f32.mrf.mxu0
      %v2028 = vadd.f32 0.0, %v2027
      %2029 = vmatmul.bf16.gmra.mxu0 %v1085
      %v2030 = vpop.f32.mrf.mxu0
      %v2031 = vadd.f32 0.0, %v2030
      %v2032 = vpop.f32.mrf.mxu0
      %v2033 = vadd.f32 0.0, %v2032
      %2034 = vmatmul.bf16.gmra.mxu0 %v1088
      %v2035 = vpop.f32.mrf.mxu0
      %v2036 = vadd.f32 0.0, %v2035
      %v2037 = vpop.f32.mrf.mxu0
      %v2038 = vadd.f32 0.0, %v2037
      %2039 = vmatmul.bf16.gmra.mxu0 %v1091
      %v2040 = vpop.f32.mrf.mxu0
      %v2041 = vadd.f32 0.0, %v2040
      %v2042 = vpop.f32.mrf.mxu0
      %v2043 = vadd.f32 0.0, %v2042
      %2044 = vmatmul.bf16.gmra.mxu0 %v1094
      %v2045 = vpop.f32.mrf.mxu0
      %v2046 = vadd.f32 0.0, %v2045
      %v2047 = vpop.f32.mrf.mxu0
      %v2048 = vadd.f32 0.0, %v2047
      %2049 = vmatmul.bf16.gmra.mxu0 %v1097
      %v2050 = vpop.f32.mrf.mxu0
      %v2051 = vadd.f32 0.0, %v2050
      %v2052 = vpop.f32.mrf.mxu0
      %v2053 = vadd.f32 0.0, %v2052
      %2054 = vmatmul.bf16.gmra.mxu0 %v1100
      %v2055 = vpop.f32.mrf.mxu0
      %v2056 = vadd.f32 0.0, %v2055
      %v2057 = vpop.f32.mrf.mxu0
      %v2058 = vadd.f32 0.0, %v2057
      %2059 = vmatmul.bf16.gmra.mxu0 %v1103
      %v2060 = vpop.f32.mrf.mxu0
      %v2061 = vadd.f32 0.0, %v2060
      %v2062 = vpop.f32.mrf.mxu0
      %v2063 = vadd.f32 0.0, %v2062
      %2064 = vmatmul.bf16.gmra.mxu0 %v1106
      %v2065 = vpop.f32.mrf.mxu0
      %v2066 = vadd.f32 0.0, %v2065
      %v2067 = vpop.f32.mrf.mxu0
      %v2068 = vadd.f32 0.0, %v2067
      %2069 = vmatmul.bf16.gmra.mxu0 %v1109
      %v2070 = vpop.f32.mrf.mxu0
      %v2071 = vadd.f32 0.0, %v2070
      %v2072 = vpop.f32.mrf.mxu0
      %v2073 = vadd.f32 0.0, %v2072
      %2074 = vmatmul.bf16.gmra.mxu0 %v1112
      %v2075 = vpop.f32.mrf.mxu0
      %v2076 = vadd.f32 0.0, %v2075
      %v2077 = vpop.f32.mrf.mxu0
      %v2078 = vadd.f32 0.0, %v2077
      %2079 = vmatmul.bf16.gmra.mxu0 %v2003
      %v2080 = vpop.f32.mrf.mxu0
      %v2081 = vadd.f32 0.0, %v2080
      %v2082 = vpop.f32.mrf.mxu0
      %v2083 = vadd.f32 0.0, %v2082
      %2084 = vmatmul.bf16.gmra.mxu0 %v2006
      %v2085 = vpop.f32.mrf.mxu0
      %v2086 = vadd.f32 0.0, %v2085
      %v2087 = vpop.f32.mrf.mxu0
      %v2088 = vadd.f32 0.0, %v2087
      %2089 = vdwg.mxu0
      %v2090 = vadd.f32 %v1960, %v2021
      %v2091 = vadd.f32 %v1961, %v2023
      %v2092 = vadd.f32 %v1962, %v2026
      %v2093 = vadd.f32 %v1963, %v2028
      %v2094 = vadd.f32 %v1964, %v2031
      %v2095 = vadd.f32 %v1965, %v2033
      %v2096 = vadd.f32 %v1966, %v2036
      %v2097 = vadd.f32 %v1967, %v2038
      %v2098 = vadd.f32 %v1968, %v2041
      %v2099 = vadd.f32 %v1969, %v2043
      %v2100 = vadd.f32 %v1970, %v2046
      %v2101 = vadd.f32 %v1971, %v2048
      %v2102 = vadd.f32 %v1972, %v2051
      %v2103 = vadd.f32 %v1973, %v2053
      %v2104 = vadd.f32 %v1974, %v2056
      %v2105 = vadd.f32 %v1975, %v2058
      %v2106 = vadd.f32 %v1976, %v2061
      %v2107 = vadd.f32 %v1977, %v2063
      %v2108 = vadd.f32 %v1978, %v2066
      %v2109 = vadd.f32 %v1979, %v2068
      %v2110 = vadd.f32 %v1980, %v2071
      %v2111 = vadd.f32 %v1981, %v2073
      %v2112 = vadd.f32 %v1982, %v2076
      %v2113 = vadd.f32 %v1983, %v2078
      %v2114 = vadd.f32 %v1984, %v2081
      %v2115 = vadd.f32 %v1985, %v2083
      %v2116 = vadd.f32 %v1986, %v2086
      %v2117 = vadd.f32 %v1987, %v2088
      %s2118 = scalar_lea.vmem %s2, 10
      %v2119 = vld [vmem:[%s2118] sm:$0x3]
      %v2122 = vrot.slane %v1624, 1
      %v2123 = vsel %vm1244, %v1270, %v2122
      %v2124 = vrot.slane %v1856, 1
      %v2125 = vsel %vm1244, %v2122, %v2124
      %v2127 = vsel %vm462, %v2123, 0
      %v2130 = vsel %vm462, %v2125, 0
      %v2133 = vsel %vm505, %v2119, 0
      %2135 = vmatpush.bf16.msra.mxu0 0
      %2136 = vmatpush.bf16.msra.mxu0 0
      %2137 = vmatpush.bf16.msra.mxu0 0
      %2138 = vmatpush.bf16.msra.mxu0 0
      %2139 = vmatpush.bf16.msra.mxu0 0
      %2140 = vmatpush.bf16.msra.mxu0 0
      %2141 = vmatpush.bf16.msra.mxu0 0
      %2142 = vmatpush.bf16.msra.mxu0 %v2133
      %2143 = vmatmul.bf16.gmra.mxu0 %v1278
      %v2144 = vpop.f32.mrf.mxu0
      %v2145 = vadd.f32 0.0, %v2144
      %v2146 = vpop.f32.mrf.mxu0
      %v2147 = vadd.f32 0.0, %v2146
      %2148 = vmatmul.bf16.gmra.mxu0 %v1281
      %v2149 = vpop.f32.mrf.mxu0
      %v2150 = vadd.f32 0.0, %v2149
      %v2151 = vpop.f32.mrf.mxu0
      %v2152 = vadd.f32 0.0, %v2151
      %2153 = vmatmul.bf16.gmra.mxu0 %v1284
      %v2154 = vpop.f32.mrf.mxu0
      %v2155 = vadd.f32 0.0, %v2154
      %v2156 = vpop.f32.mrf.mxu0
      %v2157 = vadd.f32 0.0, %v2156
      %2158 = vmatmul.bf16.gmra.mxu0 %v1287
      %v2159 = vpop.f32.mrf.mxu0
      %v2160 = vadd.f32 0.0, %v2159
      %v2161 = vpop.f32.mrf.mxu0
      %v2162 = vadd.f32 0.0, %v2161
      %2163 = vmatmul.bf16.gmra.mxu0 %v1290
      %v2164 = vpop.f32.mrf.mxu0
      %v2165 = vadd.f32 0.0, %v2164
      %v2166 = vpop.f32.mrf.mxu0
      %v2167 = vadd.f32 0.0, %v2166
      %2168 = vmatmul.bf16.gmra.mxu0 %v1293
      %v2169 = vpop.f32.mrf.mxu0
      %v2170 = vadd.f32 0.0, %v2169
      %v2171 = vpop.f32.mrf.mxu0
      %v2172 = vadd.f32 0.0, %v2171
      %2173 = vmatmul.bf16.gmra.mxu0 %v1296
      %v2174 = vpop.f32.mrf.mxu0
      %v2175 = vadd.f32 0.0, %v2174
      %v2176 = vpop.f32.mrf.mxu0
      %v2177 = vadd.f32 0.0, %v2176
      %2178 = vmatmul.bf16.gmra.mxu0 %v1299
      %v2179 = vpop.f32.mrf.mxu0
      %v2180 = vadd.f32 0.0, %v2179
      %v2181 = vpop.f32.mrf.mxu0
      %v2182 = vadd.f32 0.0, %v2181
      %2183 = vmatmul.bf16.gmra.mxu0 %v1302
      %v2184 = vpop.f32.mrf.mxu0
      %v2185 = vadd.f32 0.0, %v2184
      %v2186 = vpop.f32.mrf.mxu0
      %v2187 = vadd.f32 0.0, %v2186
      %2188 = vmatmul.bf16.gmra.mxu0 %v1305
      %v2189 = vpop.f32.mrf.mxu0
      %v2190 = vadd.f32 0.0, %v2189
      %v2191 = vpop.f32.mrf.mxu0
      %v2192 = vadd.f32 0.0, %v2191
      %2193 = vmatmul.bf16.gmra.mxu0 %v1308
      %v2194 = vpop.f32.mrf.mxu0
      %v2195 = vadd.f32 0.0, %v2194
      %v2196 = vpop.f32.mrf.mxu0
      %v2197 = vadd.f32 0.0, %v2196
      %2198 = vmatmul.bf16.gmra.mxu0 %v1311
      %v2199 = vpop.f32.mrf.mxu0
      %v2200 = vadd.f32 0.0, %v2199
      %v2201 = vpop.f32.mrf.mxu0
      %v2202 = vadd.f32 0.0, %v2201
      %2203 = vmatmul.bf16.gmra.mxu0 %v2127
      %v2204 = vpop.f32.mrf.mxu0
      %v2205 = vadd.f32 0.0, %v2204
      %v2206 = vpop.f32.mrf.mxu0
      %v2207 = vadd.f32 0.0, %v2206
      %2208 = vmatmul.bf16.gmra.mxu0 %v2130
      %v2209 = vpop.f32.mrf.mxu0
      %v2210 = vadd.f32 0.0, %v2209
      %v2211 = vpop.f32.mrf.mxu0
      %v2212 = vadd.f32 0.0, %v2211
      %2213 = vdwg.mxu0
      %v2214 = vadd.f32 %v2090, %v2145
      %v2215 = vadd.f32 %v2091, %v2147
      %v2216 = vadd.f32 %v2092, %v2150
      %v2217 = vadd.f32 %v2093, %v2152
      %v2218 = vadd.f32 %v2094, %v2155
      %v2219 = vadd.f32 %v2095, %v2157
      %v2220 = vadd.f32 %v2096, %v2160
      %v2221 = vadd.f32 %v2097, %v2162
      %v2222 = vadd.f32 %v2098, %v2165
      %v2223 = vadd.f32 %v2099, %v2167
      %v2224 = vadd.f32 %v2100, %v2170
      %v2225 = vadd.f32 %v2101, %v2172
      %v2226 = vadd.f32 %v2102, %v2175
      %v2227 = vadd.f32 %v2103, %v2177
      %v2228 = vadd.f32 %v2104, %v2180
      %v2229 = vadd.f32 %v2105, %v2182
      %v2230 = vadd.f32 %v2106, %v2185
      %v2231 = vadd.f32 %v2107, %v2187
      %v2232 = vadd.f32 %v2108, %v2190
      %v2233 = vadd.f32 %v2109, %v2192
      %v2234 = vadd.f32 %v2110, %v2195
      %v2235 = vadd.f32 %v2111, %v2197
      %v2236 = vadd.f32 %v2112, %v2200
      %v2237 = vadd.f32 %v2113, %v2202
      %v2238 = vadd.f32 %v2114, %v2205
      %v2239 = vadd.f32 %v2115, %v2207
      %v2240 = vadd.f32 %v2116, %v2210
      %v2241 = vadd.f32 %v2117, %v2212
      %s2242 = scalar_lea.vmem %s3, 10
      %v2243 = vld [vmem:[%s2242] sm:$0x3]
      %v2246 = vrot.slane %v1625, 1
      %v2247 = vsel %vm1244, %v1468, %v2246
      %v2248 = vrot.slane %v1857, 1
      %v2249 = vsel %vm1244, %v2246, %v2248
      %v2251 = vsel %vm462, %v2247, 0
      %v2254 = vsel %vm462, %v2249, 0
      %v2257 = vsel %vm505, %v2243, 0
      %2259 = vmatpush.bf16.msra.mxu0 0
      %2260 = vmatpush.bf16.msra.mxu0 0
      %2261 = vmatpush.bf16.msra.mxu0 0
      %2262 = vmatpush.bf16.msra.mxu0 0
      %2263 = vmatpush.bf16.msra.mxu0 0
      %2264 = vmatpush.bf16.msra.mxu0 0
      %2265 = vmatpush.bf16.msra.mxu0 0
      %2266 = vmatpush.bf16.msra.mxu0 %v2257
      %2267 = vmatmul.bf16.gmra.mxu0 %v1476
      %v2268 = vpop.f32.mrf.mxu0
      %v2269 = vadd.f32 0.0, %v2268
      %v2270 = vpop.f32.mrf.mxu0
      %v2271 = vadd.f32 0.0, %v2270
      %2272 = vmatmul.bf16.gmra.mxu0 %v1479
      %v2273 = vpop.f32.mrf.mxu0
      %v2274 = vadd.f32 0.0, %v2273
      %v2275 = vpop.f32.mrf.mxu0
      %v2276 = vadd.f32 0.0, %v2275
      %2277 = vmatmul.bf16.gmra.mxu0 %v1482
      %v2278 = vpop.f32.mrf.mxu0
      %v2279 = vadd.f32 0.0, %v2278
      %v2280 = vpop.f32.mrf.mxu0
      %v2281 = vadd.f32 0.0, %v2280
      %2282 = vmatmul.bf16.gmra.mxu0 %v1485
      %v2283 = vpop.f32.mrf.mxu0
      %v2284 = vadd.f32 0.0, %v2283
      %v2285 = vpop.f32.mrf.mxu0
      %v2286 = vadd.f32 0.0, %v2285
      %2287 = vmatmul.bf16.gmra.mxu0 %v1488
      %v2288 = vpop.f32.mrf.mxu0
      %v2289 = vadd.f32 0.0, %v2288
      %v2290 = vpop.f32.mrf.mxu0
      %v2291 = vadd.f32 0.0, %v2290
      %2292 = vmatmul.bf16.gmra.mxu0 %v1491
      %v2293 = vpop.f32.mrf.mxu0
      %v2294 = vadd.f32 0.0, %v2293
      %v2295 = vpop.f32.mrf.mxu0
      %v2296 = vadd.f32 0.0, %v2295
      %2297 = vmatmul.bf16.gmra.mxu0 %v1494
      %v2298 = vpop.f32.mrf.mxu0
      %v2299 = vadd.f32 0.0, %v2298
      %v2300 = vpop.f32.mrf.mxu0
      %v2301 = vadd.f32 0.0, %v2300
      %2302 = vmatmul.bf16.gmra.mxu0 %v1497
      %v2303 = vpop.f32.mrf.mxu0
      %v2304 = vadd.f32 0.0, %v2303
      %v2305 = vpop.f32.mrf.mxu0
      %v2306 = vadd.f32 0.0, %v2305
      %2307 = vmatmul.bf16.gmra.mxu0 %v1500
      %v2308 = vpop.f32.mrf.mxu0
      %v2309 = vadd.f32 0.0, %v2308
      %v2310 = vpop.f32.mrf.mxu0
      %v2311 = vadd.f32 0.0, %v2310
      %2312 = vmatmul.bf16.gmra.mxu0 %v1503
      %v2313 = vpop.f32.mrf.mxu0
      %v2314 = vadd.f32 0.0, %v2313
      %v2315 = vpop.f32.mrf.mxu0
      %v2316 = vadd.f32 0.0, %v2315
      %2317 = vmatmul.bf16.gmra.mxu0 %v1506
      %v2318 = vpop.f32.mrf.mxu0
      %v2319 = vadd.f32 0.0, %v2318
      %v2320 = vpop.f32.mrf.mxu0
      %v2321 = vadd.f32 0.0, %v2320
      %2322 = vmatmul.bf16.gmra.mxu0 %v1509
      %v2323 = vpop.f32.mrf.mxu0
      %v2324 = vadd.f32 0.0, %v2323
      %v2325 = vpop.f32.mrf.mxu0
      %v2326 = vadd.f32 0.0, %v2325
      %2327 = vmatmul.bf16.gmra.mxu0 %v2251
      %v2328 = vpop.f32.mrf.mxu0
      %v2329 = vadd.f32 0.0, %v2328
      %v2330 = vpop.f32.mrf.mxu0
      %v2331 = vadd.f32 0.0, %v2330
      %2332 = vmatmul.bf16.gmra.mxu0 %v2254
      %v2333 = vpop.f32.mrf.mxu0
      %v2334 = vadd.f32 0.0, %v2333
      %v2335 = vpop.f32.mrf.mxu0
      %v2336 = vadd.f32 0.0, %v2335
      %2337 = vdwg.mxu0
      %v2338 = vadd.f32 %v2214, %v2269
      %v2339 = vadd.f32 %v2215, %v2271
      %v2340 = vadd.f32 %v2216, %v2274
      %v2341 = vadd.f32 %v2217, %v2276
      %v2342 = vadd.f32 %v2218, %v2279
      %v2343 = vadd.f32 %v2219, %v2281
      %v2344 = vadd.f32 %v2220, %v2284
      %v2345 = vadd.f32 %v2221, %v2286
      %v2346 = vadd.f32 %v2222, %v2289
      %v2347 = vadd.f32 %v2223, %v2291
      %v2348 = vadd.f32 %v2224, %v2294
      %v2349 = vadd.f32 %v2225, %v2296
      %v2350 = vadd.f32 %v2226, %v2299
      %v2351 = vadd.f32 %v2227, %v2301
      %v2352 = vadd.f32 %v2228, %v2304
      %v2353 = vadd.f32 %v2229, %v2306
      %v2354 = vadd.f32 %v2230, %v2309
      %v2355 = vadd.f32 %v2231, %v2311
      %v2356 = vadd.f32 %v2232, %v2314
      %v2357 = vadd.f32 %v2233, %v2316
      %v2358 = vadd.f32 %v2234, %v2319
      %v2359 = vadd.f32 %v2235, %v2321
      %v2360 = vadd.f32 %v2236, %v2324
      %v2361 = vadd.f32 %v2237, %v2326
      %v2362 = vadd.f32 %v2238, %v2329
      %v2363 = vadd.f32 %v2239, %v2331
      %v2364 = vadd.f32 %v2240, %v2334
      %v2365 = vadd.f32 %v2241, %v2336
      %v2366 = vpack.c.bf16 %v364, %v363
      %v2367 = vpack.c.bf16 %v430, %v429
      %s2368 = scalar_lea.vmem %s2, 12
      %v2369 = vld [vmem:[%s2368] sm:$0x3]
      %v2371 = vsel %vm462, %v2366, 0
      %v2374 = vsel %vm505, %v2369, 0
      %2376 = vmatpush.bf16.msra.mxu0 0
      %2377 = vmatpush.bf16.msra.mxu0 0
      %2378 = vmatpush.bf16.msra.mxu0 0
      %2379 = vmatpush.bf16.msra.mxu0 0
      %2380 = vmatpush.bf16.msra.mxu0 0
      %2381 = vmatpush.bf16.msra.mxu0 0
      %2382 = vmatpush.bf16.msra.mxu0 0
      %2383 = vmatpush.bf16.msra.mxu0 %v2374
      %2384 = vmatmul.bf16.gmra.mxu0 %v595
      %v2385 = vpop.f32.mrf.mxu0
      %v2386 = vadd.f32 0.0, %v2385
      %v2387 = vpop.f32.mrf.mxu0
      %v2388 = vadd.f32 0.0, %v2387
      %2389 = vmatmul.bf16.gmra.mxu0 %v598
      %v2390 = vpop.f32.mrf.mxu0
      %v2391 = vadd.f32 0.0, %v2390
      %v2392 = vpop.f32.mrf.mxu0
      %v2393 = vadd.f32 0.0, %v2392
      %2394 = vmatmul.bf16.gmra.mxu0 %v601
      %v2395 = vpop.f32.mrf.mxu0
      %v2396 = vadd.f32 0.0, %v2395
      %v2397 = vpop.f32.mrf.mxu0
      %v2398 = vadd.f32 0.0, %v2397
      %2399 = vmatmul.bf16.gmra.mxu0 %v604
      %v2400 = vpop.f32.mrf.mxu0
      %v2401 = vadd.f32 0.0, %v2400
      %v2402 = vpop.f32.mrf.mxu0
      %v2403 = vadd.f32 0.0, %v2402
      %2404 = vmatmul.bf16.gmra.mxu0 %v607
      %v2405 = vpop.f32.mrf.mxu0
      %v2406 = vadd.f32 0.0, %v2405
      %v2407 = vpop.f32.mrf.mxu0
      %v2408 = vadd.f32 0.0, %v2407
      %2409 = vmatmul.bf16.gmra.mxu0 %v610
      %v2410 = vpop.f32.mrf.mxu0
      %v2411 = vadd.f32 0.0, %v2410
      %v2412 = vpop.f32.mrf.mxu0
      %v2413 = vadd.f32 0.0, %v2412
      %2414 = vmatmul.bf16.gmra.mxu0 %v613
      %v2415 = vpop.f32.mrf.mxu0
      %v2416 = vadd.f32 0.0, %v2415
      %v2417 = vpop.f32.mrf.mxu0
      %v2418 = vadd.f32 0.0, %v2417
      %2419 = vmatmul.bf16.gmra.mxu0 %v616
      %v2420 = vpop.f32.mrf.mxu0
      %v2421 = vadd.f32 0.0, %v2420
      %v2422 = vpop.f32.mrf.mxu0
      %v2423 = vadd.f32 0.0, %v2422
      %2424 = vmatmul.bf16.gmra.mxu0 %v619
      %v2425 = vpop.f32.mrf.mxu0
      %v2426 = vadd.f32 0.0, %v2425
      %v2427 = vpop.f32.mrf.mxu0
      %v2428 = vadd.f32 0.0, %v2427
      %2429 = vmatmul.bf16.gmra.mxu0 %v622
      %v2430 = vpop.f32.mrf.mxu0
      %v2431 = vadd.f32 0.0, %v2430
      %v2432 = vpop.f32.mrf.mxu0
      %v2433 = vadd.f32 0.0, %v2432
      %2434 = vmatmul.bf16.gmra.mxu0 %v625
      %v2435 = vpop.f32.mrf.mxu0
      %v2436 = vadd.f32 0.0, %v2435
      %v2437 = vpop.f32.mrf.mxu0
      %v2438 = vadd.f32 0.0, %v2437
      %2439 = vmatmul.bf16.gmra.mxu0 %v628
      %v2440 = vpop.f32.mrf.mxu0
      %v2441 = vadd.f32 0.0, %v2440
      %v2442 = vpop.f32.mrf.mxu0
      %v2443 = vadd.f32 0.0, %v2442
      %2444 = vmatmul.bf16.gmra.mxu0 %v1629
      %v2445 = vpop.f32.mrf.mxu0
      %v2446 = vadd.f32 0.0, %v2445
      %v2447 = vpop.f32.mrf.mxu0
      %v2448 = vadd.f32 0.0, %v2447
      %2449 = vmatmul.bf16.gmra.mxu0 %v2371
      %v2450 = vpop.f32.mrf.mxu0
      %v2451 = vadd.f32 0.0, %v2450
      %v2452 = vpop.f32.mrf.mxu0
      %v2453 = vadd.f32 0.0, %v2452
      %2454 = vdwg.mxu0
      %v2455 = vadd.f32 %v2338, %v2386
      %v2456 = vadd.f32 %v2339, %v2388
      %v2457 = vadd.f32 %v2340, %v2391
      %v2458 = vadd.f32 %v2341, %v2393
      %v2459 = vadd.f32 %v2342, %v2396
      %v2460 = vadd.f32 %v2343, %v2398
      %v2461 = vadd.f32 %v2344, %v2401
      %v2462 = vadd.f32 %v2345, %v2403
      %v2463 = vadd.f32 %v2346, %v2406
      %v2464 = vadd.f32 %v2347, %v2408
      %v2465 = vadd.f32 %v2348, %v2411
      %v2466 = vadd.f32 %v2349, %v2413
      %v2467 = vadd.f32 %v2350, %v2416
      %v2468 = vadd.f32 %v2351, %v2418
      %v2469 = vadd.f32 %v2352, %v2421
      %v2470 = vadd.f32 %v2353, %v2423
      %v2471 = vadd.f32 %v2354, %v2426
      %v2472 = vadd.f32 %v2355, %v2428
      %v2473 = vadd.f32 %v2356, %v2431
      %v2474 = vadd.f32 %v2357, %v2433
      %v2475 = vadd.f32 %v2358, %v2436
      %v2476 = vadd.f32 %v2359, %v2438
      %v2477 = vadd.f32 %v2360, %v2441
      %v2478 = vadd.f32 %v2361, %v2443
      %v2479 = vadd.f32 %v2362, %v2446
      %v2480 = vadd.f32 %v2363, %v2448
      %v2481 = vadd.f32 %v2364, %v2451
      %v2482 = vadd.f32 %v2365, %v2453
      %s2483 = scalar_lea.vmem %s3, 12
      %v2484 = vld [vmem:[%s2483] sm:$0x3]
      %v2486 = vsel %vm462, %v2367, 0
      %v2489 = vsel %vm505, %v2484, 0
      %2491 = vmatpush.bf16.msra.mxu0 0
      %2492 = vmatpush.bf16.msra.mxu0 0
      %2493 = vmatpush.bf16.msra.mxu0 0
      %2494 = vmatpush.bf16.msra.mxu0 0
      %2495 = vmatpush.bf16.msra.mxu0 0
      %2496 = vmatpush.bf16.msra.mxu0 0
      %2497 = vmatpush.bf16.msra.mxu0 0
      %2498 = vmatpush.bf16.msra.mxu0 %v2489
      %2499 = vmatmul.bf16.gmra.mxu0 %v470
      %v2500 = vpop.f32.mrf.mxu0
      %v2501 = vadd.f32 0.0, %v2500
      %v2502 = vpop.f32.mrf.mxu0
      %v2503 = vadd.f32 0.0, %v2502
      %2504 = vmatmul.bf16.gmra.mxu0 %v473
      %v2505 = vpop.f32.mrf.mxu0
      %v2506 = vadd.f32 0.0, %v2505
      %v2507 = vpop.f32.mrf.mxu0
      %v2508 = vadd.f32 0.0, %v2507
      %2509 = vmatmul.bf16.gmra.mxu0 %v476
      %v2510 = vpop.f32.mrf.mxu0
      %v2511 = vadd.f32 0.0, %v2510
      %v2512 = vpop.f32.mrf.mxu0
      %v2513 = vadd.f32 0.0, %v2512
      %2514 = vmatmul.bf16.gmra.mxu0 %v479
      %v2515 = vpop.f32.mrf.mxu0
      %v2516 = vadd.f32 0.0, %v2515
      %v2517 = vpop.f32.mrf.mxu0
      %v2518 = vadd.f32 0.0, %v2517
      %2519 = vmatmul.bf16.gmra.mxu0 %v482
      %v2520 = vpop.f32.mrf.mxu0
      %v2521 = vadd.f32 0.0, %v2520
      %v2522 = vpop.f32.mrf.mxu0
      %v2523 = vadd.f32 0.0, %v2522
      %2524 = vmatmul.bf16.gmra.mxu0 %v485
      %v2525 = vpop.f32.mrf.mxu0
      %v2526 = vadd.f32 0.0, %v2525
      %v2527 = vpop.f32.mrf.mxu0
      %v2528 = vadd.f32 0.0, %v2527
      %2529 = vmatmul.bf16.gmra.mxu0 %v488
      %v2530 = vpop.f32.mrf.mxu0
      %v2531 = vadd.f32 0.0, %v2530
      %v2532 = vpop.f32.mrf.mxu0
      %v2533 = vadd.f32 0.0, %v2532
      %2534 = vmatmul.bf16.gmra.mxu0 %v491
      %v2535 = vpop.f32.mrf.mxu0
      %v2536 = vadd.f32 0.0, %v2535
      %v2537 = vpop.f32.mrf.mxu0
      %v2538 = vadd.f32 0.0, %v2537
      %2539 = vmatmul.bf16.gmra.mxu0 %v494
      %v2540 = vpop.f32.mrf.mxu0
      %v2541 = vadd.f32 0.0, %v2540
      %v2542 = vpop.f32.mrf.mxu0
      %v2543 = vadd.f32 0.0, %v2542
      %2544 = vmatmul.bf16.gmra.mxu0 %v497
      %v2545 = vpop.f32.mrf.mxu0
      %v2546 = vadd.f32 0.0, %v2545
      %v2547 = vpop.f32.mrf.mxu0
      %v2548 = vadd.f32 0.0, %v2547
      %2549 = vmatmul.bf16.gmra.mxu0 %v500
      %v2550 = vpop.f32.mrf.mxu0
      %v2551 = vadd.f32 0.0, %v2550
      %v2552 = vpop.f32.mrf.mxu0
      %v2553 = vadd.f32 0.0, %v2552
      %2554 = vmatmul.bf16.gmra.mxu0 %v503
      %v2555 = vpop.f32.mrf.mxu0
      %v2556 = vadd.f32 0.0, %v2555
      %v2557 = vpop.f32.mrf.mxu0
      %v2558 = vadd.f32 0.0, %v2557
      %2559 = vmatmul.bf16.gmra.mxu0 %v1744
      %v2560 = vpop.f32.mrf.mxu0
      %v2561 = vadd.f32 0.0, %v2560
      %v2562 = vpop.f32.mrf.mxu0
      %v2563 = vadd.f32 0.0, %v2562
      %2564 = vmatmul.bf16.gmra.mxu0 %v2486
      %v2565 = vpop.f32.mrf.mxu0
      %v2566 = vadd.f32 0.0, %v2565
      %v2567 = vpop.f32.mrf.mxu0
      %v2568 = vadd.f32 0.0, %v2567
      %2569 = vdwg.mxu0
      %v2570 = vadd.f32 %v2455, %v2501
      %v2571 = vadd.f32 %v2456, %v2503
      %v2572 = vadd.f32 %v2457, %v2506
      %v2573 = vadd.f32 %v2458, %v2508
      %v2574 = vadd.f32 %v2459, %v2511
      %v2575 = vadd.f32 %v2460, %v2513
      %v2576 = vadd.f32 %v2461, %v2516
      %v2577 = vadd.f32 %v2462, %v2518
      %v2578 = vadd.f32 %v2463, %v2521
      %v2579 = vadd.f32 %v2464, %v2523
      %v2580 = vadd.f32 %v2465, %v2526
      %v2581 = vadd.f32 %v2466, %v2528
      %v2582 = vadd.f32 %v2467, %v2531
      %v2583 = vadd.f32 %v2468, %v2533
      %v2584 = vadd.f32 %v2469, %v2536
      %v2585 = vadd.f32 %v2470, %v2538
      %v2586 = vadd.f32 %v2471, %v2541
      %v2587 = vadd.f32 %v2472, %v2543
      %v2588 = vadd.f32 %v2473, %v2546
      %v2589 = vadd.f32 %v2474, %v2548
      %v2590 = vadd.f32 %v2475, %v2551
      %v2591 = vadd.f32 %v2476, %v2553
      %v2592 = vadd.f32 %v2477, %v2556
      %v2593 = vadd.f32 %v2478, %v2558
      %v2594 = vadd.f32 %v2479, %v2561
      %v2595 = vadd.f32 %v2480, %v2563
      %v2596 = vadd.f32 %v2481, %v2566
      %v2597 = vadd.f32 %v2482, %v2568
      %v2598 = vpack.c.bf16 %v365, %v365
      %v2599 = vpack.c.bf16 %v431, %v431
      %s2600 = scalar_lea.vmem %s2, 14
      %v2601 = vld [vmem:[%s2600] sm:$0x3]
      %v2602 = vshll.u32 %v2366, 16
      %v2604 = vrot.slane %v2602, 1
      %v2605 = vsel %vm716, %v1866, %v2604
      %v2606 = vshrl.u32 %v2366, 16
      %v2608 = vor.u32 %v2606, %v2604
      %v2610 = vshll.u32 %v2598, 16
      %v2612 = vrot.slane %v2610, 1
      %v2613 = vsel %vm716, %v2608, %v2612
      %v2615 = vsel %vm462, %v2605, 0
      %v2618 = vsel %vm462, %v2613, 0
      %v2621 = vsel %vm505, %v2601, 0
      %2623 = vmatpush.bf16.msra.mxu0 0
      %2624 = vmatpush.bf16.msra.mxu0 0
      %2625 = vmatpush.bf16.msra.mxu0 0
      %2626 = vmatpush.bf16.msra.mxu0 0
      %2627 = vmatpush.bf16.msra.mxu0 0
      %2628 = vmatpush.bf16.msra.mxu0 0
      %2629 = vmatpush.bf16.msra.mxu0 0
      %2630 = vmatpush.bf16.msra.mxu0 %v2621
      %2631 = vmatmul.bf16.gmra.mxu0 %v826
      %v2632 = vpop.f32.mrf.mxu0
      %v2633 = vadd.f32 0.0, %v2632
      %v2634 = vpop.f32.mrf.mxu0
      %v2635 = vadd.f32 0.0, %v2634
      %2636 = vmatmul.bf16.gmra.mxu0 %v829
      %v2637 = vpop.f32.mrf.mxu0
      %v2638 = vadd.f32 0.0, %v2637
      %v2639 = vpop.f32.mrf.mxu0
      %v2640 = vadd.f32 0.0, %v2639
      %2641 = vmatmul.bf16.gmra.mxu0 %v832
      %v2642 = vpop.f32.mrf.mxu0
      %v2643 = vadd.f32 0.0, %v2642
      %v2644 = vpop.f32.mrf.mxu0
      %v2645 = vadd.f32 0.0, %v2644
      %2646 = vmatmul.bf16.gmra.mxu0 %v835
      %v2647 = vpop.f32.mrf.mxu0
      %v2648 = vadd.f32 0.0, %v2647
      %v2649 = vpop.f32.mrf.mxu0
      %v2650 = vadd.f32 0.0, %v2649
      %2651 = vmatmul.bf16.gmra.mxu0 %v838
      %v2652 = vpop.f32.mrf.mxu0
      %v2653 = vadd.f32 0.0, %v2652
      %v2654 = vpop.f32.mrf.mxu0
      %v2655 = vadd.f32 0.0, %v2654
      %2656 = vmatmul.bf16.gmra.mxu0 %v841
      %v2657 = vpop.f32.mrf.mxu0
      %v2658 = vadd.f32 0.0, %v2657
      %v2659 = vpop.f32.mrf.mxu0
      %v2660 = vadd.f32 0.0, %v2659
      %2661 = vmatmul.bf16.gmra.mxu0 %v844
      %v2662 = vpop.f32.mrf.mxu0
      %v2663 = vadd.f32 0.0, %v2662
      %v2664 = vpop.f32.mrf.mxu0
      %v2665 = vadd.f32 0.0, %v2664
      %2666 = vmatmul.bf16.gmra.mxu0 %v847
      %v2667 = vpop.f32.mrf.mxu0
      %v2668 = vadd.f32 0.0, %v2667
      %v2669 = vpop.f32.mrf.mxu0
      %v2670 = vadd.f32 0.0, %v2669
      %2671 = vmatmul.bf16.gmra.mxu0 %v850
      %v2672 = vpop.f32.mrf.mxu0
      %v2673 = vadd.f32 0.0, %v2672
      %v2674 = vpop.f32.mrf.mxu0
      %v2675 = vadd.f32 0.0, %v2674
      %2676 = vmatmul.bf16.gmra.mxu0 %v853
      %v2677 = vpop.f32.mrf.mxu0
      %v2678 = vadd.f32 0.0, %v2677
      %v2679 = vpop.f32.mrf.mxu0
      %v2680 = vadd.f32 0.0, %v2679
      %2681 = vmatmul.bf16.gmra.mxu0 %v856
      %v2682 = vpop.f32.mrf.mxu0
      %v2683 = vadd.f32 0.0, %v2682
      %v2684 = vpop.f32.mrf.mxu0
      %v2685 = vadd.f32 0.0, %v2684
      %2686 = vmatmul.bf16.gmra.mxu0 %v1873
      %v2687 = vpop.f32.mrf.mxu0
      %v2688 = vadd.f32 0.0, %v2687
      %v2689 = vpop.f32.mrf.mxu0
      %v2690 = vadd.f32 0.0, %v2689
      %2691 = vmatmul.bf16.gmra.mxu0 %v2615
      %v2692 = vpop.f32.mrf.mxu0
      %v2693 = vadd.f32 0.0, %v2692
      %v2694 = vpop.f32.mrf.mxu0
      %v2695 = vadd.f32 0.0, %v2694
      %2696 = vmatmul.bf16.gmra.mxu0 %v2618
      %v2697 = vpop.f32.mrf.mxu0
      %v2698 = vadd.f32 0.0, %v2697
      %v2699 = vpop.f32.mrf.mxu0
      %v2700 = vadd.f32 0.0, %v2699
      %2701 = vdwg.mxu0
      %v2702 = vadd.f32 %v2570, %v2633
      %v2703 = vadd.f32 %v2571, %v2635
      %v2704 = vadd.f32 %v2572, %v2638
      %v2705 = vadd.f32 %v2573, %v2640
      %v2706 = vadd.f32 %v2574, %v2643
      %v2707 = vadd.f32 %v2575, %v2645
      %v2708 = vadd.f32 %v2576, %v2648
      %v2709 = vadd.f32 %v2577, %v2650
      %v2710 = vadd.f32 %v2578, %v2653
      %v2711 = vadd.f32 %v2579, %v2655
      %v2712 = vadd.f32 %v2580, %v2658
      %v2713 = vadd.f32 %v2581, %v2660
      %v2714 = vadd.f32 %v2582, %v2663
      %v2715 = vadd.f32 %v2583, %v2665
      %v2716 = vadd.f32 %v2584, %v2668
      %v2717 = vadd.f32 %v2585, %v2670
      %v2718 = vadd.f32 %v2586, %v2673
      %v2719 = vadd.f32 %v2587, %v2675
      %v2720 = vadd.f32 %v2588, %v2678
      %v2721 = vadd.f32 %v2589, %v2680
      %v2722 = vadd.f32 %v2590, %v2683
      %v2723 = vadd.f32 %v2591, %v2685
      %v2724 = vadd.f32 %v2592, %v2688
      %v2725 = vadd.f32 %v2593, %v2690
      %v2726 = vadd.f32 %v2594, %v2693
      %v2727 = vadd.f32 %v2595, %v2695
      %v2728 = vadd.f32 %v2596, %v2698
      %v2729 = vadd.f32 %v2597, %v2700
      %s2730 = scalar_lea.vmem %s3, 14
      %v2731 = vld [vmem:[%s2730] sm:$0x3]
      %v2732 = vshll.u32 %v2367, 16
      %v2734 = vrot.slane %v2732, 1
      %v2735 = vsel %vm716, %v1996, %v2734
      %v2736 = vshrl.u32 %v2367, 16
      %v2738 = vor.u32 %v2736, %v2734
      %v2740 = vshll.u32 %v2599, 16
      %v2742 = vrot.slane %v2740, 1
      %v2743 = vsel %vm716, %v2738, %v2742
      %v2745 = vsel %vm462, %v2735, 0
      %v2748 = vsel %vm462, %v2743, 0
      %v2751 = vsel %vm505, %v2731, 0
      %2753 = vmatpush.bf16.msra.mxu0 0
      %2754 = vmatpush.bf16.msra.mxu0 0
      %2755 = vmatpush.bf16.msra.mxu0 0
      %2756 = vmatpush.bf16.msra.mxu0 0
      %2757 = vmatpush.bf16.msra.mxu0 0
      %2758 = vmatpush.bf16.msra.mxu0 0
      %2759 = vmatpush.bf16.msra.mxu0 0
      %2760 = vmatpush.bf16.msra.mxu0 %v2751
      %2761 = vmatmul.bf16.gmra.mxu0 %v1082
      %v2762 = vpop.f32.mrf.mxu0
      %v2763 = vadd.f32 0.0, %v2762
      %v2764 = vpop.f32.mrf.mxu0
      %v2765 = vadd.f32 0.0, %v2764
      %2766 = vmatmul.bf16.gmra.mxu0 %v1085
      %v2767 = vpop.f32.mrf.mxu0
      %v2768 = vadd.f32 0.0, %v2767
      %v2769 = vpop.f32.mrf.mxu0
      %v2770 = vadd.f32 0.0, %v2769
      %2771 = vmatmul.bf16.gmra.mxu0 %v1088
      %v2772 = vpop.f32.mrf.mxu0
      %v2773 = vadd.f32 0.0, %v2772
      %v2774 = vpop.f32.mrf.mxu0
      %v2775 = vadd.f32 0.0, %v2774
      %2776 = vmatmul.bf16.gmra.mxu0 %v1091
      %v2777 = vpop.f32.mrf.mxu0
      %v2778 = vadd.f32 0.0, %v2777
      %v2779 = vpop.f32.mrf.mxu0
      %v2780 = vadd.f32 0.0, %v2779
      %2781 = vmatmul.bf16.gmra.mxu0 %v1094
      %v2782 = vpop.f32.mrf.mxu0
      %v2783 = vadd.f32 0.0, %v2782
      %v2784 = vpop.f32.mrf.mxu0
      %v2785 = vadd.f32 0.0, %v2784
      %2786 = vmatmul.bf16.gmra.mxu0 %v1097
      %v2787 = vpop.f32.mrf.mxu0
      %v2788 = vadd.f32 0.0, %v2787
      %v2789 = vpop.f32.mrf.mxu0
      %v2790 = vadd.f32 0.0, %v2789
      %2791 = vmatmul.bf16.gmra.mxu0 %v1100
      %v2792 = vpop.f32.mrf.mxu0
      %v2793 = vadd.f32 0.0, %v2792
      %v2794 = vpop.f32.mrf.mxu0
      %v2795 = vadd.f32 0.0, %v2794
      %2796 = vmatmul.bf16.gmra.mxu0 %v1103
      %v2797 = vpop.f32.mrf.mxu0
      %v2798 = vadd.f32 0.0, %v2797
      %v2799 = vpop.f32.mrf.mxu0
      %v2800 = vadd.f32 0.0, %v2799
      %2801 = vmatmul.bf16.gmra.mxu0 %v1106
      %v2802 = vpop.f32.mrf.mxu0
      %v2803 = vadd.f32 0.0, %v2802
      %v2804 = vpop.f32.mrf.mxu0
      %v2805 = vadd.f32 0.0, %v2804
      %2806 = vmatmul.bf16.gmra.mxu0 %v1109
      %v2807 = vpop.f32.mrf.mxu0
      %v2808 = vadd.f32 0.0, %v2807
      %v2809 = vpop.f32.mrf.mxu0
      %v2810 = vadd.f32 0.0, %v2809
      %2811 = vmatmul.bf16.gmra.mxu0 %v1112
      %v2812 = vpop.f32.mrf.mxu0
      %v2813 = vadd.f32 0.0, %v2812
      %v2814 = vpop.f32.mrf.mxu0
      %v2815 = vadd.f32 0.0, %v2814
      %2816 = vmatmul.bf16.gmra.mxu0 %v2003
      %v2817 = vpop.f32.mrf.mxu0
      %v2818 = vadd.f32 0.0, %v2817
      %v2819 = vpop.f32.mrf.mxu0
      %v2820 = vadd.f32 0.0, %v2819
      %2821 = vmatmul.bf16.gmra.mxu0 %v2745
      %v2822 = vpop.f32.mrf.mxu0
      %v2823 = vadd.f32 0.0, %v2822
      %v2824 = vpop.f32.mrf.mxu0
      %v2825 = vadd.f32 0.0, %v2824
      %2826 = vmatmul.bf16.gmra.mxu0 %v2748
      %v2827 = vpop.f32.mrf.mxu0
      %v2828 = vadd.f32 0.0, %v2827
      %v2829 = vpop.f32.mrf.mxu0
      %v2830 = vadd.f32 0.0, %v2829
      %2831 = vdwg.mxu0
      %v2832 = vadd.f32 %v2702, %v2763
      %v2833 = vadd.f32 %v2703, %v2765
      %v2834 = vadd.f32 %v2704, %v2768
      %v2835 = vadd.f32 %v2705, %v2770
      %v2836 = vadd.f32 %v2706, %v2773
      %v2837 = vadd.f32 %v2707, %v2775
      %v2838 = vadd.f32 %v2708, %v2778
      %v2839 = vadd.f32 %v2709, %v2780
      %v2840 = vadd.f32 %v2710, %v2783
      %v2841 = vadd.f32 %v2711, %v2785
      %v2842 = vadd.f32 %v2712, %v2788
      %v2843 = vadd.f32 %v2713, %v2790
      %v2844 = vadd.f32 %v2714, %v2793
      %v2845 = vadd.f32 %v2715, %v2795
      %v2846 = vadd.f32 %v2716, %v2798
      %v2847 = vadd.f32 %v2717, %v2800
      %v2848 = vadd.f32 %v2718, %v2803
      %v2849 = vadd.f32 %v2719, %v2805
      %v2850 = vadd.f32 %v2720, %v2808
      %v2851 = vadd.f32 %v2721, %v2810
      %v2852 = vadd.f32 %v2722, %v2813
      %v2853 = vadd.f32 %v2723, %v2815
      %v2854 = vadd.f32 %v2724, %v2818
      %v2855 = vadd.f32 %v2725, %v2820
      %v2856 = vadd.f32 %v2726, %v2823
      %v2857 = vadd.f32 %v2727, %v2825
      %v2858 = vadd.f32 %v2728, %v2828
      %v2859 = vadd.f32 %v2729, %v2830
      %s2860 = scalar_lea.vmem %s2, 16
      %v2861 = vld [vmem:[%s2860] sm:$0x3]
      %v2864 = vrot.slane %v2366, 1
      %v2865 = vsel %vm1244, %v2122, %v2864
      %v2866 = vrot.slane %v2598, 1
      %v2867 = vsel %vm1244, %v2864, %v2866
      %v2869 = vsel %vm462, %v2865, 0
      %v2872 = vsel %vm462, %v2867, 0
      %v2875 = vsel %vm505, %v2861, 0
      %2877 = vmatpush.bf16.msra.mxu0 0
      %2878 = vmatpush.bf16.msra.mxu0 0
      %2879 = vmatpush.bf16.msra.mxu0 0
      %2880 = vmatpush.bf16.msra.mxu0 0
      %2881 = vmatpush.bf16.msra.mxu0 0
      %2882 = vmatpush.bf16.msra.mxu0 0
      %2883 = vmatpush.bf16.msra.mxu0 0
      %2884 = vmatpush.bf16.msra.mxu0 %v2875
      %2885 = vmatmul.bf16.gmra.mxu0 %v1281
      %v2886 = vpop.f32.mrf.mxu0
      %v2887 = vadd.f32 0.0, %v2886
      %v2888 = vpop.f32.mrf.mxu0
      %v2889 = vadd.f32 0.0, %v2888
      %2890 = vmatmul.bf16.gmra.mxu0 %v1284
      %v2891 = vpop.f32.mrf.mxu0
      %v2892 = vadd.f32 0.0, %v2891
      %v2893 = vpop.f32.mrf.mxu0
      %v2894 = vadd.f32 0.0, %v2893
      %2895 = vmatmul.bf16.gmra.mxu0 %v1287
      %v2896 = vpop.f32.mrf.mxu0
      %v2897 = vadd.f32 0.0, %v2896
      %v2898 = vpop.f32.mrf.mxu0
      %v2899 = vadd.f32 0.0, %v2898
      %2900 = vmatmul.bf16.gmra.mxu0 %v1290
      %v2901 = vpop.f32.mrf.mxu0
      %v2902 = vadd.f32 0.0, %v2901
      %v2903 = vpop.f32.mrf.mxu0
      %v2904 = vadd.f32 0.0, %v2903
      %2905 = vmatmul.bf16.gmra.mxu0 %v1293
      %v2906 = vpop.f32.mrf.mxu0
      %v2907 = vadd.f32 0.0, %v2906
      %v2908 = vpop.f32.mrf.mxu0
      %v2909 = vadd.f32 0.0, %v2908
      %2910 = vmatmul.bf16.gmra.mxu0 %v1296
      %v2911 = vpop.f32.mrf.mxu0
      %v2912 = vadd.f32 0.0, %v2911
      %v2913 = vpop.f32.mrf.mxu0
      %v2914 = vadd.f32 0.0, %v2913
      %2915 = vmatmul.bf16.gmra.mxu0 %v1299
      %v2916 = vpop.f32.mrf.mxu0
      %v2917 = vadd.f32 0.0, %v2916
      %v2918 = vpop.f32.mrf.mxu0
      %v2919 = vadd.f32 0.0, %v2918
      %2920 = vmatmul.bf16.gmra.mxu0 %v1302
      %v2921 = vpop.f32.mrf.mxu0
      %v2922 = vadd.f32 0.0, %v2921
      %v2923 = vpop.f32.mrf.mxu0
      %v2924 = vadd.f32 0.0, %v2923
      %2925 = vmatmul.bf16.gmra.mxu0 %v1305
      %v2926 = vpop.f32.mrf.mxu0
      %v2927 = vadd.f32 0.0, %v2926
      %v2928 = vpop.f32.mrf.mxu0
      %v2929 = vadd.f32 0.0, %v2928
      %2930 = vmatmul.bf16.gmra.mxu0 %v1308
      %v2931 = vpop.f32.mrf.mxu0
      %v2932 = vadd.f32 0.0, %v2931
      %v2933 = vpop.f32.mrf.mxu0
      %v2934 = vadd.f32 0.0, %v2933
      %2935 = vmatmul.bf16.gmra.mxu0 %v1311
      %v2936 = vpop.f32.mrf.mxu0
      %v2937 = vadd.f32 0.0, %v2936
      %v2938 = vpop.f32.mrf.mxu0
      %v2939 = vadd.f32 0.0, %v2938
      %2940 = vmatmul.bf16.gmra.mxu0 %v2127
      %v2941 = vpop.f32.mrf.mxu0
      %v2942 = vadd.f32 0.0, %v2941
      %v2943 = vpop.f32.mrf.mxu0
      %v2944 = vadd.f32 0.0, %v2943
      %2945 = vmatmul.bf16.gmra.mxu0 %v2869
      %v2946 = vpop.f32.mrf.mxu0
      %v2947 = vadd.f32 0.0, %v2946
      %v2948 = vpop.f32.mrf.mxu0
      %v2949 = vadd.f32 0.0, %v2948
      %2950 = vmatmul.bf16.gmra.mxu0 %v2872
      %v2951 = vpop.f32.mrf.mxu0
      %v2952 = vadd.f32 0.0, %v2951
      %v2953 = vpop.f32.mrf.mxu0
      %v2954 = vadd.f32 0.0, %v2953
      %2955 = vdwg.mxu0
      %v2956 = vadd.f32 %v2832, %v2887
      %v2957 = vadd.f32 %v2833, %v2889
      %v2958 = vadd.f32 %v2834, %v2892
      %v2959 = vadd.f32 %v2835, %v2894
      %v2960 = vadd.f32 %v2836, %v2897
      %v2961 = vadd.f32 %v2837, %v2899
      %v2962 = vadd.f32 %v2838, %v2902
      %v2963 = vadd.f32 %v2839, %v2904
      %v2964 = vadd.f32 %v2840, %v2907
      %v2965 = vadd.f32 %v2841, %v2909
      %v2966 = vadd.f32 %v2842, %v2912
      %v2967 = vadd.f32 %v2843, %v2914
      %v2968 = vadd.f32 %v2844, %v2917
      %v2969 = vadd.f32 %v2845, %v2919
      %v2970 = vadd.f32 %v2846, %v2922
      %v2971 = vadd.f32 %v2847, %v2924
      %v2972 = vadd.f32 %v2848, %v2927
      %v2973 = vadd.f32 %v2849, %v2929
      %v2974 = vadd.f32 %v2850, %v2932
      %v2975 = vadd.f32 %v2851, %v2934
      %v2976 = vadd.f32 %v2852, %v2937
      %v2977 = vadd.f32 %v2853, %v2939
      %v2978 = vadd.f32 %v2854, %v2942
      %v2979 = vadd.f32 %v2855, %v2944
      %v2980 = vadd.f32 %v2856, %v2947
      %v2981 = vadd.f32 %v2857, %v2949
      %v2982 = vadd.f32 %v2858, %v2952
      %v2983 = vadd.f32 %v2859, %v2954
      %s2984 = scalar_lea.vmem %s3, 16
      %v2985 = vld [vmem:[%s2984] sm:$0x3]
      %v2988 = vrot.slane %v2367, 1
      %v2989 = vsel %vm1244, %v2246, %v2988
      %v2990 = vrot.slane %v2599, 1
      %v2991 = vsel %vm1244, %v2988, %v2990
      %v2993 = vsel %vm462, %v2989, 0
      %v2996 = vsel %vm462, %v2991, 0
      %v2999 = vsel %vm505, %v2985, 0
      %3001 = vmatpush.bf16.msra.mxu0 0
      %3002 = vmatpush.bf16.msra.mxu0 0
      %3003 = vmatpush.bf16.msra.mxu0 0
      %3004 = vmatpush.bf16.msra.mxu0 0
      %3005 = vmatpush.bf16.msra.mxu0 0
      %3006 = vmatpush.bf16.msra.mxu0 0
      %3007 = vmatpush.bf16.msra.mxu0 0
      %3008 = vmatpush.bf16.msra.mxu0 %v2999
      %3009 = vmatmul.bf16.gmra.mxu0 %v1479
      %v3010 = vpop.f32.mrf.mxu0
      %v3011 = vadd.f32 0.0, %v3010
      %v3012 = vpop.f32.mrf.mxu0
      %v3013 = vadd.f32 0.0, %v3012
      %3014 = vmatmul.bf16.gmra.mxu0 %v1482
      %v3015 = vpop.f32.mrf.mxu0
      %v3016 = vadd.f32 0.0, %v3015
      %v3017 = vpop.f32.mrf.mxu0
      %v3018 = vadd.f32 0.0, %v3017
      %3019 = vmatmul.bf16.gmra.mxu0 %v1485
      %v3020 = vpop.f32.mrf.mxu0
      %v3021 = vadd.f32 0.0, %v3020
      %v3022 = vpop.f32.mrf.mxu0
      %v3023 = vadd.f32 0.0, %v3022
      %3024 = vmatmul.bf16.gmra.mxu0 %v1488
      %v3025 = vpop.f32.mrf.mxu0
      %v3026 = vadd.f32 0.0, %v3025
      %v3027 = vpop.f32.mrf.mxu0
      %v3028 = vadd.f32 0.0, %v3027
      %3029 = vmatmul.bf16.gmra.mxu0 %v1491
      %v3030 = vpop.f32.mrf.mxu0
      %v3031 = vadd.f32 0.0, %v3030
      %v3032 = vpop.f32.mrf.mxu0
      %v3033 = vadd.f32 0.0, %v3032
      %3034 = vmatmul.bf16.gmra.mxu0 %v1494
      %v3035 = vpop.f32.mrf.mxu0
      %v3036 = vadd.f32 0.0, %v3035
      %v3037 = vpop.f32.mrf.mxu0
      %v3038 = vadd.f32 0.0, %v3037
      %3039 = vmatmul.bf16.gmra.mxu0 %v1497
      %v3040 = vpop.f32.mrf.mxu0
      %v3041 = vadd.f32 0.0, %v3040
      %v3042 = vpop.f32.mrf.mxu0
      %v3043 = vadd.f32 0.0, %v3042
      %3044 = vmatmul.bf16.gmra.mxu0 %v1500
      %v3045 = vpop.f32.mrf.mxu0
      %v3046 = vadd.f32 0.0, %v3045
      %v3047 = vpop.f32.mrf.mxu0
      %v3048 = vadd.f32 0.0, %v3047
      %3049 = vmatmul.bf16.gmra.mxu0 %v1503
      %v3050 = vpop.f32.mrf.mxu0
      %v3051 = vadd.f32 0.0, %v3050
      %v3052 = vpop.f32.mrf.mxu0
      %v3053 = vadd.f32 0.0, %v3052
      %3054 = vmatmul.bf16.gmra.mxu0 %v1506
      %v3055 = vpop.f32.mrf.mxu0
      %v3056 = vadd.f32 0.0, %v3055
      %v3057 = vpop.f32.mrf.mxu0
      %v3058 = vadd.f32 0.0, %v3057
      %3059 = vmatmul.bf16.gmra.mxu0 %v1509
      %v3060 = vpop.f32.mrf.mxu0
      %v3061 = vadd.f32 0.0, %v3060
      %v3062 = vpop.f32.mrf.mxu0
      %v3063 = vadd.f32 0.0, %v3062
      %3064 = vmatmul.bf16.gmra.mxu0 %v2251
      %v3065 = vpop.f32.mrf.mxu0
      %v3066 = vadd.f32 0.0, %v3065
      %v3067 = vpop.f32.mrf.mxu0
      %v3068 = vadd.f32 0.0, %v3067
      %3069 = vmatmul.bf16.gmra.mxu0 %v2993
      %v3070 = vpop.f32.mrf.mxu0
      %v3071 = vadd.f32 0.0, %v3070
      %v3072 = vpop.f32.mrf.mxu0
      %v3073 = vadd.f32 0.0, %v3072
      %3074 = vmatmul.bf16.gmra.mxu0 %v2996
      %v3075 = vpop.f32.mrf.mxu0
      %v3076 = vadd.f32 0.0, %v3075
      %v3077 = vpop.f32.mrf.mxu0
      %v3078 = vadd.f32 0.0, %v3077
      %3079 = vdwg.mxu0
      %v3080 = vadd.f32 %v2956, %v3011
      %v3081 = vadd.f32 %v2957, %v3013
      %v3082 = vadd.f32 %v2958, %v3016
      %v3083 = vadd.f32 %v2959, %v3018
      %v3084 = vadd.f32 %v2960, %v3021
      %v3085 = vadd.f32 %v2961, %v3023
      %v3086 = vadd.f32 %v2962, %v3026
      %v3087 = vadd.f32 %v2963, %v3028
      %v3088 = vadd.f32 %v2964, %v3031
      %v3089 = vadd.f32 %v2965, %v3033
      %v3090 = vadd.f32 %v2966, %v3036
      %v3091 = vadd.f32 %v2967, %v3038
      %v3092 = vadd.f32 %v2968, %v3041
      %v3093 = vadd.f32 %v2969, %v3043
      %v3094 = vadd.f32 %v2970, %v3046
      %v3095 = vadd.f32 %v2971, %v3048
      %v3096 = vadd.f32 %v2972, %v3051
      %v3097 = vadd.f32 %v2973, %v3053
      %v3098 = vadd.f32 %v2974, %v3056
      %v3099 = vadd.f32 %v2975, %v3058
      %v3100 = vadd.f32 %v2976, %v3061
      %v3101 = vadd.f32 %v2977, %v3063
      %v3102 = vadd.f32 %v2978, %v3066
      %v3103 = vadd.f32 %v2979, %v3068
      %v3104 = vadd.f32 %v2980, %v3071
      %v3105 = vadd.f32 %v2981, %v3073
      %v3106 = vadd.f32 %v2982, %v3076
      %v3107 = vadd.f32 %v2983, %v3078
      %v3108 = vld [vmem:[%s4] sm:$0x1]
      %v3110 = vperm.slane %v3108, 0
      %v3112 = vadd.f32 %v3080, %v3110
      %v3113 = vadd.f32 %v3081, %v3110
      %v3114 = vadd.f32 %v3082, %v3110
      %v3115 = vadd.f32 %v3083, %v3110
      %v3116 = vadd.f32 %v3084, %v3110
      %v3117 = vadd.f32 %v3085, %v3110
      %v3118 = vadd.f32 %v3086, %v3110
      %v3119 = vadd.f32 %v3087, %v3110
      %v3120 = vadd.f32 %v3088, %v3110
      %v3121 = vadd.f32 %v3089, %v3110
      %v3122 = vadd.f32 %v3090, %v3110
      %v3123 = vadd.f32 %v3091, %v3110
      %v3124 = vadd.f32 %v3092, %v3110
      %v3125 = vadd.f32 %v3093, %v3110
      %v3126 = vadd.f32 %v3094, %v3110
      %v3127 = vadd.f32 %v3095, %v3110
      %v3128 = vadd.f32 %v3096, %v3110
      %v3129 = vadd.f32 %v3097, %v3110
      %v3130 = vadd.f32 %v3098, %v3110
      %v3131 = vadd.f32 %v3099, %v3110
      %v3132 = vadd.f32 %v3100, %v3110
      %v3133 = vadd.f32 %v3101, %v3110
      %v3134 = vadd.f32 %v3102, %v3110
      %v3135 = vadd.f32 %v3103, %v3110
      %v3136 = vadd.f32 %v3104, %v3110
      %v3137 = vadd.f32 %v3105, %v3110
      %v3138 = vadd.f32 %v3106, %v3110
      %v3139 = vadd.f32 %v3107, %v3110
      %v3140 = vmax.f32 %v3112, 0.0
      %v3141 = vmax.f32 %v3113, 0.0
      %v3142 = vmax.f32 %v3114, 0.0
      %v3143 = vmax.f32 %v3115, 0.0
      %v3144 = vmax.f32 %v3116, 0.0
      %v3145 = vmax.f32 %v3117, 0.0
      %v3146 = vmax.f32 %v3118, 0.0
      %v3147 = vmax.f32 %v3119, 0.0
      %v3148 = vmax.f32 %v3120, 0.0
      %v3149 = vmax.f32 %v3121, 0.0
      %v3150 = vmax.f32 %v3122, 0.0
      %v3151 = vmax.f32 %v3123, 0.0
      %v3152 = vmax.f32 %v3124, 0.0
      %v3153 = vmax.f32 %v3125, 0.0
      %v3154 = vmax.f32 %v3126, 0.0
      %v3155 = vmax.f32 %v3127, 0.0
      %v3156 = vmax.f32 %v3128, 0.0
      %v3157 = vmax.f32 %v3129, 0.0
      %v3158 = vmax.f32 %v3130, 0.0
      %v3159 = vmax.f32 %v3131, 0.0
      %v3160 = vmax.f32 %v3132, 0.0
      %v3161 = vmax.f32 %v3133, 0.0
      %v3162 = vmax.f32 %v3134, 0.0
      %v3163 = vmax.f32 %v3135, 0.0
      %v3164 = vmax.f32 %v3136, 0.0
      %v3165 = vmax.f32 %v3137, 0.0
      %v3166 = vmax.f32 %v3138, 0.0
      %v3167 = vmax.f32 %v3139, 0.0
      %3168 = vst.msk [vmem:[#allocation2] sm:$0xff] %vm462, 0.0
      %3169 = vst.msk [vmem:[#allocation2 + $0x8] sm:$0xff] %vm462, 0.0
      %3170 = vst.msk [vmem:[#allocation2 + $0x10] sm:$0xff] %vm462, 0.0
      %3171 = vst.msk [vmem:[#allocation2 + $0x18] sm:$0xff] %vm462, 0.0
      %3172 = vst.msk [vmem:[#allocation2 + $0x20] sm:$0xff] %vm462, 0.0
      %3173 = vst.msk [vmem:[#allocation2 + $0x28] sm:$0xff] %vm462, 0.0
      %3174 = vst.msk [vmem:[#allocation2 + $0x30] sm:$0xff] %vm462, 0.0
      %3175 = vst.msk [vmem:[#allocation2 + $0x38] sm:$0xff] %vm462, 0.0
      %3176 = vst.msk [vmem:[#allocation2 + $0x40] sm:$0xff] %vm462, 0.0
      %3177 = vst.msk [vmem:[#allocation2 + $0x48] sm:$0xff] %vm462, 0.0
      %3178 = vst.msk [vmem:[#allocation2 + $0x50] sm:$0xff] %vm462, 0.0
      %3179 = vst.msk [vmem:[#allocation2 + $0x58] sm:$0xff] %vm462, 0.0
      %3180 = vst.msk [vmem:[#allocation2 + $0x60] sm:$0xff] %vm462, 0.0
      %3181 = vst.msk [vmem:[#allocation2 + $0x68] sm:$0xff] %vm462, 0.0
      %3182 = vst.msk [vmem:[#allocation2 + $0x70] sm:$0xff] %vm462, 0.0
      %3183 = vst.msk [vmem:[#allocation2 + $0x78] sm:$0xff] %vm462, 0.0
      %3184 = vst.msk [vmem:[#allocation2 + $0x80] sm:$0xff] %vm462, 0.0
      %3185 = vst.msk [vmem:[#allocation2 + $0x88] sm:$0xff] %vm462, 0.0
      %3186 = vst.msk [vmem:[#allocation2 + $0x90] sm:$0xff] %vm462, 0.0
      %3187 = vst.msk [vmem:[#allocation2 + $0x98] sm:$0xff] %vm462, 0.0
      %3188 = vst.msk [vmem:[#allocation2 + $0xa0] sm:$0xff] %vm462, 0.0
      %3189 = vst.msk [vmem:[#allocation2 + $0xa8] sm:$0xff] %vm462, 0.0
      %3190 = vst.msk [vmem:[#allocation2 + $0xb0] sm:$0xff] %vm462, 0.0
      %3191 = vst.msk [vmem:[#allocation2 + $0xb8] sm:$0xff] %vm462, 0.0
      %3192 = vst.msk [vmem:[#allocation2 + $0xc0] sm:$0xff] %vm462, 0.0
      %3193 = vst.msk [vmem:[#allocation2 + $0xc8] sm:$0xff] %vm462, 0.0
      %3194 = vst.msk [vmem:[#allocation2 + $0xd0] sm:$0xff] %vm462, 0.0
      %3195 = vst.msk [vmem:[#allocation2 + $0xd8] sm:$0xff] %vm462, 0.0
      %3196 = vst.msk [vmem:[#allocation2 + $0xe0] sm:$0xff] %vm462, 0.0
      %3197 = vst.msk [vmem:[#allocation2 + $0xe8] sm:$0xff] %vm462, 0.0
      %3198 = vst.msk [vmem:[#allocation2 + $0xf0] sm:$0xff] %vm462, 0.0
      %3199 = vst.msk [vmem:[#allocation2 + $0xf8] sm:$0xff] %vm462, 0.0
      %3200 = vst.msk [vmem:[#allocation2 + $0x100] sm:$0xff] %vm462, 0.0
      %3201 = vst.msk [vmem:[#allocation2] sm:$0xff] %vm462, %v3140
      %3202 = vst.msk [vmem:[#allocation2 + $0x8] sm:$0xff] %vm462, %v3141
      %3203 = vst.msk [vmem:[#allocation2 + $0x10] sm:$0xff] %vm462, %v3142
      %3204 = vst.msk [vmem:[#allocation2 + $0x18] sm:$0xff] %vm462, %v3143
      %3205 = vst.msk [vmem:[#allocation2 + $0x20] sm:$0xff] %vm462, %v3144
      %3206 = vst.msk [vmem:[#allocation2 + $0x28] sm:$0xff] %vm462, %v3145
      %3207 = vst.msk [vmem:[#allocation2 + $0x30] sm:$0xff] %vm462, %v3146
      %3208 = vst.msk [vmem:[#allocation2 + $0x38] sm:$0xff] %vm462, %v3147
      %3209 = vst.msk [vmem:[#allocation2 + $0x40] sm:$0xff] %vm462, %v3148
      %3210 = vst.msk [vmem:[#allocation2 + $0x48] sm:$0xff] %vm462, %v3149
      %3211 = vst.msk [vmem:[#allocation2 + $0x50] sm:$0xff] %vm462, %v3150
      %3212 = vst.msk [vmem:[#allocation2 + $0x58] sm:$0xff] %vm462, %v3151
      %3213 = vst.msk [vmem:[#allocation2 + $0x60] sm:$0xff] %vm462, %v3152
      %3214 = vst.msk [vmem:[#allocation2 + $0x68] sm:$0xff] %vm462, %v3153
      %3215 = vst.msk [vmem:[#allocation2 + $0x70] sm:$0xff] %vm462, %v3154
      %3216 = vst.msk [vmem:[#allocation2 + $0x78] sm:$0xff] %vm462, %v3155
      %3217 = vst.msk [vmem:[#allocation2 + $0x80] sm:$0xff] %vm462, %v3156
      %3218 = vst.msk [vmem:[#allocation2 + $0x88] sm:$0xff] %vm462, %v3157
      %3219 = vst.msk [vmem:[#allocation2 + $0x90] sm:$0xff] %vm462, %v3158
      %3220 = vst.msk [vmem:[#allocation2 + $0x98] sm:$0xff] %vm462, %v3159
      %3221 = vst.msk [vmem:[#allocation2 + $0xa0] sm:$0xff] %vm462, %v3160
      %3222 = vst.msk [vmem:[#allocation2 + $0xa8] sm:$0xff] %vm462, %v3161
      %3223 = vst.msk [vmem:[#allocation2 + $0xb0] sm:$0xff] %vm462, %v3162
      %3224 = vst.msk [vmem:[#allocation2 + $0xb8] sm:$0xff] %vm462, %v3163
      %3225 = vst.msk [vmem:[#allocation2 + $0xc0] sm:$0xff] %vm462, %v3164
      %3226 = vst.msk [vmem:[#allocation2 + $0xc8] sm:$0xff] %vm462, %v3165
      %3227 = vst.msk [vmem:[#allocation2 + $0xd0] sm:$0xff] %vm462, %v3166
      %3228 = vst.msk [vmem:[#allocation2 + $0xd8] sm:$0xff] %vm462, %v3167
      %v3229 = vld [vmem:[#allocation2] sm:$0xff]
      %v3230 = vld [vmem:[#allocation2 + $0x8] sm:$0xff]
      %v3231 = vld [vmem:[#allocation2 + $0x10] sm:$0xff]
      %v3232 = vld [vmem:[#allocation2 + $0x18] sm:$0xff]
      %v3233 = vld [vmem:[#allocation2 + $0x20] sm:$0xff]
      %v3234 = vld [vmem:[#allocation2 + $0x28] sm:$0xff]
      %v3235 = vld [vmem:[#allocation2 + $0x30] sm:$0xff]
      %v3236 = vld [vmem:[#allocation2 + $0x38] sm:$0xff]
      %v3237 = vld [vmem:[#allocation2 + $0x40] sm:$0xff]
      %v3238 = vld [vmem:[#allocation2 + $0x48] sm:$0xff]
      %v3239 = vld [vmem:[#allocation2 + $0x50] sm:$0xff]
      %v3240 = vld [vmem:[#allocation2 + $0x58] sm:$0xff]
      %v3241 = vld [vmem:[#allocation2 + $0x60] sm:$0xff]
      %v3242 = vld [vmem:[#allocation2 + $0x68] sm:$0xff]
      %v3243 = vld [vmem:[#allocation2 + $0x70] sm:$0xff]
      %v3244 = vld [vmem:[#allocation2 + $0x78] sm:$0xff]
      %v3245 = vld [vmem:[#allocation2 + $0x80] sm:$0xff]
      %v3246 = vld [vmem:[#allocation2 + $0x88] sm:$0xff]
      %v3247 = vld [vmem:[#allocation2 + $0x90] sm:$0xff]
      %v3248 = vld [vmem:[#allocation2 + $0x98] sm:$0xff]
      %v3249 = vld [vmem:[#allocation2 + $0xa0] sm:$0xff]
      %v3250 = vld [vmem:[#allocation2 + $0xa8] sm:$0xff]
      %v3251 = vld [vmem:[#allocation2 + $0xb0] sm:$0xff]
      %v3252 = vld [vmem:[#allocation2 + $0xb8] sm:$0xff]
      %v3253 = vld [vmem:[#allocation2 + $0xc0] sm:$0xff]
      %v3254 = vld [vmem:[#allocation2 + $0xc8] sm:$0xff]
      %v3255 = vld [vmem:[#allocation2 + $0xd0] sm:$0xff]
      %v3256 = vld [vmem:[#allocation2 + $0xd8] sm:$0xff]
      %v3257 = vld [vmem:[#allocation2 + $0xe0] sm:$0xff]
      %v3258 = vpack.c.bf16 %v3230, %v3229
      %v3259 = vpack.c.bf16 %v3232, %v3231
      %v3260 = vpack.c.bf16 %v3234, %v3233
      %v3261 = vpack.c.bf16 %v3236, %v3235
      %v3262 = vpack.c.bf16 %v3238, %v3237
      %v3263 = vpack.c.bf16 %v3240, %v3239
      %v3264 = vpack.c.bf16 %v3242, %v3241
      %v3265 = vpack.c.bf16 %v3244, %v3243
      %v3266 = vpack.c.bf16 %v3246, %v3245
      %v3267 = vpack.c.bf16 %v3248, %v3247
      %v3268 = vpack.c.bf16 %v3250, %v3249
      %v3269 = vpack.c.bf16 %v3252, %v3251
      %v3270 = vld [vmem:[%s5] sm:$0x3]
      %v3271 = vpack.c.bf16 %v3253, %v3253
      %s3272 = scalar_lea.vmem %s5, 2
      %v3273 = vld [vmem:[%s3272] sm:$0x3]
      %v3275 = vshrl.u32 %v3258, 16
      %v3277 = vshll.u32 %v3258, 16
      %v3279 = vrot.slane %v3277, 1
      %v3280 = vor.u32 %v3275, %v3279
      %v3282 = vshll.u32 %v3259, 16
      %v3284 = vrot.slane %v3282, 1
      %v3285 = vsel %vm716, %v3280, %v3284
      %v3286 = vshrl.u32 %v3259, 16
      %v3288 = vor.u32 %v3286, %v3284
      %v3290 = vshll.u32 %v3260, 16
      %v3292 = vrot.slane %v3290, 1
      %v3293 = vsel %vm716, %v3288, %v3292
      %v3294 = vshrl.u32 %v3260, 16
      %v3296 = vor.u32 %v3294, %v3292
      %v3298 = vshll.u32 %v3261, 16
      %v3300 = vrot.slane %v3298, 1
      %v3301 = vsel %vm716, %v3296, %v3300
      %v3302 = vshrl.u32 %v3261, 16
      %v3304 = vor.u32 %v3302, %v3300
      %v3306 = vshll.u32 %v3262, 16
      %v3308 = vrot.slane %v3306, 1
      %v3309 = vsel %vm716, %v3304, %v3308
      %v3310 = vshrl.u32 %v3262, 16
      %v3312 = vor.u32 %v3310, %v3308
      %v3314 = vshll.u32 %v3263, 16
      %v3316 = vrot.slane %v3314, 1
      %v3317 = vsel %vm716, %v3312, %v3316
      %v3318 = vshrl.u32 %v3263, 16
      %v3320 = vor.u32 %v3318, %v3316
      %v3322 = vshll.u32 %v3264, 16
      %v3324 = vrot.slane %v3322, 1
      %v3325 = vsel %vm716, %v3320, %v3324
      %v3326 = vshrl.u32 %v3264, 16
      %v3328 = vor.u32 %v3326, %v3324
      %v3330 = vshll.u32 %v3265, 16
      %v3332 = vrot.slane %v3330, 1
      %v3333 = vsel %vm716, %v3328, %v3332
      %v3334 = vshrl.u32 %v3265, 16
      %v3336 = vor.u32 %v3334, %v3332
      %v3338 = vshll.u32 %v3266, 16
      %v3340 = vrot.slane %v3338, 1
      %v3341 = vsel %vm716, %v3336, %v3340
      %v3342 = vshrl.u32 %v3266, 16
      %v3344 = vor.u32 %v3342, %v3340
      %v3346 = vshll.u32 %v3267, 16
      %v3348 = vrot.slane %v3346, 1
      %v3349 = vsel %vm716, %v3344, %v3348
      %v3350 = vshrl.u32 %v3267, 16
      %v3352 = vor.u32 %v3350, %v3348
      %v3354 = vshll.u32 %v3268, 16
      %v3356 = vrot.slane %v3354, 1
      %v3357 = vsel %vm716, %v3352, %v3356
      %v3358 = vshrl.u32 %v3268, 16
      %v3360 = vor.u32 %v3358, %v3356
      %v3362 = vshll.u32 %v3269, 16
      %v3364 = vrot.slane %v3362, 1
      %v3365 = vsel %vm716, %v3360, %v3364
      %v3366 = vshrl.u32 %v3269, 16
      %v3368 = vor.u32 %v3366, %v3364
      %v3370 = vshll.u32 %v3271, 16
      %v3372 = vrot.slane %v3370, 1
      %v3373 = vsel %vm716, %v3368, %v3372
      %v3375 = vsel %vm462, %v3285, 0
      %v3378 = vsel %vm462, %v3293, 0
      %v3381 = vsel %vm462, %v3301, 0
      %v3384 = vsel %vm462, %v3309, 0
      %v3387 = vsel %vm462, %v3317, 0
      %v3390 = vsel %vm462, %v3325, 0
      %v3393 = vsel %vm462, %v3333, 0
      %v3396 = vsel %vm462, %v3341, 0
      %v3399 = vsel %vm462, %v3349, 0
      %v3402 = vsel %vm462, %v3357, 0
      %v3405 = vsel %vm462, %v3365, 0
      %v3408 = vsel %vm462, %v3373, 0
      %v3411 = vsel %vm505, %v3273, 0
      %3413 = vmatpush.bf16.msra.mxu0 0
      %3414 = vmatpush.bf16.msra.mxu0 0
      %3415 = vmatpush.bf16.msra.mxu0 0
      %3416 = vmatpush.bf16.msra.mxu0 0
      %3417 = vmatpush.bf16.msra.mxu0 0
      %3418 = vmatpush.bf16.msra.mxu0 0
      %3419 = vmatpush.bf16.msra.mxu0 0
      %3420 = vmatpush.bf16.msra.mxu0 %v3411
      %3421 = vmatmul.bf16.gmra.mxu0 %v3375
      %v3422 = vpop.f32.mrf.mxu0
      %v3423 = vadd.f32 0.0, %v3422
      %v3424 = vpop.f32.mrf.mxu0
      %v3425 = vadd.f32 0.0, %v3424
      %3426 = vmatmul.bf16.gmra.mxu0 %v3378
      %v3427 = vpop.f32.mrf.mxu0
      %v3428 = vadd.f32 0.0, %v3427
      %v3429 = vpop.f32.mrf.mxu0
      %v3430 = vadd.f32 0.0, %v3429
      %3431 = vmatmul.bf16.gmra.mxu0 %v3381
      %v3432 = vpop.f32.mrf.mxu0
      %v3433 = vadd.f32 0.0, %v3432
      %v3434 = vpop.f32.mrf.mxu0
      %v3435 = vadd.f32 0.0, %v3434
      %3436 = vmatmul.bf16.gmra.mxu0 %v3384
      %v3437 = vpop.f32.mrf.mxu0
      %v3438 = vadd.f32 0.0, %v3437
      %v3439 = vpop.f32.mrf.mxu0
      %v3440 = vadd.f32 0.0, %v3439
      %3441 = vmatmul.bf16.gmra.mxu0 %v3387
      %v3442 = vpop.f32.mrf.mxu0
      %v3443 = vadd.f32 0.0, %v3442
      %v3444 = vpop.f32.mrf.mxu0
      %v3445 = vadd.f32 0.0, %v3444
      %3446 = vmatmul.bf16.gmra.mxu0 %v3390
      %v3447 = vpop.f32.mrf.mxu0
      %v3448 = vadd.f32 0.0, %v3447
      %v3449 = vpop.f32.mrf.mxu0
      %v3450 = vadd.f32 0.0, %v3449
      %3451 = vmatmul.bf16.gmra.mxu0 %v3393
      %v3452 = vpop.f32.mrf.mxu0
      %v3453 = vadd.f32 0.0, %v3452
      %v3454 = vpop.f32.mrf.mxu0
      %v3455 = vadd.f32 0.0, %v3454
      %3456 = vmatmul.bf16.gmra.mxu0 %v3396
      %v3457 = vpop.f32.mrf.mxu0
      %v3458 = vadd.f32 0.0, %v3457
      %v3459 = vpop.f32.mrf.mxu0
      %v3460 = vadd.f32 0.0, %v3459
      %3461 = vmatmul.bf16.gmra.mxu0 %v3399
      %v3462 = vpop.f32.mrf.mxu0
      %v3463 = vadd.f32 0.0, %v3462
      %v3464 = vpop.f32.mrf.mxu0
      %v3465 = vadd.f32 0.0, %v3464
      %3466 = vmatmul.bf16.gmra.mxu0 %v3402
      %v3467 = vpop.f32.mrf.mxu0
      %v3468 = vadd.f32 0.0, %v3467
      %v3469 = vpop.f32.mrf.mxu0
      %v3470 = vadd.f32 0.0, %v3469
      %3471 = vmatmul.bf16.gmra.mxu0 %v3405
      %v3472 = vpop.f32.mrf.mxu0
      %v3473 = vadd.f32 0.0, %v3472
      %v3474 = vpop.f32.mrf.mxu0
      %v3475 = vadd.f32 0.0, %v3474
      %3476 = vmatmul.bf16.gmra.mxu0 %v3408
      %v3477 = vpop.f32.mrf.mxu0
      %v3478 = vadd.f32 0.0, %v3477
      %v3479 = vpop.f32.mrf.mxu0
      %v3480 = vadd.f32 0.0, %v3479
      %3481 = vdwg.mxu0
      %v3482 = vsel %vm462, %v3258, 0
      %v3484 = vsel %vm462, %v3259, 0
      %v3486 = vsel %vm462, %v3260, 0
      %v3488 = vsel %vm462, %v3261, 0
      %v3490 = vsel %vm462, %v3262, 0
      %v3492 = vsel %vm462, %v3263, 0
      %v3494 = vsel %vm462, %v3264, 0
      %v3496 = vsel %vm462, %v3265, 0
      %v3498 = vsel %vm462, %v3266, 0
      %v3500 = vsel %vm462, %v3267, 0
      %v3502 = vsel %vm462, %v3268, 0
      %v3504 = vsel %vm462, %v3269, 0
      %v3507 = vsel %vm505, %v3270, 0
      %3509 = vmatpush.bf16.msra.mxu0 0
      %3510 = vmatpush.bf16.msra.mxu0 0
      %3511 = vmatpush.bf16.msra.mxu0 0
      %3512 = vmatpush.bf16.msra.mxu0 0
      %3513 = vmatpush.bf16.msra.mxu0 0
      %3514 = vmatpush.bf16.msra.mxu0 0
      %3515 = vmatpush.bf16.msra.mxu0 0
      %3516 = vmatpush.bf16.msra.mxu0 %v3507
      %3517 = vmatmul.bf16.gmra.mxu0 %v3482
      %v3518 = vpop.f32.mrf.mxu0
      %v3519 = vadd.f32 %v3423, %v3518
      %v3520 = vpop.f32.mrf.mxu0
      %v3521 = vadd.f32 %v3425, %v3520
      %3522 = vmatmul.bf16.gmra.mxu0 %v3484
      %v3523 = vpop.f32.mrf.mxu0
      %v3524 = vadd.f32 %v3428, %v3523
      %v3525 = vpop.f32.mrf.mxu0
      %v3526 = vadd.f32 %v3430, %v3525
      %3527 = vmatmul.bf16.gmra.mxu0 %v3486
      %v3528 = vpop.f32.mrf.mxu0
      %v3529 = vadd.f32 %v3433, %v3528
      %v3530 = vpop.f32.mrf.mxu0
      %v3531 = vadd.f32 %v3435, %v3530
      %3532 = vmatmul.bf16.gmra.mxu0 %v3488
      %v3533 = vpop.f32.mrf.mxu0
      %v3534 = vadd.f32 %v3438, %v3533
      %v3535 = vpop.f32.mrf.mxu0
      %v3536 = vadd.f32 %v3440, %v3535
      %3537 = vmatmul.bf16.gmra.mxu0 %v3490
      %v3538 = vpop.f32.mrf.mxu0
      %v3539 = vadd.f32 %v3443, %v3538
      %v3540 = vpop.f32.mrf.mxu0
      %v3541 = vadd.f32 %v3445, %v3540
      %3542 = vmatmul.bf16.gmra.mxu0 %v3492
      %v3543 = vpop.f32.mrf.mxu0
      %v3544 = vadd.f32 %v3448, %v3543
      %v3545 = vpop.f32.mrf.mxu0
      %v3546 = vadd.f32 %v3450, %v3545
      %3547 = vmatmul.bf16.gmra.mxu0 %v3494
      %v3548 = vpop.f32.mrf.mxu0
      %v3549 = vadd.f32 %v3453, %v3548
      %v3550 = vpop.f32.mrf.mxu0
      %v3551 = vadd.f32 %v3455, %v3550
      %3552 = vmatmul.bf16.gmra.mxu0 %v3496
      %v3553 = vpop.f32.mrf.mxu0
      %v3554 = vadd.f32 %v3458, %v3553
      %v3555 = vpop.f32.mrf.mxu0
      %v3556 = vadd.f32 %v3460, %v3555
      %3557 = vmatmul.bf16.gmra.mxu0 %v3498
      %v3558 = vpop.f32.mrf.mxu0
      %v3559 = vadd.f32 %v3463, %v3558
      %v3560 = vpop.f32.mrf.mxu0
      %v3561 = vadd.f32 %v3465, %v3560
      %3562 = vmatmul.bf16.gmra.mxu0 %v3500
      %v3563 = vpop.f32.mrf.mxu0
      %v3564 = vadd.f32 %v3468, %v3563
      %v3565 = vpop.f32.mrf.mxu0
      %v3566 = vadd.f32 %v3470, %v3565
      %3567 = vmatmul.bf16.gmra.mxu0 %v3502
      %v3568 = vpop.f32.mrf.mxu0
      %v3569 = vadd.f32 %v3473, %v3568
      %v3570 = vpop.f32.mrf.mxu0
      %v3571 = vadd.f32 %v3475, %v3570
      %3572 = vmatmul.bf16.gmra.mxu0 %v3504
      %v3573 = vpop.f32.mrf.mxu0
      %v3574 = vadd.f32 %v3478, %v3573
      %v3575 = vpop.f32.mrf.mxu0
      %v3576 = vadd.f32 %v3480, %v3575
      %3577 = vdwg.mxu0
      %s3578 = scalar_lea.vmem %s5, 4
      %v3579 = vld [vmem:[%s3578] sm:$0x3]
      %v3593 = vrot.slane %v3258, 1
      %v3594 = vrot.slane %v3259, 1
      %v3595 = vsel %vm1244, %v3593, %v3594
      %v3596 = vrot.slane %v3260, 1
      %v3597 = vsel %vm1244, %v3594, %v3596
      %v3598 = vrot.slane %v3261, 1
      %v3599 = vsel %vm1244, %v3596, %v3598
      %v3600 = vrot.slane %v3262, 1
      %v3601 = vsel %vm1244, %v3598, %v3600
      %v3602 = vrot.slane %v3263, 1
      %v3603 = vsel %vm1244, %v3600, %v3602
      %v3604 = vrot.slane %v3264, 1
      %v3605 = vsel %vm1244, %v3602, %v3604
      %v3606 = vrot.slane %v3265, 1
      %v3607 = vsel %vm1244, %v3604, %v3606
      %v3608 = vrot.slane %v3266, 1
      %v3609 = vsel %vm1244, %v3606, %v3608
      %v3610 = vrot.slane %v3267, 1
      %v3611 = vsel %vm1244, %v3608, %v3610
      %v3612 = vrot.slane %v3268, 1
      %v3613 = vsel %vm1244, %v3610, %v3612
      %v3614 = vrot.slane %v3269, 1
      %v3615 = vsel %vm1244, %v3612, %v3614
      %v3616 = vrot.slane %v3271, 1
      %v3617 = vsel %vm1244, %v3614, %v3616
      %v3619 = vsel %vm462, %v3595, 0
      %v3622 = vsel %vm462, %v3597, 0
      %v3625 = vsel %vm462, %v3599, 0
      %v3628 = vsel %vm462, %v3601, 0
      %v3631 = vsel %vm462, %v3603, 0
      %v3634 = vsel %vm462, %v3605, 0
      %v3637 = vsel %vm462, %v3607, 0
      %v3640 = vsel %vm462, %v3609, 0
      %v3643 = vsel %vm462, %v3611, 0
      %v3646 = vsel %vm462, %v3613, 0
      %v3649 = vsel %vm462, %v3615, 0
      %v3652 = vsel %vm462, %v3617, 0
      %v3655 = vsel %vm505, %v3579, 0
      %3657 = vmatpush.bf16.msra.mxu0 0
      %3658 = vmatpush.bf16.msra.mxu0 0
      %3659 = vmatpush.bf16.msra.mxu0 0
      %3660 = vmatpush.bf16.msra.mxu0 0
      %3661 = vmatpush.bf16.msra.mxu0 0
      %3662 = vmatpush.bf16.msra.mxu0 0
      %3663 = vmatpush.bf16.msra.mxu0 0
      %3664 = vmatpush.bf16.msra.mxu0 %v3655
      %3665 = vmatmul.bf16.gmra.mxu0 %v3619
      %v3666 = vpop.f32.mrf.mxu0
      %v3667 = vadd.f32 0.0, %v3666
      %v3668 = vpop.f32.mrf.mxu0
      %v3669 = vadd.f32 0.0, %v3668
      %3670 = vmatmul.bf16.gmra.mxu0 %v3622
      %v3671 = vpop.f32.mrf.mxu0
      %v3672 = vadd.f32 0.0, %v3671
      %v3673 = vpop.f32.mrf.mxu0
      %v3674 = vadd.f32 0.0, %v3673
      %3675 = vmatmul.bf16.gmra.mxu0 %v3625
      %v3676 = vpop.f32.mrf.mxu0
      %v3677 = vadd.f32 0.0, %v3676
      %v3678 = vpop.f32.mrf.mxu0
      %v3679 = vadd.f32 0.0, %v3678
      %3680 = vmatmul.bf16.gmra.mxu0 %v3628
      %v3681 = vpop.f32.mrf.mxu0
      %v3682 = vadd.f32 0.0, %v3681
      %v3683 = vpop.f32.mrf.mxu0
      %v3684 = vadd.f32 0.0, %v3683
      %3685 = vmatmul.bf16.gmra.mxu0 %v3631
      %v3686 = vpop.f32.mrf.mxu0
      %v3687 = vadd.f32 0.0, %v3686
      %v3688 = vpop.f32.mrf.mxu0
      %v3689 = vadd.f32 0.0, %v3688
      %3690 = vmatmul.bf16.gmra.mxu0 %v3634
      %v3691 = vpop.f32.mrf.mxu0
      %v3692 = vadd.f32 0.0, %v3691
      %v3693 = vpop.f32.mrf.mxu0
      %v3694 = vadd.f32 0.0, %v3693
      %3695 = vmatmul.bf16.gmra.mxu0 %v3637
      %v3696 = vpop.f32.mrf.mxu0
      %v3697 = vadd.f32 0.0, %v3696
      %v3698 = vpop.f32.mrf.mxu0
      %v3699 = vadd.f32 0.0, %v3698
      %3700 = vmatmul.bf16.gmra.mxu0 %v3640
      %v3701 = vpop.f32.mrf.mxu0
      %v3702 = vadd.f32 0.0, %v3701
      %v3703 = vpop.f32.mrf.mxu0
      %v3704 = vadd.f32 0.0, %v3703
      %3705 = vmatmul.bf16.gmra.mxu0 %v3643
      %v3706 = vpop.f32.mrf.mxu0
      %v3707 = vadd.f32 0.0, %v3706
      %v3708 = vpop.f32.mrf.mxu0
      %v3709 = vadd.f32 0.0, %v3708
      %3710 = vmatmul.bf16.gmra.mxu0 %v3646
      %v3711 = vpop.f32.mrf.mxu0
      %v3712 = vadd.f32 0.0, %v3711
      %v3713 = vpop.f32.mrf.mxu0
      %v3714 = vadd.f32 0.0, %v3713
      %3715 = vmatmul.bf16.gmra.mxu0 %v3649
      %v3716 = vpop.f32.mrf.mxu0
      %v3717 = vadd.f32 0.0, %v3716
      %v3718 = vpop.f32.mrf.mxu0
      %v3719 = vadd.f32 0.0, %v3718
      %3720 = vmatmul.bf16.gmra.mxu0 %v3652
      %v3721 = vpop.f32.mrf.mxu0
      %v3722 = vadd.f32 0.0, %v3721
      %v3723 = vpop.f32.mrf.mxu0
      %v3724 = vadd.f32 0.0, %v3723
      %3725 = vdwg.mxu0
      %v3726 = vadd.f32 %v3519, %v3667
      %v3727 = vadd.f32 %v3521, %v3669
      %v3728 = vadd.f32 %v3524, %v3672
      %v3729 = vadd.f32 %v3526, %v3674
      %v3730 = vadd.f32 %v3529, %v3677
      %v3731 = vadd.f32 %v3531, %v3679
      %v3732 = vadd.f32 %v3534, %v3682
      %v3733 = vadd.f32 %v3536, %v3684
      %v3734 = vadd.f32 %v3539, %v3687
      %v3735 = vadd.f32 %v3541, %v3689
      %v3736 = vadd.f32 %v3544, %v3692
      %v3737 = vadd.f32 %v3546, %v3694
      %v3738 = vadd.f32 %v3549, %v3697
      %v3739 = vadd.f32 %v3551, %v3699
      %v3740 = vadd.f32 %v3554, %v3702
      %v3741 = vadd.f32 %v3556, %v3704
      %v3742 = vadd.f32 %v3559, %v3707
      %v3743 = vadd.f32 %v3561, %v3709
      %v3744 = vadd.f32 %v3564, %v3712
      %v3745 = vadd.f32 %v3566, %v3714
      %v3746 = vadd.f32 %v3569, %v3717
      %v3747 = vadd.f32 %v3571, %v3719
      %v3748 = vadd.f32 %v3574, %v3722
      %v3749 = vadd.f32 %v3576, %v3724
      %v3750 = vpack.c.bf16 %v3254, %v3253
      %s3751 = scalar_lea.vmem %s5, 6
      %v3752 = vld [vmem:[%s3751] sm:$0x3]
      %v3754 = vsel %vm462, %v3750, 0
      %v3757 = vsel %vm505, %v3752, 0
      %3759 = vmatpush.bf16.msra.mxu0 0
      %3760 = vmatpush.bf16.msra.mxu0 0
      %3761 = vmatpush.bf16.msra.mxu0 0
      %3762 = vmatpush.bf16.msra.mxu0 0
      %3763 = vmatpush.bf16.msra.mxu0 0
      %3764 = vmatpush.bf16.msra.mxu0 0
      %3765 = vmatpush.bf16.msra.mxu0 0
      %3766 = vmatpush.bf16.msra.mxu0 %v3757
      %3767 = vmatmul.bf16.gmra.mxu0 %v3484
      %v3768 = vpop.f32.mrf.mxu0
      %v3769 = vadd.f32 0.0, %v3768
      %v3770 = vpop.f32.mrf.mxu0
      %v3771 = vadd.f32 0.0, %v3770
      %3772 = vmatmul.bf16.gmra.mxu0 %v3486
      %v3773 = vpop.f32.mrf.mxu0
      %v3774 = vadd.f32 0.0, %v3773
      %v3775 = vpop.f32.mrf.mxu0
      %v3776 = vadd.f32 0.0, %v3775
      %3777 = vmatmul.bf16.gmra.mxu0 %v3488
      %v3778 = vpop.f32.mrf.mxu0
      %v3779 = vadd.f32 0.0, %v3778
      %v3780 = vpop.f32.mrf.mxu0
      %v3781 = vadd.f32 0.0, %v3780
      %3782 = vmatmul.bf16.gmra.mxu0 %v3490
      %v3783 = vpop.f32.mrf.mxu0
      %v3784 = vadd.f32 0.0, %v3783
      %v3785 = vpop.f32.mrf.mxu0
      %v3786 = vadd.f32 0.0, %v3785
      %3787 = vmatmul.bf16.gmra.mxu0 %v3492
      %v3788 = vpop.f32.mrf.mxu0
      %v3789 = vadd.f32 0.0, %v3788
      %v3790 = vpop.f32.mrf.mxu0
      %v3791 = vadd.f32 0.0, %v3790
      %3792 = vmatmul.bf16.gmra.mxu0 %v3494
      %v3793 = vpop.f32.mrf.mxu0
      %v3794 = vadd.f32 0.0, %v3793
      %v3795 = vpop.f32.mrf.mxu0
      %v3796 = vadd.f32 0.0, %v3795
      %3797 = vmatmul.bf16.gmra.mxu0 %v3496
      %v3798 = vpop.f32.mrf.mxu0
      %v3799 = vadd.f32 0.0, %v3798
      %v3800 = vpop.f32.mrf.mxu0
      %v3801 = vadd.f32 0.0, %v3800
      %3802 = vmatmul.bf16.gmra.mxu0 %v3498
      %v3803 = vpop.f32.mrf.mxu0
      %v3804 = vadd.f32 0.0, %v3803
      %v3805 = vpop.f32.mrf.mxu0
      %v3806 = vadd.f32 0.0, %v3805
      %3807 = vmatmul.bf16.gmra.mxu0 %v3500
      %v3808 = vpop.f32.mrf.mxu0
      %v3809 = vadd.f32 0.0, %v3808
      %v3810 = vpop.f32.mrf.mxu0
      %v3811 = vadd.f32 0.0, %v3810
      %3812 = vmatmul.bf16.gmra.mxu0 %v3502
      %v3813 = vpop.f32.mrf.mxu0
      %v3814 = vadd.f32 0.0, %v3813
      %v3815 = vpop.f32.mrf.mxu0
      %v3816 = vadd.f32 0.0, %v3815
      %3817 = vmatmul.bf16.gmra.mxu0 %v3504
      %v3818 = vpop.f32.mrf.mxu0
      %v3819 = vadd.f32 0.0, %v3818
      %v3820 = vpop.f32.mrf.mxu0
      %v3821 = vadd.f32 0.0, %v3820
      %3822 = vmatmul.bf16.gmra.mxu0 %v3754
      %v3823 = vpop.f32.mrf.mxu0
      %v3824 = vadd.f32 0.0, %v3823
      %v3825 = vpop.f32.mrf.mxu0
      %v3826 = vadd.f32 0.0, %v3825
      %3827 = vdwg.mxu0
      %v3828 = vadd.f32 %v3726, %v3769
      %v3829 = vadd.f32 %v3727, %v3771
      %v3830 = vadd.f32 %v3728, %v3774
      %v3831 = vadd.f32 %v3729, %v3776
      %v3832 = vadd.f32 %v3730, %v3779
      %v3833 = vadd.f32 %v3731, %v3781
      %v3834 = vadd.f32 %v3732, %v3784
      %v3835 = vadd.f32 %v3733, %v3786
      %v3836 = vadd.f32 %v3734, %v3789
      %v3837 = vadd.f32 %v3735, %v3791
      %v3838 = vadd.f32 %v3736, %v3794
      %v3839 = vadd.f32 %v3737, %v3796
      %v3840 = vadd.f32 %v3738, %v3799
      %v3841 = vadd.f32 %v3739, %v3801
      %v3842 = vadd.f32 %v3740, %v3804
      %v3843 = vadd.f32 %v3741, %v3806
      %v3844 = vadd.f32 %v3742, %v3809
      %v3845 = vadd.f32 %v3743, %v3811
      %v3846 = vadd.f32 %v3744, %v3814
      %v3847 = vadd.f32 %v3745, %v3816
      %v3848 = vadd.f32 %v3746, %v3819
      %v3849 = vadd.f32 %v3747, %v3821
      %v3850 = vadd.f32 %v3748, %v3824
      %v3851 = vadd.f32 %v3749, %v3826
      %v3852 = vpack.c.bf16 %v3255, %v3255
      %s3853 = scalar_lea.vmem %s5, 8
      %v3854 = vld [vmem:[%s3853] sm:$0x3]
      %v3855 = vshll.u32 %v3750, 16
      %v3857 = vrot.slane %v3855, 1
      %v3858 = vsel %vm716, %v3368, %v3857
      %v3859 = vshrl.u32 %v3750, 16
      %v3861 = vor.u32 %v3859, %v3857
      %v3863 = vshll.u32 %v3852, 16
      %v3865 = vrot.slane %v3863, 1
      %v3866 = vsel %vm716, %v3861, %v3865
      %v3868 = vsel %vm462, %v3858, 0
      %v3871 = vsel %vm462, %v3866, 0
      %v3874 = vsel %vm505, %v3854, 0
      %3876 = vmatpush.bf16.msra.mxu0 0
      %3877 = vmatpush.bf16.msra.mxu0 0
      %3878 = vmatpush.bf16.msra.mxu0 0
      %3879 = vmatpush.bf16.msra.mxu0 0
      %3880 = vmatpush.bf16.msra.mxu0 0
      %3881 = vmatpush.bf16.msra.mxu0 0
      %3882 = vmatpush.bf16.msra.mxu0 0
      %3883 = vmatpush.bf16.msra.mxu0 %v3874
      %3884 = vmatmul.bf16.gmra.mxu0 %v3378
      %v3885 = vpop.f32.mrf.mxu0
      %v3886 = vadd.f32 0.0, %v3885
      %v3887 = vpop.f32.mrf.mxu0
      %v3888 = vadd.f32 0.0, %v3887
      %3889 = vmatmul.bf16.gmra.mxu0 %v3381
      %v3890 = vpop.f32.mrf.mxu0
      %v3891 = vadd.f32 0.0, %v3890
      %v3892 = vpop.f32.mrf.mxu0
      %v3893 = vadd.f32 0.0, %v3892
      %3894 = vmatmul.bf16.gmra.mxu0 %v3384
      %v3895 = vpop.f32.mrf.mxu0
      %v3896 = vadd.f32 0.0, %v3895
      %v3897 = vpop.f32.mrf.mxu0
      %v3898 = vadd.f32 0.0, %v3897
      %3899 = vmatmul.bf16.gmra.mxu0 %v3387
      %v3900 = vpop.f32.mrf.mxu0
      %v3901 = vadd.f32 0.0, %v3900
      %v3902 = vpop.f32.mrf.mxu0
      %v3903 = vadd.f32 0.0, %v3902
      %3904 = vmatmul.bf16.gmra.mxu0 %v3390
      %v3905 = vpop.f32.mrf.mxu0
      %v3906 = vadd.f32 0.0, %v3905
      %v3907 = vpop.f32.mrf.mxu0
      %v3908 = vadd.f32 0.0, %v3907
      %3909 = vmatmul.bf16.gmra.mxu0 %v3393
      %v3910 = vpop.f32.mrf.mxu0
      %v3911 = vadd.f32 0.0, %v3910
      %v3912 = vpop.f32.mrf.mxu0
      %v3913 = vadd.f32 0.0, %v3912
      %3914 = vmatmul.bf16.gmra.mxu0 %v3396
      %v3915 = vpop.f32.mrf.mxu0
      %v3916 = vadd.f32 0.0, %v3915
      %v3917 = vpop.f32.mrf.mxu0
      %v3918 = vadd.f32 0.0, %v3917
      %3919 = vmatmul.bf16.gmra.mxu0 %v3399
      %v3920 = vpop.f32.mrf.mxu0
      %v3921 = vadd.f32 0.0, %v3920
      %v3922 = vpop.f32.mrf.mxu0
      %v3923 = vadd.f32 0.0, %v3922
      %3924 = vmatmul.bf16.gmra.mxu0 %v3402
      %v3925 = vpop.f32.mrf.mxu0
      %v3926 = vadd.f32 0.0, %v3925
      %v3927 = vpop.f32.mrf.mxu0
      %v3928 = vadd.f32 0.0, %v3927
      %3929 = vmatmul.bf16.gmra.mxu0 %v3405
      %v3930 = vpop.f32.mrf.mxu0
      %v3931 = vadd.f32 0.0, %v3930
      %v3932 = vpop.f32.mrf.mxu0
      %v3933 = vadd.f32 0.0, %v3932
      %3934 = vmatmul.bf16.gmra.mxu0 %v3868
      %v3935 = vpop.f32.mrf.mxu0
      %v3936 = vadd.f32 0.0, %v3935
      %v3937 = vpop.f32.mrf.mxu0
      %v3938 = vadd.f32 0.0, %v3937
      %3939 = vmatmul.bf16.gmra.mxu0 %v3871
      %v3940 = vpop.f32.mrf.mxu0
      %v3941 = vadd.f32 0.0, %v3940
      %v3942 = vpop.f32.mrf.mxu0
      %v3943 = vadd.f32 0.0, %v3942
      %3944 = vdwg.mxu0
      %v3945 = vadd.f32 %v3828, %v3886
      %v3946 = vadd.f32 %v3829, %v3888
      %v3947 = vadd.f32 %v3830, %v3891
      %v3948 = vadd.f32 %v3831, %v3893
      %v3949 = vadd.f32 %v3832, %v3896
      %v3950 = vadd.f32 %v3833, %v3898
      %v3951 = vadd.f32 %v3834, %v3901
      %v3952 = vadd.f32 %v3835, %v3903
      %v3953 = vadd.f32 %v3836, %v3906
      %v3954 = vadd.f32 %v3837, %v3908
      %v3955 = vadd.f32 %v3838, %v3911
      %v3956 = vadd.f32 %v3839, %v3913
      %v3957 = vadd.f32 %v3840, %v3916
      %v3958 = vadd.f32 %v3841, %v3918
      %v3959 = vadd.f32 %v3842, %v3921
      %v3960 = vadd.f32 %v3843, %v3923
      %v3961 = vadd.f32 %v3844, %v3926
      %v3962 = vadd.f32 %v3845, %v3928
      %v3963 = vadd.f32 %v3846, %v3931
      %v3964 = vadd.f32 %v3847, %v3933
      %v3965 = vadd.f32 %v3848, %v3936
      %v3966 = vadd.f32 %v3849, %v3938
      %v3967 = vadd.f32 %v3850, %v3941
      %v3968 = vadd.f32 %v3851, %v3943
      %s3969 = scalar_lea.vmem %s5, 10
      %v3970 = vld [vmem:[%s3969] sm:$0x3]
      %v3973 = vrot.slane %v3750, 1
      %v3974 = vsel %vm1244, %v3614, %v3973
      %v3975 = vrot.slane %v3852, 1
      %v3976 = vsel %vm1244, %v3973, %v3975
      %v3978 = vsel %vm462, %v3974, 0
      %v3981 = vsel %vm462, %v3976, 0
      %v3984 = vsel %vm505, %v3970, 0
      %3986 = vmatpush.bf16.msra.mxu0 0
      %3987 = vmatpush.bf16.msra.mxu0 0
      %3988 = vmatpush.bf16.msra.mxu0 0
      %3989 = vmatpush.bf16.msra.mxu0 0
      %3990 = vmatpush.bf16.msra.mxu0 0
      %3991 = vmatpush.bf16.msra.mxu0 0
      %3992 = vmatpush.bf16.msra.mxu0 0
      %3993 = vmatpush.bf16.msra.mxu0 %v3984
      %3994 = vmatmul.bf16.gmra.mxu0 %v3622
      %v3995 = vpop.f32.mrf.mxu0
      %v3996 = vadd.f32 0.0, %v3995
      %v3997 = vpop.f32.mrf.mxu0
      %v3998 = vadd.f32 0.0, %v3997
      %3999 = vmatmul.bf16.gmra.mxu0 %v3625
      %v4000 = vpop.f32.mrf.mxu0
      %v4001 = vadd.f32 0.0, %v4000
      %v4002 = vpop.f32.mrf.mxu0
      %v4003 = vadd.f32 0.0, %v4002
      %4004 = vmatmul.bf16.gmra.mxu0 %v3628
      %v4005 = vpop.f32.mrf.mxu0
      %v4006 = vadd.f32 0.0, %v4005
      %v4007 = vpop.f32.mrf.mxu0
      %v4008 = vadd.f32 0.0, %v4007
      %4009 = vmatmul.bf16.gmra.mxu0 %v3631
      %v4010 = vpop.f32.mrf.mxu0
      %v4011 = vadd.f32 0.0, %v4010
      %v4012 = vpop.f32.mrf.mxu0
      %v4013 = vadd.f32 0.0, %v4012
      %4014 = vmatmul.bf16.gmra.mxu0 %v3634
      %v4015 = vpop.f32.mrf.mxu0
      %v4016 = vadd.f32 0.0, %v4015
      %v4017 = vpop.f32.mrf.mxu0
      %v4018 = vadd.f32 0.0, %v4017
      %4019 = vmatmul.bf16.gmra.mxu0 %v3637
      %v4020 = vpop.f32.mrf.mxu0
      %v4021 = vadd.f32 0.0, %v4020
      %v4022 = vpop.f32.mrf.mxu0
      %v4023 = vadd.f32 0.0, %v4022
      %4024 = vmatmul.bf16.gmra.mxu0 %v3640
      %v4025 = vpop.f32.mrf.mxu0
      %v4026 = vadd.f32 0.0, %v4025
      %v4027 = vpop.f32.mrf.mxu0
      %v4028 = vadd.f32 0.0, %v4027
      %4029 = vmatmul.bf16.gmra.mxu0 %v3643
      %v4030 = vpop.f32.mrf.mxu0
      %v4031 = vadd.f32 0.0, %v4030
      %v4032 = vpop.f32.mrf.mxu0
      %v4033 = vadd.f32 0.0, %v4032
      %4034 = vmatmul.bf16.gmra.mxu0 %v3646
      %v4035 = vpop.f32.mrf.mxu0
      %v4036 = vadd.f32 0.0, %v4035
      %v4037 = vpop.f32.mrf.mxu0
      %v4038 = vadd.f32 0.0, %v4037
      %4039 = vmatmul.bf16.gmra.mxu0 %v3649
      %v4040 = vpop.f32.mrf.mxu0
      %v4041 = vadd.f32 0.0, %v4040
      %v4042 = vpop.f32.mrf.mxu0
      %v4043 = vadd.f32 0.0, %v4042
      %4044 = vmatmul.bf16.gmra.mxu0 %v3978
      %v4045 = vpop.f32.mrf.mxu0
      %v4046 = vadd.f32 0.0, %v4045
      %v4047 = vpop.f32.mrf.mxu0
      %v4048 = vadd.f32 0.0, %v4047
      %4049 = vmatmul.bf16.gmra.mxu0 %v3981
      %v4050 = vpop.f32.mrf.mxu0
      %v4051 = vadd.f32 0.0, %v4050
      %v4052 = vpop.f32.mrf.mxu0
      %v4053 = vadd.f32 0.0, %v4052
      %4054 = vdwg.mxu0
      %v4055 = vadd.f32 %v3945, %v3996
      %v4056 = vadd.f32 %v3946, %v3998
      %v4057 = vadd.f32 %v3947, %v4001
      %v4058 = vadd.f32 %v3948, %v4003
      %v4059 = vadd.f32 %v3949, %v4006
      %v4060 = vadd.f32 %v3950, %v4008
      %v4061 = vadd.f32 %v3951, %v4011
      %v4062 = vadd.f32 %v3952, %v4013
      %v4063 = vadd.f32 %v3953, %v4016
      %v4064 = vadd.f32 %v3954, %v4018
      %v4065 = vadd.f32 %v3955, %v4021
      %v4066 = vadd.f32 %v3956, %v4023
      %v4067 = vadd.f32 %v3957, %v4026
      %v4068 = vadd.f32 %v3958, %v4028
      %v4069 = vadd.f32 %v3959, %v4031
      %v4070 = vadd.f32 %v3960, %v4033
      %v4071 = vadd.f32 %v3961, %v4036
      %v4072 = vadd.f32 %v3962, %v4038
      %v4073 = vadd.f32 %v3963, %v4041
      %v4074 = vadd.f32 %v3964, %v4043
      %v4075 = vadd.f32 %v3965, %v4046
      %v4076 = vadd.f32 %v3966, %v4048
      %v4077 = vadd.f32 %v3967, %v4051
      %v4078 = vadd.f32 %v3968, %v4053
      %v4079 = vpack.c.bf16 %v3256, %v3255
      %s4080 = scalar_lea.vmem %s5, 12
      %v4081 = vld [vmem:[%s4080] sm:$0x3]
      %v4083 = vsel %vm462, %v4079, 0
      %v4086 = vsel %vm505, %v4081, 0
      %4088 = vmatpush.bf16.msra.mxu0 0
      %4089 = vmatpush.bf16.msra.mxu0 0
      %4090 = vmatpush.bf16.msra.mxu0 0
      %4091 = vmatpush.bf16.msra.mxu0 0
      %4092 = vmatpush.bf16.msra.mxu0 0
      %4093 = vmatpush.bf16.msra.mxu0 0
      %4094 = vmatpush.bf16.msra.mxu0 0
      %4095 = vmatpush.bf16.msra.mxu0 %v4086
      %4096 = vmatmul.bf16.gmra.mxu0 %v3486
      %v4097 = vpop.f32.mrf.mxu0
      %v4098 = vadd.f32 0.0, %v4097
      %v4099 = vpop.f32.mrf.mxu0
      %v4100 = vadd.f32 0.0, %v4099
      %4101 = vmatmul.bf16.gmra.mxu0 %v3488
      %v4102 = vpop.f32.mrf.mxu0
      %v4103 = vadd.f32 0.0, %v4102
      %v4104 = vpop.f32.mrf.mxu0
      %v4105 = vadd.f32 0.0, %v4104
      %4106 = vmatmul.bf16.gmra.mxu0 %v3490
      %v4107 = vpop.f32.mrf.mxu0
      %v4108 = vadd.f32 0.0, %v4107
      %v4109 = vpop.f32.mrf.mxu0
      %v4110 = vadd.f32 0.0, %v4109
      %4111 = vmatmul.bf16.gmra.mxu0 %v3492
      %v4112 = vpop.f32.mrf.mxu0
      %v4113 = vadd.f32 0.0, %v4112
      %v4114 = vpop.f32.mrf.mxu0
      %v4115 = vadd.f32 0.0, %v4114
      %4116 = vmatmul.bf16.gmra.mxu0 %v3494
      %v4117 = vpop.f32.mrf.mxu0
      %v4118 = vadd.f32 0.0, %v4117
      %v4119 = vpop.f32.mrf.mxu0
      %v4120 = vadd.f32 0.0, %v4119
      %4121 = vmatmul.bf16.gmra.mxu0 %v3496
      %v4122 = vpop.f32.mrf.mxu0
      %v4123 = vadd.f32 0.0, %v4122
      %v4124 = vpop.f32.mrf.mxu0
      %v4125 = vadd.f32 0.0, %v4124
      %4126 = vmatmul.bf16.gmra.mxu0 %v3498
      %v4127 = vpop.f32.mrf.mxu0
      %v4128 = vadd.f32 0.0, %v4127
      %v4129 = vpop.f32.mrf.mxu0
      %v4130 = vadd.f32 0.0, %v4129
      %4131 = vmatmul.bf16.gmra.mxu0 %v3500
      %v4132 = vpop.f32.mrf.mxu0
      %v4133 = vadd.f32 0.0, %v4132
      %v4134 = vpop.f32.mrf.mxu0
      %v4135 = vadd.f32 0.0, %v4134
      %4136 = vmatmul.bf16.gmra.mxu0 %v3502
      %v4137 = vpop.f32.mrf.mxu0
      %v4138 = vadd.f32 0.0, %v4137
      %v4139 = vpop.f32.mrf.mxu0
      %v4140 = vadd.f32 0.0, %v4139
      %4141 = vmatmul.bf16.gmra.mxu0 %v3504
      %v4142 = vpop.f32.mrf.mxu0
      %v4143 = vadd.f32 0.0, %v4142
      %v4144 = vpop.f32.mrf.mxu0
      %v4145 = vadd.f32 0.0, %v4144
      %4146 = vmatmul.bf16.gmra.mxu0 %v3754
      %v4147 = vpop.f32.mrf.mxu0
      %v4148 = vadd.f32 0.0, %v4147
      %v4149 = vpop.f32.mrf.mxu0
      %v4150 = vadd.f32 0.0, %v4149
      %4151 = vmatmul.bf16.gmra.mxu0 %v4083
      %v4152 = vpop.f32.mrf.mxu0
      %v4153 = vadd.f32 0.0, %v4152
      %v4154 = vpop.f32.mrf.mxu0
      %v4155 = vadd.f32 0.0, %v4154
      %4156 = vdwg.mxu0
      %v4157 = vadd.f32 %v4055, %v4098
      %v4158 = vadd.f32 %v4056, %v4100
      %v4159 = vadd.f32 %v4057, %v4103
      %v4160 = vadd.f32 %v4058, %v4105
      %v4161 = vadd.f32 %v4059, %v4108
      %v4162 = vadd.f32 %v4060, %v4110
      %v4163 = vadd.f32 %v4061, %v4113
      %v4164 = vadd.f32 %v4062, %v4115
      %v4165 = vadd.f32 %v4063, %v4118
      %v4166 = vadd.f32 %v4064, %v4120
      %v4167 = vadd.f32 %v4065, %v4123
      %v4168 = vadd.f32 %v4066, %v4125
      %v4169 = vadd.f32 %v4067, %v4128
      %v4170 = vadd.f32 %v4068, %v4130
      %v4171 = vadd.f32 %v4069, %v4133
      %v4172 = vadd.f32 %v4070, %v4135
      %v4173 = vadd.f32 %v4071, %v4138
      %v4174 = vadd.f32 %v4072, %v4140
      %v4175 = vadd.f32 %v4073, %v4143
      %v4176 = vadd.f32 %v4074, %v4145
      %v4177 = vadd.f32 %v4075, %v4148
      %v4178 = vadd.f32 %v4076, %v4150
      %v4179 = vadd.f32 %v4077, %v4153
      %v4180 = vadd.f32 %v4078, %v4155
      %v4181 = vpack.c.bf16 %v3257, %v3257
      %s4182 = scalar_lea.vmem %s5, 14
      %v4183 = vld [vmem:[%s4182] sm:$0x3]
      %v4184 = vshll.u32 %v4079, 16
      %v4186 = vrot.slane %v4184, 1
      %v4187 = vsel %vm716, %v3861, %v4186
      %v4188 = vshrl.u32 %v4079, 16
      %v4190 = vor.u32 %v4188, %v4186
      %v4192 = vshll.u32 %v4181, 16
      %v4194 = vrot.slane %v4192, 1
      %v4195 = vsel %vm716, %v4190, %v4194
      %v4197 = vsel %vm462, %v4187, 0
      %v4200 = vsel %vm462, %v4195, 0
      %v4203 = vsel %vm505, %v4183, 0
      %4205 = vmatpush.bf16.msra.mxu0 0
      %4206 = vmatpush.bf16.msra.mxu0 0
      %4207 = vmatpush.bf16.msra.mxu0 0
      %4208 = vmatpush.bf16.msra.mxu0 0
      %4209 = vmatpush.bf16.msra.mxu0 0
      %4210 = vmatpush.bf16.msra.mxu0 0
      %4211 = vmatpush.bf16.msra.mxu0 0
      %4212 = vmatpush.bf16.msra.mxu0 %v4203
      %4213 = vmatmul.bf16.gmra.mxu0 %v3381
      %v4214 = vpop.f32.mrf.mxu0
      %v4215 = vadd.f32 0.0, %v4214
      %v4216 = vpop.f32.mrf.mxu0
      %v4217 = vadd.f32 0.0, %v4216
      %4218 = vmatmul.bf16.gmra.mxu0 %v3384
      %v4219 = vpop.f32.mrf.mxu0
      %v4220 = vadd.f32 0.0, %v4219
      %v4221 = vpop.f32.mrf.mxu0
      %v4222 = vadd.f32 0.0, %v4221
      %4223 = vmatmul.bf16.gmra.mxu0 %v3387
      %v4224 = vpop.f32.mrf.mxu0
      %v4225 = vadd.f32 0.0, %v4224
      %v4226 = vpop.f32.mrf.mxu0
      %v4227 = vadd.f32 0.0, %v4226
      %4228 = vmatmul.bf16.gmra.mxu0 %v3390
      %v4229 = vpop.f32.mrf.mxu0
      %v4230 = vadd.f32 0.0, %v4229
      %v4231 = vpop.f32.mrf.mxu0
      %v4232 = vadd.f32 0.0, %v4231
      %4233 = vmatmul.bf16.gmra.mxu0 %v3393
      %v4234 = vpop.f32.mrf.mxu0
      %v4235 = vadd.f32 0.0, %v4234
      %v4236 = vpop.f32.mrf.mxu0
      %v4237 = vadd.f32 0.0, %v4236
      %4238 = vmatmul.bf16.gmra.mxu0 %v3396
      %v4239 = vpop.f32.mrf.mxu0
      %v4240 = vadd.f32 0.0, %v4239
      %v4241 = vpop.f32.mrf.mxu0
      %v4242 = vadd.f32 0.0, %v4241
      %4243 = vmatmul.bf16.gmra.mxu0 %v3399
      %v4244 = vpop.f32.mrf.mxu0
      %v4245 = vadd.f32 0.0, %v4244
      %v4246 = vpop.f32.mrf.mxu0
      %v4247 = vadd.f32 0.0, %v4246
      %4248 = vmatmul.bf16.gmra.mxu0 %v3402
      %v4249 = vpop.f32.mrf.mxu0
      %v4250 = vadd.f32 0.0, %v4249
      %v4251 = vpop.f32.mrf.mxu0
      %v4252 = vadd.f32 0.0, %v4251
      %4253 = vmatmul.bf16.gmra.mxu0 %v3405
      %v4254 = vpop.f32.mrf.mxu0
      %v4255 = vadd.f32 0.0, %v4254
      %v4256 = vpop.f32.mrf.mxu0
      %v4257 = vadd.f32 0.0, %v4256
      %4258 = vmatmul.bf16.gmra.mxu0 %v3868
      %v4259 = vpop.f32.mrf.mxu0
      %v4260 = vadd.f32 0.0, %v4259
      %v4261 = vpop.f32.mrf.mxu0
      %v4262 = vadd.f32 0.0, %v4261
      %4263 = vmatmul.bf16.gmra.mxu0 %v4197
      %v4264 = vpop.f32.mrf.mxu0
      %v4265 = vadd.f32 0.0, %v4264
      %v4266 = vpop.f32.mrf.mxu0
      %v4267 = vadd.f32 0.0, %v4266
      %4268 = vmatmul.bf16.gmra.mxu0 %v4200
      %v4269 = vpop.f32.mrf.mxu0
      %v4270 = vadd.f32 0.0, %v4269
      %v4271 = vpop.f32.mrf.mxu0
      %v4272 = vadd.f32 0.0, %v4271
      %4273 = vdwg.mxu0
      %v4274 = vadd.f32 %v4157, %v4215
      %v4275 = vadd.f32 %v4158, %v4217
      %v4276 = vadd.f32 %v4159, %v4220
      %v4277 = vadd.f32 %v4160, %v4222
      %v4278 = vadd.f32 %v4161, %v4225
      %v4279 = vadd.f32 %v4162, %v4227
      %v4280 = vadd.f32 %v4163, %v4230
      %v4281 = vadd.f32 %v4164, %v4232
      %v4282 = vadd.f32 %v4165, %v4235
      %v4283 = vadd.f32 %v4166, %v4237
      %v4284 = vadd.f32 %v4167, %v4240
      %v4285 = vadd.f32 %v4168, %v4242
      %v4286 = vadd.f32 %v4169, %v4245
      %v4287 = vadd.f32 %v4170, %v4247
      %v4288 = vadd.f32 %v4171, %v4250
      %v4289 = vadd.f32 %v4172, %v4252
      %v4290 = vadd.f32 %v4173, %v4255
      %v4291 = vadd.f32 %v4174, %v4257
      %v4292 = vadd.f32 %v4175, %v4260
      %v4293 = vadd.f32 %v4176, %v4262
      %v4294 = vadd.f32 %v4177, %v4265
      %v4295 = vadd.f32 %v4178, %v4267
      %v4296 = vadd.f32 %v4179, %v4270
      %v4297 = vadd.f32 %v4180, %v4272
      %s4298 = scalar_lea.vmem %s5, 16
      %v4299 = vld [vmem:[%s4298] sm:$0x3]
      %v4302 = vrot.slane %v4079, 1
      %v4303 = vsel %vm1244, %v3973, %v4302
      %v4304 = vrot.slane %v4181, 1
      %v4305 = vsel %vm1244, %v4302, %v4304
      %v4307 = vsel %vm462, %v4303, 0
      %v4310 = vsel %vm462, %v4305, 0
      %v4313 = vsel %vm505, %v4299, 0
      %4315 = vmatpush.bf16.msra.mxu0 0
      %4316 = vmatpush.bf16.msra.mxu0 0
      %4317 = vmatpush.bf16.msra.mxu0 0
      %4318 = vmatpush.bf16.msra.mxu0 0
      %4319 = vmatpush.bf16.msra.mxu0 0
      %4320 = vmatpush.bf16.msra.mxu0 0
      %4321 = vmatpush.bf16.msra.mxu0 0
      %4322 = vmatpush.bf16.msra.mxu0 %v4313
      %4323 = vmatmul.bf16.gmra.mxu0 %v3625
      %v4324 = vpop.f32.mrf.mxu0
      %v4325 = vadd.f32 0.0, %v4324
      %v4326 = vpop.f32.mrf.mxu0
      %v4327 = vadd.f32 0.0, %v4326
      %4328 = vmatmul.bf16.gmra.mxu0 %v3628
      %v4329 = vpop.f32.mrf.mxu0
      %v4330 = vadd.f32 0.0, %v4329
      %v4331 = vpop.f32.mrf.mxu0
      %v4332 = vadd.f32 0.0, %v4331
      %4333 = vmatmul.bf16.gmra.mxu0 %v3631
      %v4334 = vpop.f32.mrf.mxu0
      %v4335 = vadd.f32 0.0, %v4334
      %v4336 = vpop.f32.mrf.mxu0
      %v4337 = vadd.f32 0.0, %v4336
      %4338 = vmatmul.bf16.gmra.mxu0 %v3634
      %v4339 = vpop.f32.mrf.mxu0
      %v4340 = vadd.f32 0.0, %v4339
      %v4341 = vpop.f32.mrf.mxu0
      %v4342 = vadd.f32 0.0, %v4341
      %4343 = vmatmul.bf16.gmra.mxu0 %v3637
      %v4344 = vpop.f32.mrf.mxu0
      %v4345 = vadd.f32 0.0, %v4344
      %v4346 = vpop.f32.mrf.mxu0
      %v4347 = vadd.f32 0.0, %v4346
      %4348 = vmatmul.bf16.gmra.mxu0 %v3640
      %v4349 = vpop.f32.mrf.mxu0
      %v4350 = vadd.f32 0.0, %v4349
      %v4351 = vpop.f32.mrf.mxu0
      %v4352 = vadd.f32 0.0, %v4351
      %4353 = vmatmul.bf16.gmra.mxu0 %v3643
      %v4354 = vpop.f32.mrf.mxu0
      %v4355 = vadd.f32 0.0, %v4354
      %v4356 = vpop.f32.mrf.mxu0
      %v4357 = vadd.f32 0.0, %v4356
      %4358 = vmatmul.bf16.gmra.mxu0 %v3646
      %v4359 = vpop.f32.mrf.mxu0
      %v4360 = vadd.f32 0.0, %v4359
      %v4361 = vpop.f32.mrf.mxu0
      %v4362 = vadd.f32 0.0, %v4361
      %4363 = vmatmul.bf16.gmra.mxu0 %v3649
      %v4364 = vpop.f32.mrf.mxu0
      %v4365 = vadd.f32 0.0, %v4364
      %v4366 = vpop.f32.mrf.mxu0
      %v4367 = vadd.f32 0.0, %v4366
      %4368 = vmatmul.bf16.gmra.mxu0 %v3978
      %v4369 = vpop.f32.mrf.mxu0
      %v4370 = vadd.f32 0.0, %v4369
      %v4371 = vpop.f32.mrf.mxu0
      %v4372 = vadd.f32 0.0, %v4371
      %4373 = vmatmul.bf16.gmra.mxu0 %v4307
      %v4374 = vpop.f32.mrf.mxu0
      %v4375 = vadd.f32 0.0, %v4374
      %v4376 = vpop.f32.mrf.mxu0
      %v4377 = vadd.f32 0.0, %v4376
      %4378 = vmatmul.bf16.gmra.mxu0 %v4310
      %v4379 = vpop.f32.mrf.mxu0
      %v4380 = vadd.f32 0.0, %v4379
      %v4381 = vpop.f32.mrf.mxu0
      %v4382 = vadd.f32 0.0, %v4381
      %4383 = vdwg.mxu0
      %v4384 = vadd.f32 %v4274, %v4325
      %v4385 = vadd.f32 %v4275, %v4327
      %v4386 = vadd.f32 %v4276, %v4330
      %v4387 = vadd.f32 %v4277, %v4332
      %v4388 = vadd.f32 %v4278, %v4335
      %v4389 = vadd.f32 %v4279, %v4337
      %v4390 = vadd.f32 %v4280, %v4340
      %v4391 = vadd.f32 %v4281, %v4342
      %v4392 = vadd.f32 %v4282, %v4345
      %v4393 = vadd.f32 %v4283, %v4347
      %v4394 = vadd.f32 %v4284, %v4350
      %v4395 = vadd.f32 %v4285, %v4352
      %v4396 = vadd.f32 %v4286, %v4355
      %v4397 = vadd.f32 %v4287, %v4357
      %v4398 = vadd.f32 %v4288, %v4360
      %v4399 = vadd.f32 %v4289, %v4362
      %v4400 = vadd.f32 %v4290, %v4365
      %v4401 = vadd.f32 %v4291, %v4367
      %v4402 = vadd.f32 %v4292, %v4370
      %v4403 = vadd.f32 %v4293, %v4372
      %v4404 = vadd.f32 %v4294, %v4375
      %v4405 = vadd.f32 %v4295, %v4377
      %v4406 = vadd.f32 %v4296, %v4380
      %v4407 = vadd.f32 %v4297, %v4382
      %v4408 = vld [vmem:[%s6] sm:$0x1]
      %v4410 = vperm.slane %v4408, 0
      %v4412 = vadd.f32 %v4384, %v4410
      %v4413 = vadd.f32 %v4385, %v4410
      %v4414 = vadd.f32 %v4386, %v4410
      %v4415 = vadd.f32 %v4387, %v4410
      %v4416 = vadd.f32 %v4388, %v4410
      %v4417 = vadd.f32 %v4389, %v4410
      %v4418 = vadd.f32 %v4390, %v4410
      %v4419 = vadd.f32 %v4391, %v4410
      %v4420 = vadd.f32 %v4392, %v4410
      %v4421 = vadd.f32 %v4393, %v4410
      %v4422 = vadd.f32 %v4394, %v4410
      %v4423 = vadd.f32 %v4395, %v4410
      %v4424 = vadd.f32 %v4396, %v4410
      %v4425 = vadd.f32 %v4397, %v4410
      %v4426 = vadd.f32 %v4398, %v4410
      %v4427 = vadd.f32 %v4399, %v4410
      %v4428 = vadd.f32 %v4400, %v4410
      %v4429 = vadd.f32 %v4401, %v4410
      %v4430 = vadd.f32 %v4402, %v4410
      %v4431 = vadd.f32 %v4403, %v4410
      %v4432 = vadd.f32 %v4404, %v4410
      %v4433 = vadd.f32 %v4405, %v4410
      %v4434 = vadd.f32 %v4406, %v4410
      %v4435 = vadd.f32 %v4407, %v4410
      %v4436 = vmax.f32 %v4412, 0.0
      %v4437 = vmax.f32 %v4413, 0.0
      %v4438 = vmax.f32 %v4414, 0.0
      %v4439 = vmax.f32 %v4415, 0.0
      %v4440 = vmax.f32 %v4416, 0.0
      %v4441 = vmax.f32 %v4417, 0.0
      %v4442 = vmax.f32 %v4418, 0.0
      %v4443 = vmax.f32 %v4419, 0.0
      %v4444 = vmax.f32 %v4420, 0.0
      %v4445 = vmax.f32 %v4421, 0.0
      %v4446 = vmax.f32 %v4422, 0.0
      %v4447 = vmax.f32 %v4423, 0.0
      %v4448 = vmax.f32 %v4424, 0.0
      %v4449 = vmax.f32 %v4425, 0.0
      %v4450 = vmax.f32 %v4426, 0.0
      %v4451 = vmax.f32 %v4427, 0.0
      %v4452 = vmax.f32 %v4428, 0.0
      %v4453 = vmax.f32 %v4429, 0.0
      %v4454 = vmax.f32 %v4430, 0.0
      %v4455 = vmax.f32 %v4431, 0.0
      %v4456 = vmax.f32 %v4432, 0.0
      %v4457 = vmax.f32 %v4433, 0.0
      %v4458 = vmax.f32 %v4434, 0.0
      %v4459 = vmax.f32 %v4435, 0.0
      %4460 = vst.msk [vmem:[%s298] sm:$0xff] %vm462, %v4436
      %4461 = vst.msk [vmem:[%s298 + $0x8] sm:$0xff] %vm462, %v4437
      %4462 = vst.msk [vmem:[%s298 + $0x10] sm:$0xff] %vm462, %v4438
      %4463 = vst.msk [vmem:[%s298 + $0x18] sm:$0xff] %vm462, %v4439
      %4464 = vst.msk [vmem:[%s298 + $0x20] sm:$0xff] %vm462, %v4440
      %4465 = vst.msk [vmem:[%s298 + $0x28] sm:$0xff] %vm462, %v4441
      %4466 = vst.msk [vmem:[%s298 + $0x30] sm:$0xff] %vm462, %v4442
      %4467 = vst.msk [vmem:[%s298 + $0x38] sm:$0xff] %vm462, %v4443
      %4468 = vst.msk [vmem:[%s298 + $0x40] sm:$0xff] %vm462, %v4444
      %4469 = vst.msk [vmem:[%s298 + $0x48] sm:$0xff] %vm462, %v4445
      %4470 = vst.msk [vmem:[%s298 + $0x50] sm:$0xff] %vm462, %v4446
      %4471 = vst.msk [vmem:[%s298 + $0x58] sm:$0xff] %vm462, %v4447
      %4472 = vst.msk [vmem:[%s298 + $0x60] sm:$0xff] %vm462, %v4448
      %4473 = vst.msk [vmem:[%s298 + $0x68] sm:$0xff] %vm462, %v4449
      %4474 = vst.msk [vmem:[%s298 + $0x70] sm:$0xff] %vm462, %v4450
      %4475 = vst.msk [vmem:[%s298 + $0x78] sm:$0xff] %vm462, %v4451
      %4476 = vst.msk [vmem:[%s298 + $0x80] sm:$0xff] %vm462, %v4452
      %4477 = vst.msk [vmem:[%s298 + $0x88] sm:$0xff] %vm462, %v4453
      %4478 = vst.msk [vmem:[%s298 + $0x90] sm:$0xff] %vm462, %v4454
      %4479 = vst.msk [vmem:[%s298 + $0x98] sm:$0xff] %vm462, %v4455
      %4480 = vst.msk [vmem:[%s298 + $0xa0] sm:$0xff] %vm462, %v4456
      %4481 = vst.msk [vmem:[%s298 + $0xa8] sm:$0xff] %vm462, %v4457
      %4482 = vst.msk [vmem:[%s298 + $0xb0] sm:$0xff] %vm462, %v4458
      %4483 = vst.msk [vmem:[%s298 + $0xb8] sm:$0xff] %vm462, %v4459
      %p4484 = scmp.lt.s32.totalorder %s18, 1
      %s4485 = scalar_select %p4484, %s18, 1
      %s4486 = smul.addr %s4485, 24
      %s4487 = smul.addr %s4486, 8
      %s4488 = scalar_lea.vmem %s7, %s4487
      // Predicated region
      $region49: #{expansion_forward.3} parent=47 // pred_check
        %p4489 = pneg %p193
      $region50: #{expansion_forward.3} parent=47 // pred_check_branch
        %4491 = sbr.rel (%p4489) target = $region52
      $region51: #{expansion_forward.3} parent=47 // pred_region
        _
      $region52: #{expansion_forward.3} parent=47 // pred_fallthru
        _
    $region48: #{expansion_forward.3} parent=5 // pred_fallthru
      _
    %p4492 = scmp.le.s32.totalorder 2, %s13
    // Predicated region
    $region53: #{expansion_forward.3} parent=5 // pred_check
      %p4493 = pneg %p4492
    $region54: #{expansion_forward.3} parent=5 // pred_check_branch
      %4495 = sbr.rel (%p4493) target = $region56
    $region55: #{expansion_forward.3} parent=5 // pred_region
      %s4496 = ssub.s32 %s13, 2
      // Predicated region
      $region57: #{expansion_forward.3} parent=55 // pred_check
        %p4497 = pneg %p199
      $region58: #{expansion_forward.3} parent=55 // pred_check_branch
        %4499 = sbr.rel (%p4497) target = $region60
      $region59: #{expansion_forward.3} parent=55 // pred_region
        %p4500 = scmp.lt.s32.totalorder %s19, 1
        %s4501 = scalar_select %p4500, %s19, 1
        %s4502 = smul.addr %s4501, 24
        %s4503 = smul.addr %s4502, 8
        %s4504 = scalar_lea.vmem %s7, %s4503
      $region60: #{expansion_forward.3} parent=55 // pred_fallthru
        _
    $region56: #{expansion_forward.3} parent=5 // pred_fallthru
      _
  $region6: #{expansion_forward.3} parent=0 // loop_footer
    %s17 = sadd.s32 1, %s13
  $region7: #{expansion_forward.3} parent=0 // loop_footer_branch
    %12 = sbr.rel target = $region3
  $region8: #{expansion_forward.3} parent=0 // loop_exit
    _

</llo_original>
